<compile_context>
chip_gen: v7x
topology: tpu7x:2x2x1
jax: 0.10.0
libtpu: 0.0.40
codegen_flags: <defaults>
</compile_context>

<pallas_src>
import numpy as np
import jax
import jax.numpy as jnp
from jax.experimental import pallas as pl
from jax.experimental.pallas import tpu as pltpu

# ----------------------------- model config (small, synthetic) -------------------
D_EMBD = 32
N_HEADS = 4
N_LAYERS = 2
VOCAB = 64
BLOCK_SIZE = 16          # n_positions
HEAD_DIM = D_EMBD // N_HEADS
LN_EPS = 1e-5
V_PAD = 128              # lane-dense logits width (>= VOCAB, multiple of 128)


# ----------------------------- in-kernel helpers ---------------------------------
def _layernorm(x, g, b):
    mu = jnp.mean(x, axis=-1, keepdims=True)
    var = jnp.mean((x - mu) ** 2, axis=-1, keepdims=True)
    return (x - mu) * jax.lax.rsqrt(var + LN_EPS) * g + b


def _gelu_new(x):
    c = np.float32(np.sqrt(2.0 / np.pi))
    return 0.5 * x * (1.0 + jnp.tanh(c * (x + np.float32(0.044715) * x * x * x)))


# ----------------------------- fused Pallas kernel -------------------------------
def make_gpt_kernel(BT):
    """Builds the fused forward kernel for a fixed flattened row count BT = B*T."""
    bf = jnp.bfloat16

    def kernel(tok_ref, mask_ref, pos_ref,
               qw_ref, qb_ref, kw_ref, kb_ref, vw_ref, vb_ref,
               pw_ref, pb_ref, g1_ref, b1_ref,
               fw_ref, fb_ref, sw_ref, sb_ref, g2_ref, b2_ref,
               wte_ref, wtet_ref, o_ref):
        # --- embedding: one-hot token gather on the MXU + static positional slab ---
        tok = tok_ref[...]                                            # (BT, 1) int32
        viota = jax.lax.broadcasted_iota(jnp.int32, (BT, VOCAB), 1)
        onehot = jnp.where(viota == tok, 1.0, 0.0).astype(bf)         # (BT, VOCAB)
        x = jnp.dot(onehot, wte_ref[...],
                    preferred_element_type=jnp.float32) + pos_ref[...]  # (BT, D) f32

        mask = mask_ref[...]                                          # additive 0 / -1e4

        for l in range(N_LAYERS):                                     # static unroll (2)
            xb = x.astype(bf)
            a = jnp.zeros((BT, D_EMBD), jnp.float32)
            for h in range(N_HEADS):                                  # static unroll (4)
                # Per-head Q/K/V via leading-axis weight indexing (no lane slicing).
                qh = jnp.dot(xb, qw_ref[l, h],
                             preferred_element_type=jnp.float32) + qb_ref[l, h]
                kh = jnp.dot(xb, kw_ref[l, h],
                             preferred_element_type=jnp.float32) + kb_ref[l, h]
                vh = jnp.dot(xb, vw_ref[l, h],
                             preferred_element_type=jnp.float32) + vb_ref[l, h]
                # q @ k^T (scale already folded into Q weights host-side).
                w = jax.lax.dot_general(
                    qh.astype(bf), kh.astype(bf), (((1,), (1,)), ((), ())),
                    preferred_element_type=jnp.float32)
                w = w + mask
                e = jnp.exp(w)                  # masked entries: exp(~-1e4) -> 0 in f32
                p = e * pl.reciprocal(jnp.sum(e, axis=-1, keepdims=True), approx=True)
                hout = jnp.dot(p.astype(bf), vh.astype(bf),
                               preferred_element_type=jnp.float32)
                # Output projection folded into the head loop (no concat).
                a = a + jnp.dot(hout.astype(bf), pw_ref[l, h],
                                preferred_element_type=jnp.float32)
            a = a + pb_ref[l]

            # --- post-LN residual structure (GPT-1), f32 elementwise ---------------
            n = _layernorm(x + a, g1_ref[l], b1_ref[l])
            hmid = _gelu_new(jnp.dot(n.astype(bf), fw_ref[l],
                                     preferred_element_type=jnp.float32) + fb_ref[l])
            m = jnp.dot(hmid.astype(bf), sw_ref[l],
                        preferred_element_type=jnp.float32) + sb_ref[l]
            x = _layernorm(n + m, g2_ref[l], b2_ref[l])

        # --- tied lm_head: hidden @ wte.T (pre-transposed, lane-padded, bf16) ------
        o_ref[...] = jnp.dot(x.astype(bf), wtet_ref[...],
                             preferred_element_type=jnp.float32)

    return kernel


# ----------------------------- pallas_call wrapper -------------------------------
def gpt_forward(tokids, params):
    """Full GPThf.forward: tokids (B, T) int32 -> logits (B, T, VOCAB) f32."""
    B, T = tokids.shape
    assert T <= BLOCK_SIZE
    BT = B * T
    bf = jnp.bfloat16
    blocks = params["blocks"]
    scale = np.float32(1.0 / np.sqrt(HEAD_DIM))

    def stacked(name):
        return jnp.stack([lp[name] for lp in blocks], axis=0)

    def qkv_w(which):  # (L, H, D, hd), slicing only on leading axes inside the kernel
        return jnp.stack([
            lp["attn_w"][:, which * D_EMBD:(which + 1) * D_EMBD]
              .reshape(D_EMBD, N_HEADS, HEAD_DIM).transpose(1, 0, 2)
            for lp in blocks], axis=0)

    def qkv_b(which):  # (L, H, 1, hd)
        return jnp.stack([
            lp["attn_b"][0, which * D_EMBD:(which + 1) * D_EMBD]
              .reshape(N_HEADS, 1, HEAD_DIM)
            for lp in blocks], axis=0)

    qw = (qkv_w(0) * scale).astype(bf)        # softmax scale folded into Q weights/bias
    qb = qkv_b(0) * scale
    kw = qkv_w(1).astype(bf)
    kb = qkv_b(1)
    vw = qkv_w(2).astype(bf)
    vb = qkv_b(2)
    pw = jnp.stack([lp["proj_w"].reshape(N_HEADS, HEAD_DIM, D_EMBD)
                    for lp in blocks], axis=0).astype(bf)            # (L, H, hd, D)
    pb = stacked("proj_b")
    g1, b1 = stacked("ln1_g"), stacked("ln1_b")
    fw, fb = stacked("fc_w").astype(bf), stacked("fc_b")
    sw, sb = stacked("fc2_w").astype(bf), stacked("fc2_b")
    g2, b2 = stacked("ln2_g"), stacked("ln2_b")

    wte_bf = params["wte"].astype(bf)                                  # (VOCAB, D)
    wte_t = jnp.pad(params["wte"].T, ((0, 0), (0, V_PAD - VOCAB))).astype(bf)  # (D, 128)

    # Static positional slab (row r of flattened batch*seq -> wpe[r % T]).
    pos_emb = jnp.tile(params["wpe"][:T], (B, 1))                      # (BT, D) f32

    # Precomputed additive block-diagonal causal mask (0 / -1e4), built once on host.
    r = np.arange(BT)
    allowed = (r[:, None] // T == r[None, :] // T) & (r[None, :] <= r[:, None])
    mask_add = jnp.asarray(np.where(allowed, 0.0, -1e4), jnp.float32)  # (BT, BT)

    tok_col = tokids.reshape(BT, 1).astype(jnp.int32)

    # TODO(synk): embd/attn/resid dropout are identity in eval mode, so omitted.
    inputs = (tok_col, mask_add, pos_emb,
              qw, qb, kw, kb, vw, vb, pw, pb, g1, b1,
              fw, fb, sw, sb, g2, b2, wte_bf, wte_t)

    vmem = pltpu.MemorySpace.VMEM
    logits_padded = pl.pallas_call(
        make_gpt_kernel(BT),
        out_shape=jax.ShapeDtypeStruct((BT, V_PAD), jnp.float32),
        in_specs=[pl.BlockSpec(memory_space=vmem) for _ in inputs],
        out_specs=pl.BlockSpec(memory_space=vmem),
        compiler_params=pltpu.CompilerParams(vmem_limit_bytes=32 * 1024 * 1024),
    )(*inputs)

    return logits_padded.reshape(B, T, V_PAD)[:, :, :VOCAB]


# ----------------------------- deterministic parameter init ----------------------
def init_params(key):
    std = 0.02
    keys = jax.random.split(key, 2 + 6 * N_LAYERS)
    params = {
        "wte": std * jax.random.normal(keys[0], (VOCAB, D_EMBD), jnp.float32),
        "wpe": std * jax.random.normal(keys[1], (BLOCK_SIZE, D_EMBD), jnp.float32),
        "blocks": [],
    }
    ki = 2
    for _ in range(N_LAYERS):
        lp = {
            "attn_w": std * jax.random.normal(keys[ki + 0], (D_EMBD, 3 * D_EMBD), jnp.float32),
            "attn_b": jnp.zeros((1, 3 * D_EMBD), jnp.float32),
            "proj_w": std * jax.random.normal(keys[ki + 1], (D_EMBD, D_EMBD), jnp.float32),
            "proj_b": jnp.zeros((1, D_EMBD), jnp.float32),
            "ln1_g": jnp.ones((1, D_EMBD), jnp.float32),
            "ln1_b": jnp.zeros((1, D_EMBD), jnp.float32),
            "fc_w": std * jax.random.normal(keys[ki + 2], (D_EMBD, 4 * D_EMBD), jnp.float32),
            "fc_b": jnp.zeros((1, 4 * D_EMBD), jnp.float32),
            "fc2_w": std * jax.random.normal(keys[ki + 3], (4 * D_EMBD, D_EMBD), jnp.float32),
            "fc2_b": jnp.zeros((1, D_EMBD), jnp.float32),
            "ln2_g": jnp.ones((1, D_EMBD), jnp.float32),
            "ln2_b": jnp.zeros((1, D_EMBD), jnp.float32),
        }
        params["blocks"].append(lp)
        ki += 6
    return params


# ----------------------------- pure-JAX reference (for verification) -------------
def gpt_forward_ref(tokids, params):
    B, T = tokids.shape
    x = params["wte"][tokids] + params["wpe"][jnp.arange(T)][None, :, :]
    mask = jnp.tril(jnp.ones((T, T), bool))
    for lp in params["blocks"]:
        qkv = x @ lp["attn_w"] + lp["attn_b"][0]
        q, k, v = jnp.split(qkv, 3, axis=-1)
        q = q.reshape(B, T, N_HEADS, HEAD_DIM).transpose(0, 2, 1, 3)
        k = k.reshape(B, T, N_HEADS, HEAD_DIM).transpose(0, 2, 1, 3)
        v = v.reshape(B, T, N_HEADS, HEAD_DIM).transpose(0, 2, 1, 3)
        w = jnp.einsum("bhqd,bhkd->bhqk", q, k) / np.sqrt(HEAD_DIM)
        w = jnp.where(mask[None, None], w, -1e4)
        p = jax.nn.softmax(w, axis=-1)
        o = jnp.einsum("bhqk,bhkd->bhqd", p, v).transpose(0, 2, 1, 3).reshape(B, T, D_EMBD)
        a = o @ lp["proj_w"] + lp["proj_b"][0]
        n = _layernorm(x + a, lp["ln1_g"][0], lp["ln1_b"][0])
        m = _gelu_new(n @ lp["fc_w"] + lp["fc_b"][0]) @ lp["fc2_w"] + lp["fc2_b"][0]
        x = _layernorm(n + m, lp["ln2_g"][0], lp["ln2_b"][0])
    return x @ params["wte"].T


# ----------------------------- main ----------------------------------------------
if __name__ == "__main__":
    key = jax.random.PRNGKey(0)
    pkey, tkey = jax.random.split(key)
    params = init_params(pkey)

    B, T = 2, 8
    tokids = jax.random.randint(tkey, (B, T), 0, VOCAB, dtype=jnp.int32)

    logits = gpt_forward(tokids, params)
    logits = jax.block_until_ready(logits)

    ref = jax.block_until_ready(gpt_forward_ref(tokids, params))
    assert logits.shape == (B, T, VOCAB)
    # Relaxed tolerance: bf16 matmul operands + EUP approximate reciprocal in softmax.
    np.testing.assert_allclose(np.asarray(logits), np.asarray(ref),
                               rtol=2e-2, atol=2e-2)
    print("KERNEL_OK")
</pallas_src>

<mosaic_0001>
module attributes {stable_mosaic.version = 11 : i64} {
  func.func @kernel(%arg0: memref<16x1xi32, #tpu.memory_space<vmem>>, %arg1: memref<16x16xf32, #tpu.memory_space<vmem>>, %arg2: memref<16x32xf32, #tpu.memory_space<vmem>>, %arg3: memref<2x4x32x8xbf16, #tpu.memory_space<vmem>>, %arg4: memref<2x4x1x8xf32, #tpu.memory_space<vmem>>, %arg5: memref<2x4x32x8xbf16, #tpu.memory_space<vmem>>, %arg6: memref<2x4x1x8xf32, #tpu.memory_space<vmem>>, %arg7: memref<2x4x32x8xbf16, #tpu.memory_space<vmem>>, %arg8: memref<2x4x1x8xf32, #tpu.memory_space<vmem>>, %arg9: memref<2x4x8x32xbf16, #tpu.memory_space<vmem>>, %arg10: memref<2x1x32xf32, #tpu.memory_space<vmem>>, %arg11: memref<2x1x32xf32, #tpu.memory_space<vmem>>, %arg12: memref<2x1x32xf32, #tpu.memory_space<vmem>>, %arg13: memref<2x32x128xbf16, #tpu.memory_space<vmem>>, %arg14: memref<2x1x128xf32, #tpu.memory_space<vmem>>, %arg15: memref<2x128x32xbf16, #tpu.memory_space<vmem>>, %arg16: memref<2x1x32xf32, #tpu.memory_space<vmem>>, %arg17: memref<2x1x32xf32, #tpu.memory_space<vmem>>, %arg18: memref<2x1x32xf32, #tpu.memory_space<vmem>>, %arg19: memref<64x32xbf16, #tpu.memory_space<vmem>>, %arg20: memref<32x128xbf16, #tpu.memory_space<vmem>>, %arg21: memref<16x128xf32, #tpu.memory_space<vmem>>) attributes {dimension_semantics = [], scalar_prefetch = 0 : i64, scratch_operands = 0 : i64, tpu.core_type = #tpu.core_type<tc>} {
    %c0 = arith.constant 0 : index
    %c0_0 = arith.constant 0 : index
    %0 = vector.load %arg0[%c0, %c0_0] : memref<16x1xi32, #tpu.memory_space<vmem>>, vector<16x1xi32>
    %1 = tpu.iota {dimensions = array<i32: 1>} : vector<16x64xi32>
    %2 = vector.broadcast %0 : vector<16x1xi32> to vector<16x64xi32>
    %3 = arith.cmpi eq, %1, %2 : vector<16x64xi32>
    %cst = arith.constant 1.000000e+00 : f32
    %cst_1 = arith.constant 0.000000e+00 : f32
    %4 = vector.broadcast %cst : f32 to vector<16x64xf32>
    %5 = vector.broadcast %cst_1 : f32 to vector<16x64xf32>
    %6 = arith.select %3, %4, %5 : vector<16x64xi1>, vector<16x64xf32>
    %7 = arith.truncf %6 : vector<16x64xf32> to vector<16x64xbf16>
    %c0_2 = arith.constant 0 : index
    %c0_3 = arith.constant 0 : index
    %8 = vector.load %arg19[%c0_2, %c0_3] : memref<64x32xbf16, #tpu.memory_space<vmem>>, vector<64x32xbf16>
    %cst_4 = arith.constant dense<0.000000e+00> : vector<16x32xf32>
    %9 = tpu.matmul %7, %8, %cst_4 {dimension_numbers = #tpu.dot_dimension_numbers<[1], [0], [0], [1], [0, 0, 1, 1], [], []>} : vector<16x64xbf16>, vector<64x32xbf16>, vector<16x32xf32> -> vector<16x32xf32>
    %c0_5 = arith.constant 0 : index
    %c0_6 = arith.constant 0 : index
    %10 = vector.load %arg2[%c0_5, %c0_6] : memref<16x32xf32, #tpu.memory_space<vmem>>, vector<16x32xf32>
    %11 = arith.addf %9, %10 : vector<16x32xf32>
    %c0_7 = arith.constant 0 : index
    %c0_8 = arith.constant 0 : index
    %12 = vector.load %arg1[%c0_7, %c0_8] : memref<16x16xf32, #tpu.memory_space<vmem>>, vector<16x16xf32>
    %13 = arith.truncf %11 : vector<16x32xf32> to vector<16x32xbf16>
    %cst_9 = arith.constant 0.000000e+00 : f32
    %14 = vector.broadcast %cst_9 : f32 to vector<16x32xf32>
    %c0_10 = arith.constant 0 : index
    %c0_11 = arith.constant 0 : index
    %c0_12 = arith.constant 0 : index
    %c0_13 = arith.constant 0 : index
    %15 = vector.load %arg3[%c0_10, %c0_11, %c0_12, %c0_13] : memref<2x4x32x8xbf16, #tpu.memory_space<vmem>>, vector<1x1x32x8xbf16>
    %16 = vector.shape_cast %15 : vector<1x1x32x8xbf16> to vector<32x8xbf16>
    %cst_14 = arith.constant dense<0.000000e+00> : vector<16x8xf32>
    %17 = tpu.matmul %13, %16, %cst_14 {dimension_numbers = #tpu.dot_dimension_numbers<[1], [0], [0], [1], [0, 0, 1, 1], [], []>} : vector<16x32xbf16>, vector<32x8xbf16>, vector<16x8xf32> -> vector<16x8xf32>
    %c0_15 = arith.constant 0 : index
    %c0_16 = arith.constant 0 : index
    %c0_17 = arith.constant 0 : index
    %c0_18 = arith.constant 0 : index
    %18 = vector.load %arg4[%c0_15, %c0_16, %c0_17, %c0_18] : memref<2x4x1x8xf32, #tpu.memory_space<vmem>>, vector<1x1x1x8xf32>
    %19 = vector.shape_cast %18 : vector<1x1x1x8xf32> to vector<1x8xf32>
    %20 = vector.broadcast %19 : vector<1x8xf32> to vector<16x8xf32>
    %21 = arith.addf %17, %20 : vector<16x8xf32>
    %c0_19 = arith.constant 0 : index
    %c0_20 = arith.constant 0 : index
    %c0_21 = arith.constant 0 : index
    %c0_22 = arith.constant 0 : index
    %22 = vector.load %arg5[%c0_19, %c0_20, %c0_21, %c0_22] : memref<2x4x32x8xbf16, #tpu.memory_space<vmem>>, vector<1x1x32x8xbf16>
    %23 = vector.shape_cast %22 : vector<1x1x32x8xbf16> to vector<32x8xbf16>
    %cst_23 = arith.constant dense<0.000000e+00> : vector<16x8xf32>
    %24 = tpu.matmul %13, %23, %cst_23 {dimension_numbers = #tpu.dot_dimension_numbers<[1], [0], [0], [1], [0, 0, 1, 1], [], []>} : vector<16x32xbf16>, vector<32x8xbf16>, vector<16x8xf32> -> vector<16x8xf32>
    %c0_24 = arith.constant 0 : index
    %c0_25 = arith.constant 0 : index
    %c0_26 = arith.constant 0 : index
    %c0_27 = arith.constant 0 : index
    %25 = vector.load %arg6[%c0_24, %c0_25, %c0_26, %c0_27] : memref<2x4x1x8xf32, #tpu.memory_space<vmem>>, vector<1x1x1x8xf32>
    %26 = vector.shape_cast %25 : vector<1x1x1x8xf32> to vector<1x8xf32>
    %27 = vector.broadcast %26 : vector<1x8xf32> to vector<16x8xf32>
    %28 = arith.addf %24, %27 : vector<16x8xf32>
    %c0_28 = arith.constant 0 : index
    %c0_29 = arith.constant 0 : index
    %c0_30 = arith.constant 0 : index
    %c0_31 = arith.constant 0 : index
    %29 = vector.load %arg7[%c0_28, %c0_29, %c0_30, %c0_31] : memref<2x4x32x8xbf16, #tpu.memory_space<vmem>>, vector<1x1x32x8xbf16>
    %30 = vector.shape_cast %29 : vector<1x1x32x8xbf16> to vector<32x8xbf16>
    %cst_32 = arith.constant dense<0.000000e+00> : vector<16x8xf32>
    %31 = tpu.matmul %13, %30, %cst_32 {dimension_numbers = #tpu.dot_dimension_numbers<[1], [0], [0], [1], [0, 0, 1, 1], [], []>} : vector<16x32xbf16>, vector<32x8xbf16>, vector<16x8xf32> -> vector<16x8xf32>
    %c0_33 = arith.constant 0 : index
    %c0_34 = arith.constant 0 : index
    %c0_35 = arith.constant 0 : index
    %c0_36 = arith.constant 0 : index
    %32 = vector.load %arg8[%c0_33, %c0_34, %c0_35, %c0_36] : memref<2x4x1x8xf32, #tpu.memory_space<vmem>>, vector<1x1x1x8xf32>
    %33 = vector.shape_cast %32 : vector<1x1x1x8xf32> to vector<1x8xf32>
    %34 = vector.broadcast %33 : vector<1x8xf32> to vector<16x8xf32>
    %35 = arith.addf %31, %34 : vector<16x8xf32>
    %36 = arith.truncf %21 : vector<16x8xf32> to vector<16x8xbf16>
    %37 = arith.truncf %28 : vector<16x8xf32> to vector<16x8xbf16>
    %cst_37 = arith.constant dense<0.000000e+00> : vector<16x16xf32>
    %38 = tpu.matmul %36, %37, %cst_37 {dimension_numbers = #tpu.dot_dimension_numbers<[1], [1], [0], [0], [0, 0, 1, 0], [], []>} : vector<16x8xbf16>, vector<16x8xbf16>, vector<16x16xf32> -> vector<16x16xf32>
    %39 = arith.addf %38, %12 : vector<16x16xf32>
    %40 = math.exp %39 : vector<16x16xf32>
    %cst_38 = arith.constant dense<0.000000e+00> : vector<16xf32>
    %41 = vector.multi_reduction <add>, %40, %cst_38 [1] : vector<16x16xf32> to vector<16xf32>
    %42 = vector.shape_cast %41 : vector<16xf32> to vector<16x1xf32>
    %43 = tpu.reciprocal %42 {approx = true} : vector<16x1xf32> -> vector<16x1xf32>
    %44 = vector.broadcast %43 : vector<16x1xf32> to vector<16x16xf32>
    %45 = arith.mulf %40, %44 : vector<16x16xf32>
    %46 = arith.truncf %45 : vector<16x16xf32> to vector<16x16xbf16>
    %47 = arith.truncf %35 : vector<16x8xf32> to vector<16x8xbf16>
    %cst_39 = arith.constant dense<0.000000e+00> : vector<16x8xf32>
    %48 = tpu.matmul %46, %47, %cst_39 {dimension_numbers = #tpu.dot_dimension_numbers<[1], [0], [0], [1], [0, 0, 1, 1], [], []>} : vector<16x16xbf16>, vector<16x8xbf16>, vector<16x8xf32> -> vector<16x8xf32>
    %49 = arith.truncf %48 : vector<16x8xf32> to vector<16x8xbf16>
    %c0_40 = arith.constant 0 : index
    %c0_41 = arith.constant 0 : index
    %c0_42 = arith.constant 0 : index
    %c0_43 = arith.constant 0 : index
    %50 = vector.load %arg9[%c0_40, %c0_41, %c0_42, %c0_43] : memref<2x4x8x32xbf16, #tpu.memory_space<vmem>>, vector<1x1x8x32xbf16>
    %51 = vector.shape_cast %50 : vector<1x1x8x32xbf16> to vector<8x32xbf16>
    %cst_44 = arith.constant dense<0.000000e+00> : vector<16x32xf32>
    %52 = tpu.matmul %49, %51, %cst_44 {dimension_numbers = #tpu.dot_dimension_numbers<[1], [0], [0], [1], [0, 0, 1, 1], [], []>} : vector<16x8xbf16>, vector<8x32xbf16>, vector<16x32xf32> -> vector<16x32xf32>
    %53 = arith.addf %14, %52 : vector<16x32xf32>
    %c0_45 = arith.constant 0 : index
    %c1 = arith.constant 1 : index
    %c0_46 = arith.constant 0 : index
    %c0_47 = arith.constant 0 : index
    %54 = vector.load %arg3[%c0_45, %c1, %c0_46, %c0_47] : memref<2x4x32x8xbf16, #tpu.memory_space<vmem>>, vector<1x1x32x8xbf16>
    %55 = vector.shape_cast %54 : vector<1x1x32x8xbf16> to vector<32x8xbf16>
    %cst_48 = arith.constant dense<0.000000e+00> : vector<16x8xf32>
    %56 = tpu.matmul %13, %55, %cst_48 {dimension_numbers = #tpu.dot_dimension_numbers<[1], [0], [0], [1], [0, 0, 1, 1], [], []>} : vector<16x32xbf16>, vector<32x8xbf16>, vector<16x8xf32> -> vector<16x8xf32>
    %c0_49 = arith.constant 0 : index
    %c1_50 = arith.constant 1 : index
    %c0_51 = arith.constant 0 : index
    %c0_52 = arith.constant 0 : index
    %57 = vector.load %arg4[%c0_49, %c1_50, %c0_51, %c0_52] : memref<2x4x1x8xf32, #tpu.memory_space<vmem>>, vector<1x1x1x8xf32>
    %58 = vector.shape_cast %57 : vector<1x1x1x8xf32> to vector<1x8xf32>
    %59 = vector.broadcast %58 : vector<1x8xf32> to vector<16x8xf32>
    %60 = arith.addf %56, %59 : vector<16x8xf32>
    %c0_53 = arith.constant 0 : index
    %c1_54 = arith.constant 1 : index
    %c0_55 = arith.constant 0 : index
    %c0_56 = arith.constant 0 : index
    %61 = vector.load %arg5[%c0_53, %c1_54, %c0_55, %c0_56] : memref<2x4x32x8xbf16, #tpu.memory_space<vmem>>, vector<1x1x32x8xbf16>
    %62 = vector.shape_cast %61 : vector<1x1x32x8xbf16> to vector<32x8xbf16>
    %cst_57 = arith.constant dense<0.000000e+00> : vector<16x8xf32>
    %63 = tpu.matmul %13, %62, %cst_57 {dimension_numbers = #tpu.dot_dimension_numbers<[1], [0], [0], [1], [0, 0, 1, 1], [], []>} : vector<16x32xbf16>, vector<32x8xbf16>, vector<16x8xf32> -> vector<16x8xf32>
    %c0_58 = arith.constant 0 : index
    %c1_59 = arith.constant 1 : index
    %c0_60 = arith.constant 0 : index
    %c0_61 = arith.constant 0 : index
    %64 = vector.load %arg6[%c0_58, %c1_59, %c0_60, %c0_61] : memref<2x4x1x8xf32, #tpu.memory_space<vmem>>, vector<1x1x1x8xf32>
    %65 = vector.shape_cast %64 : vector<1x1x1x8xf32> to vector<1x8xf32>
    %66 = vector.broadcast %65 : vector<1x8xf32> to vector<16x8xf32>
    %67 = arith.addf %63, %66 : vector<16x8xf32>
    %c0_62 = arith.constant 0 : index
    %c1_63 = arith.constant 1 : index
    %c0_64 = arith.constant 0 : index
    %c0_65 = arith.constant 0 : index
    %68 = vector.load %arg7[%c0_62, %c1_63, %c0_64, %c0_65] : memref<2x4x32x8xbf16, #tpu.memory_space<vmem>>, vector<1x1x32x8xbf16>
    %69 = vector.shape_cast %68 : vector<1x1x32x8xbf16> to vector<32x8xbf16>
    %cst_66 = arith.constant dense<0.000000e+00> : vector<16x8xf32>
    %70 = tpu.matmul %13, %69, %cst_66 {dimension_numbers = #tpu.dot_dimension_numbers<[1], [0], [0], [1], [0, 0, 1, 1], [], []>} : vector<16x32xbf16>, vector<32x8xbf16>, vector<16x8xf32> -> vector<16x8xf32>
    %c0_67 = arith.constant 0 : index
    %c1_68 = arith.constant 1 : index
    %c0_69 = arith.constant 0 : index
    %c0_70 = arith.constant 0 : index
    %71 = vector.load %arg8[%c0_67, %c1_68, %c0_69, %c0_70] : memref<2x4x1x8xf32, #tpu.memory_space<vmem>>, vector<1x1x1x8xf32>
    %72 = vector.shape_cast %71 : vector<1x1x1x8xf32> to vector<1x8xf32>
    %73 = vector.broadcast %72 : vector<1x8xf32> to vector<16x8xf32>
    %74 = arith.addf %70, %73 : vector<16x8xf32>
    %75 = arith.truncf %60 : vector<16x8xf32> to vector<16x8xbf16>
    %76 = arith.truncf %67 : vector<16x8xf32> to vector<16x8xbf16>
    %cst_71 = arith.constant dense<0.000000e+00> : vector<16x16xf32>
    %77 = tpu.matmul %75, %76, %cst_71 {dimension_numbers = #tpu.dot_dimension_numbers<[1], [1], [0], [0], [0, 0, 1, 0], [], []>} : vector<16x8xbf16>, vector<16x8xbf16>, vector<16x16xf32> -> vector<16x16xf32>
    %78 = arith.addf %77, %12 : vector<16x16xf32>
    %79 = math.exp %78 : vector<16x16xf32>
    %cst_72 = arith.constant dense<0.000000e+00> : vector<16xf32>
    %80 = vector.multi_reduction <add>, %79, %cst_72 [1] : vector<16x16xf32> to vector<16xf32>
    %81 = vector.shape_cast %80 : vector<16xf32> to vector<16x1xf32>
    %82 = tpu.reciprocal %81 {approx = true} : vector<16x1xf32> -> vector<16x1xf32>
    %83 = vector.broadcast %82 : vector<16x1xf32> to vector<16x16xf32>
    %84 = arith.mulf %79, %83 : vector<16x16xf32>
    %85 = arith.truncf %84 : vector<16x16xf32> to vector<16x16xbf16>
    %86 = arith.truncf %74 : vector<16x8xf32> to vector<16x8xbf16>
    %cst_73 = arith.constant dense<0.000000e+00> : vector<16x8xf32>
    %87 = tpu.matmul %85, %86, %cst_73 {dimension_numbers = #tpu.dot_dimension_numbers<[1], [0], [0], [1], [0, 0, 1, 1], [], []>} : vector<16x16xbf16>, vector<16x8xbf16>, vector<16x8xf32> -> vector<16x8xf32>
    %88 = arith.truncf %87 : vector<16x8xf32> to vector<16x8xbf16>
    %c0_74 = arith.constant 0 : index
    %c1_75 = arith.constant 1 : index
    %c0_76 = arith.constant 0 : index
    %c0_77 = arith.constant 0 : index
    %89 = vector.load %arg9[%c0_74, %c1_75, %c0_76, %c0_77] : memref<2x4x8x32xbf16, #tpu.memory_space<vmem>>, vector<1x1x8x32xbf16>
    %90 = vector.shape_cast %89 : vector<1x1x8x32xbf16> to vector<8x32xbf16>
    %cst_78 = arith.constant dense<0.000000e+00> : vector<16x32xf32>
    %91 = tpu.matmul %88, %90, %cst_78 {dimension_numbers = #tpu.dot_dimension_numbers<[1], [0], [0], [1], [0, 0, 1, 1], [], []>} : vector<16x8xbf16>, vector<8x32xbf16>, vector<16x32xf32> -> vector<16x32xf32>
    %92 = arith.addf %53, %91 : vector<16x32xf32>
    %c0_79 = arith.constant 0 : index
    %c2 = arith.constant 2 : index
    %c0_80 = arith.constant 0 : index
    %c0_81 = arith.constant 0 : index
    %93 = vector.load %arg3[%c0_79, %c2, %c0_80, %c0_81] : memref<2x4x32x8xbf16, #tpu.memory_space<vmem>>, vector<1x1x32x8xbf16>
    %94 = vector.shape_cast %93 : vector<1x1x32x8xbf16> to vector<32x8xbf16>
    %cst_82 = arith.constant dense<0.000000e+00> : vector<16x8xf32>
    %95 = tpu.matmul %13, %94, %cst_82 {dimension_numbers = #tpu.dot_dimension_numbers<[1], [0], [0], [1], [0, 0, 1, 1], [], []>} : vector<16x32xbf16>, vector<32x8xbf16>, vector<16x8xf32> -> vector<16x8xf32>
    %c0_83 = arith.constant 0 : index
    %c2_84 = arith.constant 2 : index
    %c0_85 = arith.constant 0 : index
    %c0_86 = arith.constant 0 : index
    %96 = vector.load %arg4[%c0_83, %c2_84, %c0_85, %c0_86] : memref<2x4x1x8xf32, #tpu.memory_space<vmem>>, vector<1x1x1x8xf32>
    %97 = vector.shape_cast %96 : vector<1x1x1x8xf32> to vector<1x8xf32>
    %98 = vector.broadcast %97 : vector<1x8xf32> to vector<16x8xf32>
    %99 = arith.addf %95, %98 : vector<16x8xf32>
    %c0_87 = arith.constant 0 : index
    %c2_88 = arith.constant 2 : index
    %c0_89 = arith.constant 0 : index
    %c0_90 = arith.constant 0 : index
    %100 = vector.load %arg5[%c0_87, %c2_88, %c0_89, %c0_90] : memref<2x4x32x8xbf16, #tpu.memory_space<vmem>>, vector<1x1x32x8xbf16>
    %101 = vector.shape_cast %100 : vector<1x1x32x8xbf16> to vector<32x8xbf16>
    %cst_91 = arith.constant dense<0.000000e+00> : vector<16x8xf32>
    %102 = tpu.matmul %13, %101, %cst_91 {dimension_numbers = #tpu.dot_dimension_numbers<[1], [0], [0], [1], [0, 0, 1, 1], [], []>} : vector<16x32xbf16>, vector<32x8xbf16>, vector<16x8xf32> -> vector<16x8xf32>
    %c0_92 = arith.constant 0 : index
    %c2_93 = arith.constant 2 : index
    %c0_94 = arith.constant 0 : index
    %c0_95 = arith.constant 0 : index
    %103 = vector.load %arg6[%c0_92, %c2_93, %c0_94, %c0_95] : memref<2x4x1x8xf32, #tpu.memory_space<vmem>>, vector<1x1x1x8xf32>
    %104 = vector.shape_cast %103 : vector<1x1x1x8xf32> to vector<1x8xf32>
    %105 = vector.broadcast %104 : vector<1x8xf32> to vector<16x8xf32>
    %106 = arith.addf %102, %105 : vector<16x8xf32>
    %c0_96 = arith.constant 0 : index
    %c2_97 = arith.constant 2 : index
    %c0_98 = arith.constant 0 : index
    %c0_99 = arith.constant 0 : index
    %107 = vector.load %arg7[%c0_96, %c2_97, %c0_98, %c0_99] : memref<2x4x32x8xbf16, #tpu.memory_space<vmem>>, vector<1x1x32x8xbf16>
    %108 = vector.shape_cast %107 : vector<1x1x32x8xbf16> to vector<32x8xbf16>
    %cst_100 = arith.constant dense<0.000000e+00> : vector<16x8xf32>
    %109 = tpu.matmul %13, %108, %cst_100 {dimension_numbers = #tpu.dot_dimension_numbers<[1], [0], [0], [1], [0, 0, 1, 1], [], []>} : vector<16x32xbf16>, vector<32x8xbf16>, vector<16x8xf32> -> vector<16x8xf32>
    %c0_101 = arith.constant 0 : index
    %c2_102 = arith.constant 2 : index
    %c0_103 = arith.constant 0 : index
    %c0_104 = arith.constant 0 : index
    %110 = vector.load %arg8[%c0_101, %c2_102, %c0_103, %c0_104] : memref<2x4x1x8xf32, #tpu.memory_space<vmem>>, vector<1x1x1x8xf32>
    %111 = vector.shape_cast %110 : vector<1x1x1x8xf32> to vector<1x8xf32>
    %112 = vector.broadcast %111 : vector<1x8xf32> to vector<16x8xf32>
    %113 = arith.addf %109, %112 : vector<16x8xf32>
    %114 = arith.truncf %99 : vector<16x8xf32> to vector<16x8xbf16>
    %115 = arith.truncf %106 : vector<16x8xf32> to vector<16x8xbf16>
    %cst_105 = arith.constant dense<0.000000e+00> : vector<16x16xf32>
    %116 = tpu.matmul %114, %115, %cst_105 {dimension_numbers = #tpu.dot_dimension_numbers<[1], [1], [0], [0], [0, 0, 1, 0], [], []>} : vector<16x8xbf16>, vector<16x8xbf16>, vector<16x16xf32> -> vector<16x16xf32>
    %117 = arith.addf %116, %12 : vector<16x16xf32>
    %118 = math.exp %117 : vector<16x16xf32>
    %cst_106 = arith.constant dense<0.000000e+00> : vector<16xf32>
    %119 = vector.multi_reduction <add>, %118, %cst_106 [1] : vector<16x16xf32> to vector<16xf32>
    %120 = vector.shape_cast %119 : vector<16xf32> to vector<16x1xf32>
    %121 = tpu.reciprocal %120 {approx = true} : vector<16x1xf32> -> vector<16x1xf32>
    %122 = vector.broadcast %121 : vector<16x1xf32> to vector<16x16xf32>
    %123 = arith.mulf %118, %122 : vector<16x16xf32>
    %124 = arith.truncf %123 : vector<16x16xf32> to vector<16x16xbf16>
    %125 = arith.truncf %113 : vector<16x8xf32> to vector<16x8xbf16>
    %cst_107 = arith.constant dense<0.000000e+00> : vector<16x8xf32>
    %126 = tpu.matmul %124, %125, %cst_107 {dimension_numbers = #tpu.dot_dimension_numbers<[1], [0], [0], [1], [0, 0, 1, 1], [], []>} : vector<16x16xbf16>, vector<16x8xbf16>, vector<16x8xf32> -> vector<16x8xf32>
    %127 = arith.truncf %126 : vector<16x8xf32> to vector<16x8xbf16>
    %c0_108 = arith.constant 0 : index
    %c2_109 = arith.constant 2 : index
    %c0_110 = arith.constant 0 : index
    %c0_111 = arith.constant 0 : index
    %128 = vector.load %arg9[%c0_108, %c2_109, %c0_110, %c0_111] : memref<2x4x8x32xbf16, #tpu.memory_space<vmem>>, vector<1x1x8x32xbf16>
    %129 = vector.shape_cast %128 : vector<1x1x8x32xbf16> to vector<8x32xbf16>
    %cst_112 = arith.constant dense<0.000000e+00> : vector<16x32xf32>
    %130 = tpu.matmul %127, %129, %cst_112 {dimension_numbers = #tpu.dot_dimension_numbers<[1], [0], [0], [1], [0, 0, 1, 1], [], []>} : vector<16x8xbf16>, vector<8x32xbf16>, vector<16x32xf32> -> vector<16x32xf32>
    %131 = arith.addf %92, %130 : vector<16x32xf32>
    %c0_113 = arith.constant 0 : index
    %c3 = arith.constant 3 : index
    %c0_114 = arith.constant 0 : index
    %c0_115 = arith.constant 0 : index
    %132 = vector.load %arg3[%c0_113, %c3, %c0_114, %c0_115] : memref<2x4x32x8xbf16, #tpu.memory_space<vmem>>, vector<1x1x32x8xbf16>
    %133 = vector.shape_cast %132 : vector<1x1x32x8xbf16> to vector<32x8xbf16>
    %cst_116 = arith.constant dense<0.000000e+00> : vector<16x8xf32>
    %134 = tpu.matmul %13, %133, %cst_116 {dimension_numbers = #tpu.dot_dimension_numbers<[1], [0], [0], [1], [0, 0, 1, 1], [], []>} : vector<16x32xbf16>, vector<32x8xbf16>, vector<16x8xf32> -> vector<16x8xf32>
    %c0_117 = arith.constant 0 : index
    %c3_118 = arith.constant 3 : index
    %c0_119 = arith.constant 0 : index
    %c0_120 = arith.constant 0 : index
    %135 = vector.load %arg4[%c0_117, %c3_118, %c0_119, %c0_120] : memref<2x4x1x8xf32, #tpu.memory_space<vmem>>, vector<1x1x1x8xf32>
    %136 = vector.shape_cast %135 : vector<1x1x1x8xf32> to vector<1x8xf32>
    %137 = vector.broadcast %136 : vector<1x8xf32> to vector<16x8xf32>
    %138 = arith.addf %134, %137 : vector<16x8xf32>
    %c0_121 = arith.constant 0 : index
    %c3_122 = arith.constant 3 : index
    %c0_123 = arith.constant 0 : index
    %c0_124 = arith.constant 0 : index
    %139 = vector.load %arg5[%c0_121, %c3_122, %c0_123, %c0_124] : memref<2x4x32x8xbf16, #tpu.memory_space<vmem>>, vector<1x1x32x8xbf16>
    %140 = vector.shape_cast %139 : vector<1x1x32x8xbf16> to vector<32x8xbf16>
    %cst_125 = arith.constant dense<0.000000e+00> : vector<16x8xf32>
    %141 = tpu.matmul %13, %140, %cst_125 {dimension_numbers = #tpu.dot_dimension_numbers<[1], [0], [0], [1], [0, 0, 1, 1], [], []>} : vector<16x32xbf16>, vector<32x8xbf16>, vector<16x8xf32> -> vector<16x8xf32>
    %c0_126 = arith.constant 0 : index
    %c3_127 = arith.constant 3 : index
    %c0_128 = arith.constant 0 : index
    %c0_129 = arith.constant 0 : index
    %142 = vector.load %arg6[%c0_126, %c3_127, %c0_128, %c0_129] : memref<2x4x1x8xf32, #tpu.memory_space<vmem>>, vector<1x1x1x8xf32>
    %143 = vector.shape_cast %142 : vector<1x1x1x8xf32> to vector<1x8xf32>
    %144 = vector.broadcast %143 : vector<1x8xf32> to vector<16x8xf32>
    %145 = arith.addf %141, %144 : vector<16x8xf32>
    %c0_130 = arith.constant 0 : index
    %c3_131 = arith.constant 3 : index
    %c0_132 = arith.constant 0 : index
    %c0_133 = arith.constant 0 : index
    %146 = vector.load %arg7[%c0_130, %c3_131, %c0_132, %c0_133] : memref<2x4x32x8xbf16, #tpu.memory_space<vmem>>, vector<1x1x32x8xbf16>
    %147 = vector.shape_cast %146 : vector<1x1x32x8xbf16> to vector<32x8xbf16>
    %cst_134 = arith.constant dense<0.000000e+00> : vector<16x8xf32>
    %148 = tpu.matmul %13, %147, %cst_134 {dimension_numbers = #tpu.dot_dimension_numbers<[1], [0], [0], [1], [0, 0, 1, 1], [], []>} : vector<16x32xbf16>, vector<32x8xbf16>, vector<16x8xf32> -> vector<16x8xf32>
    %c0_135 = arith.constant 0 : index
    %c3_136 = arith.constant 3 : index
    %c0_137 = arith.constant 0 : index
    %c0_138 = arith.constant 0 : index
    %149 = vector.load %arg8[%c0_135, %c3_136, %c0_137, %c0_138] : memref<2x4x1x8xf32, #tpu.memory_space<vmem>>, vector<1x1x1x8xf32>
    %150 = vector.shape_cast %149 : vector<1x1x1x8xf32> to vector<1x8xf32>
    %151 = vector.broadcast %150 : vector<1x8xf32> to vector<16x8xf32>
    %152 = arith.addf %148, %151 : vector<16x8xf32>
    %153 = arith.truncf %138 : vector<16x8xf32> to vector<16x8xbf16>
    %154 = arith.truncf %145 : vector<16x8xf32> to vector<16x8xbf16>
    %cst_139 = arith.constant dense<0.000000e+00> : vector<16x16xf32>
    %155 = tpu.matmul %153, %154, %cst_139 {dimension_numbers = #tpu.dot_dimension_numbers<[1], [1], [0], [0], [0, 0, 1, 0], [], []>} : vector<16x8xbf16>, vector<16x8xbf16>, vector<16x16xf32> -> vector<16x16xf32>
    %156 = arith.addf %155, %12 : vector<16x16xf32>
    %157 = math.exp %156 : vector<16x16xf32>
    %cst_140 = arith.constant dense<0.000000e+00> : vector<16xf32>
    %158 = vector.multi_reduction <add>, %157, %cst_140 [1] : vector<16x16xf32> to vector<16xf32>
    %159 = vector.shape_cast %158 : vector<16xf32> to vector<16x1xf32>
    %160 = tpu.reciprocal %159 {approx = true} : vector<16x1xf32> -> vector<16x1xf32>
    %161 = vector.broadcast %160 : vector<16x1xf32> to vector<16x16xf32>
    %162 = arith.mulf %157, %161 : vector<16x16xf32>
    %163 = arith.truncf %162 : vector<16x16xf32> to vector<16x16xbf16>
    %164 = arith.truncf %152 : vector<16x8xf32> to vector<16x8xbf16>
    %cst_141 = arith.constant dense<0.000000e+00> : vector<16x8xf32>
    %165 = tpu.matmul %163, %164, %cst_141 {dimension_numbers = #tpu.dot_dimension_numbers<[1], [0], [0], [1], [0, 0, 1, 1], [], []>} : vector<16x16xbf16>, vector<16x8xbf16>, vector<16x8xf32> -> vector<16x8xf32>
    %166 = arith.truncf %165 : vector<16x8xf32> to vector<16x8xbf16>
    %c0_142 = arith.constant 0 : index
    %c3_143 = arith.constant 3 : index
    %c0_144 = arith.constant 0 : index
    %c0_145 = arith.constant 0 : index
    %167 = vector.load %arg9[%c0_142, %c3_143, %c0_144, %c0_145] : memref<2x4x8x32xbf16, #tpu.memory_space<vmem>>, vector<1x1x8x32xbf16>
    %168 = vector.shape_cast %167 : vector<1x1x8x32xbf16> to vector<8x32xbf16>
    %cst_146 = arith.constant dense<0.000000e+00> : vector<16x32xf32>
    %169 = tpu.matmul %166, %168, %cst_146 {dimension_numbers = #tpu.dot_dimension_numbers<[1], [0], [0], [1], [0, 0, 1, 1], [], []>} : vector<16x8xbf16>, vector<8x32xbf16>, vector<16x32xf32> -> vector<16x32xf32>
    %170 = arith.addf %131, %169 : vector<16x32xf32>
    %c0_147 = arith.constant 0 : index
    %c0_148 = arith.constant 0 : index
    %c0_149 = arith.constant 0 : index
    %171 = vector.load %arg10[%c0_147, %c0_148, %c0_149] : memref<2x1x32xf32, #tpu.memory_space<vmem>>, vector<1x1x32xf32>
    %172 = vector.shape_cast %171 : vector<1x1x32xf32> to vector<1x32xf32>
    %173 = vector.broadcast %172 : vector<1x32xf32> to vector<16x32xf32>
    %174 = arith.addf %170, %173 : vector<16x32xf32>
    %175 = arith.addf %11, %174 : vector<16x32xf32>
    %c0_150 = arith.constant 0 : index
    %c0_151 = arith.constant 0 : index
    %c0_152 = arith.constant 0 : index
    %176 = vector.load %arg11[%c0_150, %c0_151, %c0_152] : memref<2x1x32xf32, #tpu.memory_space<vmem>>, vector<1x1x32xf32>
    %177 = vector.shape_cast %176 : vector<1x1x32xf32> to vector<1x32xf32>
    %c0_153 = arith.constant 0 : index
    %c0_154 = arith.constant 0 : index
    %c0_155 = arith.constant 0 : index
    %178 = vector.load %arg12[%c0_153, %c0_154, %c0_155] : memref<2x1x32xf32, #tpu.memory_space<vmem>>, vector<1x1x32xf32>
    %179 = vector.shape_cast %178 : vector<1x1x32xf32> to vector<1x32xf32>
    %cst_156 = arith.constant dense<0.000000e+00> : vector<16xf32>
    %180 = vector.multi_reduction <add>, %175, %cst_156 [1] : vector<16x32xf32> to vector<16xf32>
    %181 = vector.shape_cast %180 : vector<16xf32> to vector<16x1xf32>
    %cst_157 = arith.constant 3.200000e+01 : f32
    %182 = vector.broadcast %cst_157 : f32 to vector<16x1xf32>
    %183 = arith.divf %181, %182 : vector<16x1xf32>
    %184 = vector.broadcast %183 : vector<16x1xf32> to vector<16x32xf32>
    %185 = arith.subf %175, %184 : vector<16x32xf32>
    %186 = arith.mulf %185, %185 : vector<16x32xf32>
    %cst_158 = arith.constant dense<0.000000e+00> : vector<16xf32>
    %187 = vector.multi_reduction <add>, %186, %cst_158 [1] : vector<16x32xf32> to vector<16xf32>
    %188 = vector.shape_cast %187 : vector<16xf32> to vector<16x1xf32>
    %cst_159 = arith.constant 3.200000e+01 : f32
    %189 = vector.broadcast %cst_159 : f32 to vector<16x1xf32>
    %190 = arith.divf %188, %189 : vector<16x1xf32>
    %191 = vector.broadcast %183 : vector<16x1xf32> to vector<16x32xf32>
    %192 = arith.subf %175, %191 : vector<16x32xf32>
    %cst_160 = arith.constant 9.99999974E-6 : f32
    %193 = vector.broadcast %cst_160 : f32 to vector<16x1xf32>
    %194 = arith.addf %190, %193 : vector<16x1xf32>
    %195 = math.rsqrt %194 : vector<16x1xf32>
    %196 = vector.broadcast %195 : vector<16x1xf32> to vector<16x32xf32>
    %197 = arith.mulf %192, %196 : vector<16x32xf32>
    %198 = vector.broadcast %177 : vector<1x32xf32> to vector<16x32xf32>
    %199 = arith.mulf %197, %198 : vector<16x32xf32>
    %200 = vector.broadcast %179 : vector<1x32xf32> to vector<16x32xf32>
    %201 = arith.addf %199, %200 : vector<16x32xf32>
    %202 = arith.truncf %201 : vector<16x32xf32> to vector<16x32xbf16>
    %c0_161 = arith.constant 0 : index
    %c0_162 = arith.constant 0 : index
    %c0_163 = arith.constant 0 : index
    %203 = vector.load %arg13[%c0_161, %c0_162, %c0_163] : memref<2x32x128xbf16, #tpu.memory_space<vmem>>, vector<1x32x128xbf16>
    %204 = vector.shape_cast %203 : vector<1x32x128xbf16> to vector<32x128xbf16>
    %cst_164 = arith.constant dense<0.000000e+00> : vector<16x128xf32>
    %205 = tpu.matmul %202, %204, %cst_164 {dimension_numbers = #tpu.dot_dimension_numbers<[1], [0], [0], [1], [0, 0, 1, 1], [], []>} : vector<16x32xbf16>, vector<32x128xbf16>, vector<16x128xf32> -> vector<16x128xf32>
    %c0_165 = arith.constant 0 : index
    %c0_166 = arith.constant 0 : index
    %c0_167 = arith.constant 0 : index
    %206 = vector.load %arg14[%c0_165, %c0_166, %c0_167] : memref<2x1x128xf32, #tpu.memory_space<vmem>>, vector<1x1x128xf32>
    %207 = vector.shape_cast %206 : vector<1x1x128xf32> to vector<1x128xf32>
    %208 = vector.broadcast %207 : vector<1x128xf32> to vector<16x128xf32>
    %209 = arith.addf %205, %208 : vector<16x128xf32>
    %cst_168 = arith.constant 5.000000e-01 : f32
    %210 = vector.broadcast %cst_168 : f32 to vector<16x128xf32>
    %211 = arith.mulf %210, %209 : vector<16x128xf32>
    %cst_169 = arith.constant 4.471500e-02 : f32
    %212 = vector.broadcast %cst_169 : f32 to vector<16x128xf32>
    %213 = arith.mulf %212, %209 : vector<16x128xf32>
    %214 = arith.mulf %213, %209 : vector<16x128xf32>
    %215 = arith.mulf %214, %209 : vector<16x128xf32>
    %216 = arith.addf %209, %215 : vector<16x128xf32>
    %cst_170 = arith.constant 0.797884583 : f32
    %217 = vector.broadcast %cst_170 : f32 to vector<16x128xf32>
    %218 = arith.mulf %217, %216 : vector<16x128xf32>
    %219 = math.tanh %218 : vector<16x128xf32>
    %cst_171 = arith.constant 1.000000e+00 : f32
    %220 = vector.broadcast %cst_171 : f32 to vector<16x128xf32>
    %221 = arith.addf %220, %219 : vector<16x128xf32>
    %222 = arith.mulf %211, %221 : vector<16x128xf32>
    %223 = arith.truncf %222 : vector<16x128xf32> to vector<16x128xbf16>
    %c0_172 = arith.constant 0 : index
    %c0_173 = arith.constant 0 : index
    %c0_174 = arith.constant 0 : index
    %224 = vector.load %arg15[%c0_172, %c0_173, %c0_174] : memref<2x128x32xbf16, #tpu.memory_space<vmem>>, vector<1x128x32xbf16>
    %225 = vector.shape_cast %224 : vector<1x128x32xbf16> to vector<128x32xbf16>
    %cst_175 = arith.constant dense<0.000000e+00> : vector<16x32xf32>
    %226 = tpu.matmul %223, %225, %cst_175 {dimension_numbers = #tpu.dot_dimension_numbers<[1], [0], [0], [1], [0, 0, 1, 1], [], []>} : vector<16x128xbf16>, vector<128x32xbf16>, vector<16x32xf32> -> vector<16x32xf32>
    %c0_176 = arith.constant 0 : index
    %c0_177 = arith.constant 0 : index
    %c0_178 = arith.constant 0 : index
    %227 = vector.load %arg16[%c0_176, %c0_177, %c0_178] : memref<2x1x32xf32, #tpu.memory_space<vmem>>, vector<1x1x32xf32>
    %228 = vector.shape_cast %227 : vector<1x1x32xf32> to vector<1x32xf32>
    %229 = vector.broadcast %228 : vector<1x32xf32> to vector<16x32xf32>
    %230 = arith.addf %226, %229 : vector<16x32xf32>
    %231 = arith.addf %201, %230 : vector<16x32xf32>
    %c0_179 = arith.constant 0 : index
    %c0_180 = arith.constant 0 : index
    %c0_181 = arith.constant 0 : index
    %232 = vector.load %arg17[%c0_179, %c0_180, %c0_181] : memref<2x1x32xf32, #tpu.memory_space<vmem>>, vector<1x1x32xf32>
    %233 = vector.shape_cast %232 : vector<1x1x32xf32> to vector<1x32xf32>
    %c0_182 = arith.constant 0 : index
    %c0_183 = arith.constant 0 : index
    %c0_184 = arith.constant 0 : index
    %234 = vector.load %arg18[%c0_182, %c0_183, %c0_184] : memref<2x1x32xf32, #tpu.memory_space<vmem>>, vector<1x1x32xf32>
    %235 = vector.shape_cast %234 : vector<1x1x32xf32> to vector<1x32xf32>
    %cst_185 = arith.constant dense<0.000000e+00> : vector<16xf32>
    %236 = vector.multi_reduction <add>, %231, %cst_185 [1] : vector<16x32xf32> to vector<16xf32>
    %237 = vector.shape_cast %236 : vector<16xf32> to vector<16x1xf32>
    %cst_186 = arith.constant 3.200000e+01 : f32
    %238 = vector.broadcast %cst_186 : f32 to vector<16x1xf32>
    %239 = arith.divf %237, %238 : vector<16x1xf32>
    %240 = vector.broadcast %239 : vector<16x1xf32> to vector<16x32xf32>
    %241 = arith.subf %231, %240 : vector<16x32xf32>
    %242 = arith.mulf %241, %241 : vector<16x32xf32>
    %cst_187 = arith.constant dense<0.000000e+00> : vector<16xf32>
    %243 = vector.multi_reduction <add>, %242, %cst_187 [1] : vector<16x32xf32> to vector<16xf32>
    %244 = vector.shape_cast %243 : vector<16xf32> to vector<16x1xf32>
    %cst_188 = arith.constant 3.200000e+01 : f32
    %245 = vector.broadcast %cst_188 : f32 to vector<16x1xf32>
    %246 = arith.divf %244, %245 : vector<16x1xf32>
    %247 = vector.broadcast %239 : vector<16x1xf32> to vector<16x32xf32>
    %248 = arith.subf %231, %247 : vector<16x32xf32>
    %cst_189 = arith.constant 9.99999974E-6 : f32
    %249 = vector.broadcast %cst_189 : f32 to vector<16x1xf32>
    %250 = arith.addf %246, %249 : vector<16x1xf32>
    %251 = math.rsqrt %250 : vector<16x1xf32>
    %252 = vector.broadcast %251 : vector<16x1xf32> to vector<16x32xf32>
    %253 = arith.mulf %248, %252 : vector<16x32xf32>
    %254 = vector.broadcast %233 : vector<1x32xf32> to vector<16x32xf32>
    %255 = arith.mulf %253, %254 : vector<16x32xf32>
    %256 = vector.broadcast %235 : vector<1x32xf32> to vector<16x32xf32>
    %257 = arith.addf %255, %256 : vector<16x32xf32>
    %258 = arith.truncf %257 : vector<16x32xf32> to vector<16x32xbf16>
    %cst_190 = arith.constant 0.000000e+00 : f32
    %259 = vector.broadcast %cst_190 : f32 to vector<16x32xf32>
    %c1_191 = arith.constant 1 : index
    %c0_192 = arith.constant 0 : index
    %c0_193 = arith.constant 0 : index
    %c0_194 = arith.constant 0 : index
    %260 = vector.load %arg3[%c1_191, %c0_192, %c0_193, %c0_194] : memref<2x4x32x8xbf16, #tpu.memory_space<vmem>>, vector<1x1x32x8xbf16>
    %261 = vector.shape_cast %260 : vector<1x1x32x8xbf16> to vector<32x8xbf16>
    %cst_195 = arith.constant dense<0.000000e+00> : vector<16x8xf32>
    %262 = tpu.matmul %258, %261, %cst_195 {dimension_numbers = #tpu.dot_dimension_numbers<[1], [0], [0], [1], [0, 0, 1, 1], [], []>} : vector<16x32xbf16>, vector<32x8xbf16>, vector<16x8xf32> -> vector<16x8xf32>
    %c1_196 = arith.constant 1 : index
    %c0_197 = arith.constant 0 : index
    %c0_198 = arith.constant 0 : index
    %c0_199 = arith.constant 0 : index
    %263 = vector.load %arg4[%c1_196, %c0_197, %c0_198, %c0_199] : memref<2x4x1x8xf32, #tpu.memory_space<vmem>>, vector<1x1x1x8xf32>
    %264 = vector.shape_cast %263 : vector<1x1x1x8xf32> to vector<1x8xf32>
    %265 = vector.broadcast %264 : vector<1x8xf32> to vector<16x8xf32>
    %266 = arith.addf %262, %265 : vector<16x8xf32>
    %c1_200 = arith.constant 1 : index
    %c0_201 = arith.constant 0 : index
    %c0_202 = arith.constant 0 : index
    %c0_203 = arith.constant 0 : index
    %267 = vector.load %arg5[%c1_200, %c0_201, %c0_202, %c0_203] : memref<2x4x32x8xbf16, #tpu.memory_space<vmem>>, vector<1x1x32x8xbf16>
    %268 = vector.shape_cast %267 : vector<1x1x32x8xbf16> to vector<32x8xbf16>
    %cst_204 = arith.constant dense<0.000000e+00> : vector<16x8xf32>
    %269 = tpu.matmul %258, %268, %cst_204 {dimension_numbers = #tpu.dot_dimension_numbers<[1], [0], [0], [1], [0, 0, 1, 1], [], []>} : vector<16x32xbf16>, vector<32x8xbf16>, vector<16x8xf32> -> vector<16x8xf32>
    %c1_205 = arith.constant 1 : index
    %c0_206 = arith.constant 0 : index
    %c0_207 = arith.constant 0 : index
    %c0_208 = arith.constant 0 : index
    %270 = vector.load %arg6[%c1_205, %c0_206, %c0_207, %c0_208] : memref<2x4x1x8xf32, #tpu.memory_space<vmem>>, vector<1x1x1x8xf32>
    %271 = vector.shape_cast %270 : vector<1x1x1x8xf32> to vector<1x8xf32>
    %272 = vector.broadcast %271 : vector<1x8xf32> to vector<16x8xf32>
    %273 = arith.addf %269, %272 : vector<16x8xf32>
    %c1_209 = arith.constant 1 : index
    %c0_210 = arith.constant 0 : index
    %c0_211 = arith.constant 0 : index
    %c0_212 = arith.constant 0 : index
    %274 = vector.load %arg7[%c1_209, %c0_210, %c0_211, %c0_212] : memref<2x4x32x8xbf16, #tpu.memory_space<vmem>>, vector<1x1x32x8xbf16>
    %275 = vector.shape_cast %274 : vector<1x1x32x8xbf16> to vector<32x8xbf16>
    %cst_213 = arith.constant dense<0.000000e+00> : vector<16x8xf32>
    %276 = tpu.matmul %258, %275, %cst_213 {dimension_numbers = #tpu.dot_dimension_numbers<[1], [0], [0], [1], [0, 0, 1, 1], [], []>} : vector<16x32xbf16>, vector<32x8xbf16>, vector<16x8xf32> -> vector<16x8xf32>
    %c1_214 = arith.constant 1 : index
    %c0_215 = arith.constant 0 : index
    %c0_216 = arith.constant 0 : index
    %c0_217 = arith.constant 0 : index
    %277 = vector.load %arg8[%c1_214, %c0_215, %c0_216, %c0_217] : memref<2x4x1x8xf32, #tpu.memory_space<vmem>>, vector<1x1x1x8xf32>
    %278 = vector.shape_cast %277 : vector<1x1x1x8xf32> to vector<1x8xf32>
    %279 = vector.broadcast %278 : vector<1x8xf32> to vector<16x8xf32>
    %280 = arith.addf %276, %279 : vector<16x8xf32>
    %281 = arith.truncf %266 : vector<16x8xf32> to vector<16x8xbf16>
    %282 = arith.truncf %273 : vector<16x8xf32> to vector<16x8xbf16>
    %cst_218 = arith.constant dense<0.000000e+00> : vector<16x16xf32>
    %283 = tpu.matmul %281, %282, %cst_218 {dimension_numbers = #tpu.dot_dimension_numbers<[1], [1], [0], [0], [0, 0, 1, 0], [], []>} : vector<16x8xbf16>, vector<16x8xbf16>, vector<16x16xf32> -> vector<16x16xf32>
    %284 = arith.addf %283, %12 : vector<16x16xf32>
    %285 = math.exp %284 : vector<16x16xf32>
    %cst_219 = arith.constant dense<0.000000e+00> : vector<16xf32>
    %286 = vector.multi_reduction <add>, %285, %cst_219 [1] : vector<16x16xf32> to vector<16xf32>
    %287 = vector.shape_cast %286 : vector<16xf32> to vector<16x1xf32>
    %288 = tpu.reciprocal %287 {approx = true} : vector<16x1xf32> -> vector<16x1xf32>
    %289 = vector.broadcast %288 : vector<16x1xf32> to vector<16x16xf32>
    %290 = arith.mulf %285, %289 : vector<16x16xf32>
    %291 = arith.truncf %290 : vector<16x16xf32> to vector<16x16xbf16>
    %292 = arith.truncf %280 : vector<16x8xf32> to vector<16x8xbf16>
    %cst_220 = arith.constant dense<0.000000e+00> : vector<16x8xf32>
    %293 = tpu.matmul %291, %292, %cst_220 {dimension_numbers = #tpu.dot_dimension_numbers<[1], [0], [0], [1], [0, 0, 1, 1], [], []>} : vector<16x16xbf16>, vector<16x8xbf16>, vector<16x8xf32> -> vector<16x8xf32>
    %294 = arith.truncf %293 : vector<16x8xf32> to vector<16x8xbf16>
    %c1_221 = arith.constant 1 : index
    %c0_222 = arith.constant 0 : index
    %c0_223 = arith.constant 0 : index
    %c0_224 = arith.constant 0 : index
    %295 = vector.load %arg9[%c1_221, %c0_222, %c0_223, %c0_224] : memref<2x4x8x32xbf16, #tpu.memory_space<vmem>>, vector<1x1x8x32xbf16>
    %296 = vector.shape_cast %295 : vector<1x1x8x32xbf16> to vector<8x32xbf16>
    %cst_225 = arith.constant dense<0.000000e+00> : vector<16x32xf32>
    %297 = tpu.matmul %294, %296, %cst_225 {dimension_numbers = #tpu.dot_dimension_numbers<[1], [0], [0], [1], [0, 0, 1, 1], [], []>} : vector<16x8xbf16>, vector<8x32xbf16>, vector<16x32xf32> -> vector<16x32xf32>
    %298 = arith.addf %259, %297 : vector<16x32xf32>
    %c1_226 = arith.constant 1 : index
    %c1_227 = arith.constant 1 : index
    %c0_228 = arith.constant 0 : index
    %c0_229 = arith.constant 0 : index
    %299 = vector.load %arg3[%c1_226, %c1_227, %c0_228, %c0_229] : memref<2x4x32x8xbf16, #tpu.memory_space<vmem>>, vector<1x1x32x8xbf16>
    %300 = vector.shape_cast %299 : vector<1x1x32x8xbf16> to vector<32x8xbf16>
    %cst_230 = arith.constant dense<0.000000e+00> : vector<16x8xf32>
    %301 = tpu.matmul %258, %300, %cst_230 {dimension_numbers = #tpu.dot_dimension_numbers<[1], [0], [0], [1], [0, 0, 1, 1], [], []>} : vector<16x32xbf16>, vector<32x8xbf16>, vector<16x8xf32> -> vector<16x8xf32>
    %c1_231 = arith.constant 1 : index
    %c1_232 = arith.constant 1 : index
    %c0_233 = arith.constant 0 : index
    %c0_234 = arith.constant 0 : index
    %302 = vector.load %arg4[%c1_231, %c1_232, %c0_233, %c0_234] : memref<2x4x1x8xf32, #tpu.memory_space<vmem>>, vector<1x1x1x8xf32>
    %303 = vector.shape_cast %302 : vector<1x1x1x8xf32> to vector<1x8xf32>
    %304 = vector.broadcast %303 : vector<1x8xf32> to vector<16x8xf32>
    %305 = arith.addf %301, %304 : vector<16x8xf32>
    %c1_235 = arith.constant 1 : index
    %c1_236 = arith.constant 1 : index
    %c0_237 = arith.constant 0 : index
    %c0_238 = arith.constant 0 : index
    %306 = vector.load %arg5[%c1_235, %c1_236, %c0_237, %c0_238] : memref<2x4x32x8xbf16, #tpu.memory_space<vmem>>, vector<1x1x32x8xbf16>
    %307 = vector.shape_cast %306 : vector<1x1x32x8xbf16> to vector<32x8xbf16>
    %cst_239 = arith.constant dense<0.000000e+00> : vector<16x8xf32>
    %308 = tpu.matmul %258, %307, %cst_239 {dimension_numbers = #tpu.dot_dimension_numbers<[1], [0], [0], [1], [0, 0, 1, 1], [], []>} : vector<16x32xbf16>, vector<32x8xbf16>, vector<16x8xf32> -> vector<16x8xf32>
    %c1_240 = arith.constant 1 : index
    %c1_241 = arith.constant 1 : index
    %c0_242 = arith.constant 0 : index
    %c0_243 = arith.constant 0 : index
    %309 = vector.load %arg6[%c1_240, %c1_241, %c0_242, %c0_243] : memref<2x4x1x8xf32, #tpu.memory_space<vmem>>, vector<1x1x1x8xf32>
    %310 = vector.shape_cast %309 : vector<1x1x1x8xf32> to vector<1x8xf32>
    %311 = vector.broadcast %310 : vector<1x8xf32> to vector<16x8xf32>
    %312 = arith.addf %308, %311 : vector<16x8xf32>
    %c1_244 = arith.constant 1 : index
    %c1_245 = arith.constant 1 : index
    %c0_246 = arith.constant 0 : index
    %c0_247 = arith.constant 0 : index
    %313 = vector.load %arg7[%c1_244, %c1_245, %c0_246, %c0_247] : memref<2x4x32x8xbf16, #tpu.memory_space<vmem>>, vector<1x1x32x8xbf16>
    %314 = vector.shape_cast %313 : vector<1x1x32x8xbf16> to vector<32x8xbf16>
    %cst_248 = arith.constant dense<0.000000e+00> : vector<16x8xf32>
    %315 = tpu.matmul %258, %314, %cst_248 {dimension_numbers = #tpu.dot_dimension_numbers<[1], [0], [0], [1], [0, 0, 1, 1], [], []>} : vector<16x32xbf16>, vector<32x8xbf16>, vector<16x8xf32> -> vector<16x8xf32>
    %c1_249 = arith.constant 1 : index
    %c1_250 = arith.constant 1 : index
    %c0_251 = arith.constant 0 : index
    %c0_252 = arith.constant 0 : index
    %316 = vector.load %arg8[%c1_249, %c1_250, %c0_251, %c0_252] : memref<2x4x1x8xf32, #tpu.memory_space<vmem>>, vector<1x1x1x8xf32>
    %317 = vector.shape_cast %316 : vector<1x1x1x8xf32> to vector<1x8xf32>
    %318 = vector.broadcast %317 : vector<1x8xf32> to vector<16x8xf32>
    %319 = arith.addf %315, %318 : vector<16x8xf32>
    %320 = arith.truncf %305 : vector<16x8xf32> to vector<16x8xbf16>
    %321 = arith.truncf %312 : vector<16x8xf32> to vector<16x8xbf16>
    %cst_253 = arith.constant dense<0.000000e+00> : vector<16x16xf32>
    %322 = tpu.matmul %320, %321, %cst_253 {dimension_numbers = #tpu.dot_dimension_numbers<[1], [1], [0], [0], [0, 0, 1, 0], [], []>} : vector<16x8xbf16>, vector<16x8xbf16>, vector<16x16xf32> -> vector<16x16xf32>
    %323 = arith.addf %322, %12 : vector<16x16xf32>
    %324 = math.exp %323 : vector<16x16xf32>
    %cst_254 = arith.constant dense<0.000000e+00> : vector<16xf32>
    %325 = vector.multi_reduction <add>, %324, %cst_254 [1] : vector<16x16xf32> to vector<16xf32>
    %326 = vector.shape_cast %325 : vector<16xf32> to vector<16x1xf32>
    %327 = tpu.reciprocal %326 {approx = true} : vector<16x1xf32> -> vector<16x1xf32>
    %328 = vector.broadcast %327 : vector<16x1xf32> to vector<16x16xf32>
    %329 = arith.mulf %324, %328 : vector<16x16xf32>
    %330 = arith.truncf %329 : vector<16x16xf32> to vector<16x16xbf16>
    %331 = arith.truncf %319 : vector<16x8xf32> to vector<16x8xbf16>
    %cst_255 = arith.constant dense<0.000000e+00> : vector<16x8xf32>
    %332 = tpu.matmul %330, %331, %cst_255 {dimension_numbers = #tpu.dot_dimension_numbers<[1], [0], [0], [1], [0, 0, 1, 1], [], []>} : vector<16x16xbf16>, vector<16x8xbf16>, vector<16x8xf32> -> vector<16x8xf32>
    %333 = arith.truncf %332 : vector<16x8xf32> to vector<16x8xbf16>
    %c1_256 = arith.constant 1 : index
    %c1_257 = arith.constant 1 : index
    %c0_258 = arith.constant 0 : index
    %c0_259 = arith.constant 0 : index
    %334 = vector.load %arg9[%c1_256, %c1_257, %c0_258, %c0_259] : memref<2x4x8x32xbf16, #tpu.memory_space<vmem>>, vector<1x1x8x32xbf16>
    %335 = vector.shape_cast %334 : vector<1x1x8x32xbf16> to vector<8x32xbf16>
    %cst_260 = arith.constant dense<0.000000e+00> : vector<16x32xf32>
    %336 = tpu.matmul %333, %335, %cst_260 {dimension_numbers = #tpu.dot_dimension_numbers<[1], [0], [0], [1], [0, 0, 1, 1], [], []>} : vector<16x8xbf16>, vector<8x32xbf16>, vector<16x32xf32> -> vector<16x32xf32>
    %337 = arith.addf %298, %336 : vector<16x32xf32>
    %c1_261 = arith.constant 1 : index
    %c2_262 = arith.constant 2 : index
    %c0_263 = arith.constant 0 : index
    %c0_264 = arith.constant 0 : index
    %338 = vector.load %arg3[%c1_261, %c2_262, %c0_263, %c0_264] : memref<2x4x32x8xbf16, #tpu.memory_space<vmem>>, vector<1x1x32x8xbf16>
    %339 = vector.shape_cast %338 : vector<1x1x32x8xbf16> to vector<32x8xbf16>
    %cst_265 = arith.constant dense<0.000000e+00> : vector<16x8xf32>
    %340 = tpu.matmul %258, %339, %cst_265 {dimension_numbers = #tpu.dot_dimension_numbers<[1], [0], [0], [1], [0, 0, 1, 1], [], []>} : vector<16x32xbf16>, vector<32x8xbf16>, vector<16x8xf32> -> vector<16x8xf32>
    %c1_266 = arith.constant 1 : index
    %c2_267 = arith.constant 2 : index
    %c0_268 = arith.constant 0 : index
    %c0_269 = arith.constant 0 : index
    %341 = vector.load %arg4[%c1_266, %c2_267, %c0_268, %c0_269] : memref<2x4x1x8xf32, #tpu.memory_space<vmem>>, vector<1x1x1x8xf32>
    %342 = vector.shape_cast %341 : vector<1x1x1x8xf32> to vector<1x8xf32>
    %343 = vector.broadcast %342 : vector<1x8xf32> to vector<16x8xf32>
    %344 = arith.addf %340, %343 : vector<16x8xf32>
    %c1_270 = arith.constant 1 : index
    %c2_271 = arith.constant 2 : index
    %c0_272 = arith.constant 0 : index
    %c0_273 = arith.constant 0 : index
    %345 = vector.load %arg5[%c1_270, %c2_271, %c0_272, %c0_273] : memref<2x4x32x8xbf16, #tpu.memory_space<vmem>>, vector<1x1x32x8xbf16>
    %346 = vector.shape_cast %345 : vector<1x1x32x8xbf16> to vector<32x8xbf16>
    %cst_274 = arith.constant dense<0.000000e+00> : vector<16x8xf32>
    %347 = tpu.matmul %258, %346, %cst_274 {dimension_numbers = #tpu.dot_dimension_numbers<[1], [0], [0], [1], [0, 0, 1, 1], [], []>} : vector<16x32xbf16>, vector<32x8xbf16>, vector<16x8xf32> -> vector<16x8xf32>
    %c1_275 = arith.constant 1 : index
    %c2_276 = arith.constant 2 : index
    %c0_277 = arith.constant 0 : index
    %c0_278 = arith.constant 0 : index
    %348 = vector.load %arg6[%c1_275, %c2_276, %c0_277, %c0_278] : memref<2x4x1x8xf32, #tpu.memory_space<vmem>>, vector<1x1x1x8xf32>
    %349 = vector.shape_cast %348 : vector<1x1x1x8xf32> to vector<1x8xf32>
    %350 = vector.broadcast %349 : vector<1x8xf32> to vector<16x8xf32>
    %351 = arith.addf %347, %350 : vector<16x8xf32>
    %c1_279 = arith.constant 1 : index
    %c2_280 = arith.constant 2 : index
    %c0_281 = arith.constant 0 : index
    %c0_282 = arith.constant 0 : index
    %352 = vector.load %arg7[%c1_279, %c2_280, %c0_281, %c0_282] : memref<2x4x32x8xbf16, #tpu.memory_space<vmem>>, vector<1x1x32x8xbf16>
    %353 = vector.shape_cast %352 : vector<1x1x32x8xbf16> to vector<32x8xbf16>
    %cst_283 = arith.constant dense<0.000000e+00> : vector<16x8xf32>
    %354 = tpu.matmul %258, %353, %cst_283 {dimension_numbers = #tpu.dot_dimension_numbers<[1], [0], [0], [1], [0, 0, 1, 1], [], []>} : vector<16x32xbf16>, vector<32x8xbf16>, vector<16x8xf32> -> vector<16x8xf32>
    %c1_284 = arith.constant 1 : index
    %c2_285 = arith.constant 2 : index
    %c0_286 = arith.constant 0 : index
    %c0_287 = arith.constant 0 : index
    %355 = vector.load %arg8[%c1_284, %c2_285, %c0_286, %c0_287] : memref<2x4x1x8xf32, #tpu.memory_space<vmem>>, vector<1x1x1x8xf32>
    %356 = vector.shape_cast %355 : vector<1x1x1x8xf32> to vector<1x8xf32>
    %357 = vector.broadcast %356 : vector<1x8xf32> to vector<16x8xf32>
    %358 = arith.addf %354, %357 : vector<16x8xf32>
    %359 = arith.truncf %344 : vector<16x8xf32> to vector<16x8xbf16>
    %360 = arith.truncf %351 : vector<16x8xf32> to vector<16x8xbf16>
    %cst_288 = arith.constant dense<0.000000e+00> : vector<16x16xf32>
    %361 = tpu.matmul %359, %360, %cst_288 {dimension_numbers = #tpu.dot_dimension_numbers<[1], [1], [0], [0], [0, 0, 1, 0], [], []>} : vector<16x8xbf16>, vector<16x8xbf16>, vector<16x16xf32> -> vector<16x16xf32>
    %362 = arith.addf %361, %12 : vector<16x16xf32>
    %363 = math.exp %362 : vector<16x16xf32>
    %cst_289 = arith.constant dense<0.000000e+00> : vector<16xf32>
    %364 = vector.multi_reduction <add>, %363, %cst_289 [1] : vector<16x16xf32> to vector<16xf32>
    %365 = vector.shape_cast %364 : vector<16xf32> to vector<16x1xf32>
    %366 = tpu.reciprocal %365 {approx = true} : vector<16x1xf32> -> vector<16x1xf32>
    %367 = vector.broadcast %366 : vector<16x1xf32> to vector<16x16xf32>
    %368 = arith.mulf %363, %367 : vector<16x16xf32>
    %369 = arith.truncf %368 : vector<16x16xf32> to vector<16x16xbf16>
    %370 = arith.truncf %358 : vector<16x8xf32> to vector<16x8xbf16>
    %cst_290 = arith.constant dense<0.000000e+00> : vector<16x8xf32>
    %371 = tpu.matmul %369, %370, %cst_290 {dimension_numbers = #tpu.dot_dimension_numbers<[1], [0], [0], [1], [0, 0, 1, 1], [], []>} : vector<16x16xbf16>, vector<16x8xbf16>, vector<16x8xf32> -> vector<16x8xf32>
    %372 = arith.truncf %371 : vector<16x8xf32> to vector<16x8xbf16>
    %c1_291 = arith.constant 1 : index
    %c2_292 = arith.constant 2 : index
    %c0_293 = arith.constant 0 : index
    %c0_294 = arith.constant 0 : index
    %373 = vector.load %arg9[%c1_291, %c2_292, %c0_293, %c0_294] : memref<2x4x8x32xbf16, #tpu.memory_space<vmem>>, vector<1x1x8x32xbf16>
    %374 = vector.shape_cast %373 : vector<1x1x8x32xbf16> to vector<8x32xbf16>
    %cst_295 = arith.constant dense<0.000000e+00> : vector<16x32xf32>
    %375 = tpu.matmul %372, %374, %cst_295 {dimension_numbers = #tpu.dot_dimension_numbers<[1], [0], [0], [1], [0, 0, 1, 1], [], []>} : vector<16x8xbf16>, vector<8x32xbf16>, vector<16x32xf32> -> vector<16x32xf32>
    %376 = arith.addf %337, %375 : vector<16x32xf32>
    %c1_296 = arith.constant 1 : index
    %c3_297 = arith.constant 3 : index
    %c0_298 = arith.constant 0 : index
    %c0_299 = arith.constant 0 : index
    %377 = vector.load %arg3[%c1_296, %c3_297, %c0_298, %c0_299] : memref<2x4x32x8xbf16, #tpu.memory_space<vmem>>, vector<1x1x32x8xbf16>
    %378 = vector.shape_cast %377 : vector<1x1x32x8xbf16> to vector<32x8xbf16>
    %cst_300 = arith.constant dense<0.000000e+00> : vector<16x8xf32>
    %379 = tpu.matmul %258, %378, %cst_300 {dimension_numbers = #tpu.dot_dimension_numbers<[1], [0], [0], [1], [0, 0, 1, 1], [], []>} : vector<16x32xbf16>, vector<32x8xbf16>, vector<16x8xf32> -> vector<16x8xf32>
    %c1_301 = arith.constant 1 : index
    %c3_302 = arith.constant 3 : index
    %c0_303 = arith.constant 0 : index
    %c0_304 = arith.constant 0 : index
    %380 = vector.load %arg4[%c1_301, %c3_302, %c0_303, %c0_304] : memref<2x4x1x8xf32, #tpu.memory_space<vmem>>, vector<1x1x1x8xf32>
    %381 = vector.shape_cast %380 : vector<1x1x1x8xf32> to vector<1x8xf32>
    %382 = vector.broadcast %381 : vector<1x8xf32> to vector<16x8xf32>
    %383 = arith.addf %379, %382 : vector<16x8xf32>
    %c1_305 = arith.constant 1 : index
    %c3_306 = arith.constant 3 : index
    %c0_307 = arith.constant 0 : index
    %c0_308 = arith.constant 0 : index
    %384 = vector.load %arg5[%c1_305, %c3_306, %c0_307, %c0_308] : memref<2x4x32x8xbf16, #tpu.memory_space<vmem>>, vector<1x1x32x8xbf16>
    %385 = vector.shape_cast %384 : vector<1x1x32x8xbf16> to vector<32x8xbf16>
    %cst_309 = arith.constant dense<0.000000e+00> : vector<16x8xf32>
    %386 = tpu.matmul %258, %385, %cst_309 {dimension_numbers = #tpu.dot_dimension_numbers<[1], [0], [0], [1], [0, 0, 1, 1], [], []>} : vector<16x32xbf16>, vector<32x8xbf16>, vector<16x8xf32> -> vector<16x8xf32>
    %c1_310 = arith.constant 1 : index
    %c3_311 = arith.constant 3 : index
    %c0_312 = arith.constant 0 : index
    %c0_313 = arith.constant 0 : index
    %387 = vector.load %arg6[%c1_310, %c3_311, %c0_312, %c0_313] : memref<2x4x1x8xf32, #tpu.memory_space<vmem>>, vector<1x1x1x8xf32>
    %388 = vector.shape_cast %387 : vector<1x1x1x8xf32> to vector<1x8xf32>
    %389 = vector.broadcast %388 : vector<1x8xf32> to vector<16x8xf32>
    %390 = arith.addf %386, %389 : vector<16x8xf32>
    %c1_314 = arith.constant 1 : index
    %c3_315 = arith.constant 3 : index
    %c0_316 = arith.constant 0 : index
    %c0_317 = arith.constant 0 : index
    %391 = vector.load %arg7[%c1_314, %c3_315, %c0_316, %c0_317] : memref<2x4x32x8xbf16, #tpu.memory_space<vmem>>, vector<1x1x32x8xbf16>
    %392 = vector.shape_cast %391 : vector<1x1x32x8xbf16> to vector<32x8xbf16>
    %cst_318 = arith.constant dense<0.000000e+00> : vector<16x8xf32>
    %393 = tpu.matmul %258, %392, %cst_318 {dimension_numbers = #tpu.dot_dimension_numbers<[1], [0], [0], [1], [0, 0, 1, 1], [], []>} : vector<16x32xbf16>, vector<32x8xbf16>, vector<16x8xf32> -> vector<16x8xf32>
    %c1_319 = arith.constant 1 : index
    %c3_320 = arith.constant 3 : index
    %c0_321 = arith.constant 0 : index
    %c0_322 = arith.constant 0 : index
    %394 = vector.load %arg8[%c1_319, %c3_320, %c0_321, %c0_322] : memref<2x4x1x8xf32, #tpu.memory_space<vmem>>, vector<1x1x1x8xf32>
    %395 = vector.shape_cast %394 : vector<1x1x1x8xf32> to vector<1x8xf32>
    %396 = vector.broadcast %395 : vector<1x8xf32> to vector<16x8xf32>
    %397 = arith.addf %393, %396 : vector<16x8xf32>
    %398 = arith.truncf %383 : vector<16x8xf32> to vector<16x8xbf16>
    %399 = arith.truncf %390 : vector<16x8xf32> to vector<16x8xbf16>
    %cst_323 = arith.constant dense<0.000000e+00> : vector<16x16xf32>
    %400 = tpu.matmul %398, %399, %cst_323 {dimension_numbers = #tpu.dot_dimension_numbers<[1], [1], [0], [0], [0, 0, 1, 0], [], []>} : vector<16x8xbf16>, vector<16x8xbf16>, vector<16x16xf32> -> vector<16x16xf32>
    %401 = arith.addf %400, %12 : vector<16x16xf32>
    %402 = math.exp %401 : vector<16x16xf32>
    %cst_324 = arith.constant dense<0.000000e+00> : vector<16xf32>
    %403 = vector.multi_reduction <add>, %402, %cst_324 [1] : vector<16x16xf32> to vector<16xf32>
    %404 = vector.shape_cast %403 : vector<16xf32> to vector<16x1xf32>
    %405 = tpu.reciprocal %404 {approx = true} : vector<16x1xf32> -> vector<16x1xf32>
    %406 = vector.broadcast %405 : vector<16x1xf32> to vector<16x16xf32>
    %407 = arith.mulf %402, %406 : vector<16x16xf32>
    %408 = arith.truncf %407 : vector<16x16xf32> to vector<16x16xbf16>
    %409 = arith.truncf %397 : vector<16x8xf32> to vector<16x8xbf16>
    %cst_325 = arith.constant dense<0.000000e+00> : vector<16x8xf32>
    %410 = tpu.matmul %408, %409, %cst_325 {dimension_numbers = #tpu.dot_dimension_numbers<[1], [0], [0], [1], [0, 0, 1, 1], [], []>} : vector<16x16xbf16>, vector<16x8xbf16>, vector<16x8xf32> -> vector<16x8xf32>
    %411 = arith.truncf %410 : vector<16x8xf32> to vector<16x8xbf16>
    %c1_326 = arith.constant 1 : index
    %c3_327 = arith.constant 3 : index
    %c0_328 = arith.constant 0 : index
    %c0_329 = arith.constant 0 : index
    %412 = vector.load %arg9[%c1_326, %c3_327, %c0_328, %c0_329] : memref<2x4x8x32xbf16, #tpu.memory_space<vmem>>, vector<1x1x8x32xbf16>
    %413 = vector.shape_cast %412 : vector<1x1x8x32xbf16> to vector<8x32xbf16>
    %cst_330 = arith.constant dense<0.000000e+00> : vector<16x32xf32>
    %414 = tpu.matmul %411, %413, %cst_330 {dimension_numbers = #tpu.dot_dimension_numbers<[1], [0], [0], [1], [0, 0, 1, 1], [], []>} : vector<16x8xbf16>, vector<8x32xbf16>, vector<16x32xf32> -> vector<16x32xf32>
    %415 = arith.addf %376, %414 : vector<16x32xf32>
    %c1_331 = arith.constant 1 : index
    %c0_332 = arith.constant 0 : index
    %c0_333 = arith.constant 0 : index
    %416 = vector.load %arg10[%c1_331, %c0_332, %c0_333] : memref<2x1x32xf32, #tpu.memory_space<vmem>>, vector<1x1x32xf32>
    %417 = vector.shape_cast %416 : vector<1x1x32xf32> to vector<1x32xf32>
    %418 = vector.broadcast %417 : vector<1x32xf32> to vector<16x32xf32>
    %419 = arith.addf %415, %418 : vector<16x32xf32>
    %420 = arith.addf %257, %419 : vector<16x32xf32>
    %c1_334 = arith.constant 1 : index
    %c0_335 = arith.constant 0 : index
    %c0_336 = arith.constant 0 : index
    %421 = vector.load %arg11[%c1_334, %c0_335, %c0_336] : memref<2x1x32xf32, #tpu.memory_space<vmem>>, vector<1x1x32xf32>
    %422 = vector.shape_cast %421 : vector<1x1x32xf32> to vector<1x32xf32>
    %c1_337 = arith.constant 1 : index
    %c0_338 = arith.constant 0 : index
    %c0_339 = arith.constant 0 : index
    %423 = vector.load %arg12[%c1_337, %c0_338, %c0_339] : memref<2x1x32xf32, #tpu.memory_space<vmem>>, vector<1x1x32xf32>
    %424 = vector.shape_cast %423 : vector<1x1x32xf32> to vector<1x32xf32>
    %cst_340 = arith.constant dense<0.000000e+00> : vector<16xf32>
    %425 = vector.multi_reduction <add>, %420, %cst_340 [1] : vector<16x32xf32> to vector<16xf32>
    %426 = vector.shape_cast %425 : vector<16xf32> to vector<16x1xf32>
    %cst_341 = arith.constant 3.200000e+01 : f32
    %427 = vector.broadcast %cst_341 : f32 to vector<16x1xf32>
    %428 = arith.divf %426, %427 : vector<16x1xf32>
    %429 = vector.broadcast %428 : vector<16x1xf32> to vector<16x32xf32>
    %430 = arith.subf %420, %429 : vector<16x32xf32>
    %431 = arith.mulf %430, %430 : vector<16x32xf32>
    %cst_342 = arith.constant dense<0.000000e+00> : vector<16xf32>
    %432 = vector.multi_reduction <add>, %431, %cst_342 [1] : vector<16x32xf32> to vector<16xf32>
    %433 = vector.shape_cast %432 : vector<16xf32> to vector<16x1xf32>
    %cst_343 = arith.constant 3.200000e+01 : f32
    %434 = vector.broadcast %cst_343 : f32 to vector<16x1xf32>
    %435 = arith.divf %433, %434 : vector<16x1xf32>
    %436 = vector.broadcast %428 : vector<16x1xf32> to vector<16x32xf32>
    %437 = arith.subf %420, %436 : vector<16x32xf32>
    %cst_344 = arith.constant 9.99999974E-6 : f32
    %438 = vector.broadcast %cst_344 : f32 to vector<16x1xf32>
    %439 = arith.addf %435, %438 : vector<16x1xf32>
    %440 = math.rsqrt %439 : vector<16x1xf32>
    %441 = vector.broadcast %440 : vector<16x1xf32> to vector<16x32xf32>
    %442 = arith.mulf %437, %441 : vector<16x32xf32>
    %443 = vector.broadcast %422 : vector<1x32xf32> to vector<16x32xf32>
    %444 = arith.mulf %442, %443 : vector<16x32xf32>
    %445 = vector.broadcast %424 : vector<1x32xf32> to vector<16x32xf32>
    %446 = arith.addf %444, %445 : vector<16x32xf32>
    %447 = arith.truncf %446 : vector<16x32xf32> to vector<16x32xbf16>
    %c1_345 = arith.constant 1 : index
    %c0_346 = arith.constant 0 : index
    %c0_347 = arith.constant 0 : index
    %448 = vector.load %arg13[%c1_345, %c0_346, %c0_347] : memref<2x32x128xbf16, #tpu.memory_space<vmem>>, vector<1x32x128xbf16>
    %449 = vector.shape_cast %448 : vector<1x32x128xbf16> to vector<32x128xbf16>
    %cst_348 = arith.constant dense<0.000000e+00> : vector<16x128xf32>
    %450 = tpu.matmul %447, %449, %cst_348 {dimension_numbers = #tpu.dot_dimension_numbers<[1], [0], [0], [1], [0, 0, 1, 1], [], []>} : vector<16x32xbf16>, vector<32x128xbf16>, vector<16x128xf32> -> vector<16x128xf32>
    %c1_349 = arith.constant 1 : index
    %c0_350 = arith.constant 0 : index
    %c0_351 = arith.constant 0 : index
    %451 = vector.load %arg14[%c1_349, %c0_350, %c0_351] : memref<2x1x128xf32, #tpu.memory_space<vmem>>, vector<1x1x128xf32>
    %452 = vector.shape_cast %451 : vector<1x1x128xf32> to vector<1x128xf32>
    %453 = vector.broadcast %452 : vector<1x128xf32> to vector<16x128xf32>
    %454 = arith.addf %450, %453 : vector<16x128xf32>
    %cst_352 = arith.constant 5.000000e-01 : f32
    %455 = vector.broadcast %cst_352 : f32 to vector<16x128xf32>
    %456 = arith.mulf %455, %454 : vector<16x128xf32>
    %cst_353 = arith.constant 4.471500e-02 : f32
    %457 = vector.broadcast %cst_353 : f32 to vector<16x128xf32>
    %458 = arith.mulf %457, %454 : vector<16x128xf32>
    %459 = arith.mulf %458, %454 : vector<16x128xf32>
    %460 = arith.mulf %459, %454 : vector<16x128xf32>
    %461 = arith.addf %454, %460 : vector<16x128xf32>
    %cst_354 = arith.constant 0.797884583 : f32
    %462 = vector.broadcast %cst_354 : f32 to vector<16x128xf32>
    %463 = arith.mulf %462, %461 : vector<16x128xf32>
    %464 = math.tanh %463 : vector<16x128xf32>
    %cst_355 = arith.constant 1.000000e+00 : f32
    %465 = vector.broadcast %cst_355 : f32 to vector<16x128xf32>
    %466 = arith.addf %465, %464 : vector<16x128xf32>
    %467 = arith.mulf %456, %466 : vector<16x128xf32>
    %468 = arith.truncf %467 : vector<16x128xf32> to vector<16x128xbf16>
    %c1_356 = arith.constant 1 : index
    %c0_357 = arith.constant 0 : index
    %c0_358 = arith.constant 0 : index
    %469 = vector.load %arg15[%c1_356, %c0_357, %c0_358] : memref<2x128x32xbf16, #tpu.memory_space<vmem>>, vector<1x128x32xbf16>
    %470 = vector.shape_cast %469 : vector<1x128x32xbf16> to vector<128x32xbf16>
    %cst_359 = arith.constant dense<0.000000e+00> : vector<16x32xf32>
    %471 = tpu.matmul %468, %470, %cst_359 {dimension_numbers = #tpu.dot_dimension_numbers<[1], [0], [0], [1], [0, 0, 1, 1], [], []>} : vector<16x128xbf16>, vector<128x32xbf16>, vector<16x32xf32> -> vector<16x32xf32>
    %c1_360 = arith.constant 1 : index
    %c0_361 = arith.constant 0 : index
    %c0_362 = arith.constant 0 : index
    %472 = vector.load %arg16[%c1_360, %c0_361, %c0_362] : memref<2x1x32xf32, #tpu.memory_space<vmem>>, vector<1x1x32xf32>
    %473 = vector.shape_cast %472 : vector<1x1x32xf32> to vector<1x32xf32>
    %474 = vector.broadcast %473 : vector<1x32xf32> to vector<16x32xf32>
    %475 = arith.addf %471, %474 : vector<16x32xf32>
    %476 = arith.addf %446, %475 : vector<16x32xf32>
    %c1_363 = arith.constant 1 : index
    %c0_364 = arith.constant 0 : index
    %c0_365 = arith.constant 0 : index
    %477 = vector.load %arg17[%c1_363, %c0_364, %c0_365] : memref<2x1x32xf32, #tpu.memory_space<vmem>>, vector<1x1x32xf32>
    %478 = vector.shape_cast %477 : vector<1x1x32xf32> to vector<1x32xf32>
    %c1_366 = arith.constant 1 : index
    %c0_367 = arith.constant 0 : index
    %c0_368 = arith.constant 0 : index
    %479 = vector.load %arg18[%c1_366, %c0_367, %c0_368] : memref<2x1x32xf32, #tpu.memory_space<vmem>>, vector<1x1x32xf32>
    %480 = vector.shape_cast %479 : vector<1x1x32xf32> to vector<1x32xf32>
    %cst_369 = arith.constant dense<0.000000e+00> : vector<16xf32>
    %481 = vector.multi_reduction <add>, %476, %cst_369 [1] : vector<16x32xf32> to vector<16xf32>
    %482 = vector.shape_cast %481 : vector<16xf32> to vector<16x1xf32>
    %cst_370 = arith.constant 3.200000e+01 : f32
    %483 = vector.broadcast %cst_370 : f32 to vector<16x1xf32>
    %484 = arith.divf %482, %483 : vector<16x1xf32>
    %485 = vector.broadcast %484 : vector<16x1xf32> to vector<16x32xf32>
    %486 = arith.subf %476, %485 : vector<16x32xf32>
    %487 = arith.mulf %486, %486 : vector<16x32xf32>
    %cst_371 = arith.constant dense<0.000000e+00> : vector<16xf32>
    %488 = vector.multi_reduction <add>, %487, %cst_371 [1] : vector<16x32xf32> to vector<16xf32>
    %489 = vector.shape_cast %488 : vector<16xf32> to vector<16x1xf32>
    %cst_372 = arith.constant 3.200000e+01 : f32
    %490 = vector.broadcast %cst_372 : f32 to vector<16x1xf32>
    %491 = arith.divf %489, %490 : vector<16x1xf32>
    %492 = vector.broadcast %484 : vector<16x1xf32> to vector<16x32xf32>
    %493 = arith.subf %476, %492 : vector<16x32xf32>
    %cst_373 = arith.constant 9.99999974E-6 : f32
    %494 = vector.broadcast %cst_373 : f32 to vector<16x1xf32>
    %495 = arith.addf %491, %494 : vector<16x1xf32>
    %496 = math.rsqrt %495 : vector<16x1xf32>
    %497 = vector.broadcast %496 : vector<16x1xf32> to vector<16x32xf32>
    %498 = arith.mulf %493, %497 : vector<16x32xf32>
    %499 = vector.broadcast %478 : vector<1x32xf32> to vector<16x32xf32>
    %500 = arith.mulf %498, %499 : vector<16x32xf32>
    %501 = vector.broadcast %480 : vector<1x32xf32> to vector<16x32xf32>
    %502 = arith.addf %500, %501 : vector<16x32xf32>
    %503 = arith.truncf %502 : vector<16x32xf32> to vector<16x32xbf16>
    %c0_374 = arith.constant 0 : index
    %c0_375 = arith.constant 0 : index
    %504 = vector.load %arg20[%c0_374, %c0_375] : memref<32x128xbf16, #tpu.memory_space<vmem>>, vector<32x128xbf16>
    %cst_376 = arith.constant dense<0.000000e+00> : vector<16x128xf32>
    %505 = tpu.matmul %503, %504, %cst_376 {dimension_numbers = #tpu.dot_dimension_numbers<[1], [0], [0], [1], [0, 0, 1, 1], [], []>} : vector<16x32xbf16>, vector<32x128xbf16>, vector<16x128xf32> -> vector<16x128xf32>
    %c0_377 = arith.constant 0 : index
    %c0_378 = arith.constant 0 : index
    %506 = vector.load %arg21[%c0_377, %c0_378] : memref<16x128xf32, #tpu.memory_space<vmem>>, vector<16x128xf32>
    tpu.vector_store %arg21[%c0_377, %c0_378], %505 {strides = array<i32>} : memref<16x128xf32, #tpu.memory_space<vmem>>, vector<16x128xf32>,
    return
  }
}

</mosaic_0001>

<llo_original>
// kernel: tpu_custom_call.1
$region0: #{tpu_custom_call.1}
  #allocation0 [shape = 'u32[]', space=smem, size = 0x4, offset = 0x4, fixed_abs, tag = 'smem constant byte address 0x4 - core index']
  #allocation1 [shape = 'u32[144,128]{1,0:T(1,128)}', space=vmem, size = 0x12000, scoped, tag = 'internal scratch']
  %s0 = inlined_call_operand.vmem [shape: s32[16,1], index: 0, kind: input, shape index: {}]
  %s1 = inlined_call_operand.vmem [shape: f32[16,16], index: 1, kind: input, shape index: {}]
  %s2 = inlined_call_operand.vmem [shape: f32[16,32], index: 2, kind: input, shape index: {}]
  %s3 = inlined_call_operand.vmem [shape: bf16[2,4,32,8], index: 3, kind: input, shape index: {}]
  %s4 = inlined_call_operand.vmem [shape: f32[2,4,1,8], index: 4, kind: input, shape index: {}]
  %s5 = inlined_call_operand.vmem [shape: bf16[2,4,32,8], index: 5, kind: input, shape index: {}]
  %s6 = inlined_call_operand.vmem [shape: f32[2,4,1,8], index: 6, kind: input, shape index: {}]
  %s7 = inlined_call_operand.vmem [shape: bf16[2,4,32,8], index: 7, kind: input, shape index: {}]
  %s8 = inlined_call_operand.vmem [shape: f32[2,4,1,8], index: 8, kind: input, shape index: {}]
  %s9 = inlined_call_operand.vmem [shape: bf16[2,4,8,32], index: 9, kind: input, shape index: {}]
  %s10 = inlined_call_operand.vmem [shape: f32[2,1,32], index: 10, kind: input, shape index: {}]
  %s11 = inlined_call_operand.vmem [shape: f32[2,1,32], index: 11, kind: input, shape index: {}]
  %s12 = inlined_call_operand.vmem [shape: f32[2,1,32], index: 12, kind: input, shape index: {}]
  %s13 = inlined_call_operand.vmem [shape: bf16[2,32,128], index: 13, kind: input, shape index: {}]
  %s14 = inlined_call_operand.vmem [shape: f32[2,1,128], index: 14, kind: input, shape index: {}]
  %s15 = inlined_call_operand.vmem [shape: bf16[2,128,32], index: 15, kind: input, shape index: {}]
  %s16 = inlined_call_operand.vmem [shape: f32[2,1,32], index: 16, kind: input, shape index: {}]
  %s17 = inlined_call_operand.vmem [shape: f32[2,1,32], index: 17, kind: input, shape index: {}]
  %s18 = inlined_call_operand.vmem [shape: f32[2,1,32], index: 18, kind: input, shape index: {}]
  %s19 = inlined_call_operand.vmem [shape: bf16[64,32], index: 19, kind: input, shape index: {}]
  %s20 = inlined_call_operand.vmem [shape: bf16[32,128], index: 20, kind: input, shape index: {}]
  %s21 = inlined_call_operand.hbm [shape: f32[16,128], index: 21, kind: output, shape index: {}]
  %s22 = sld [smem:[#allocation0]]
  $region94: #{tpu_custom_call.1} parent=0
    _
  %s24 = ssub.s32 1, %s22
  %s25 = scalar_select 0, %s24, %s22
  $region1: #{tpu_custom_call.1} parent=0
    #allocation2 [shape = 'u8[8192]{0}', space=vmem, size = 0x2000, scoped, tag = 'output window, operand 0, single buffered']
    #allocation3 [shape = 's32[1]{0}', space=sflag, size = 0x4, scoped, tag = 'scoped memory for tpu_custom_call.1']
    %26 = vsyncpa [#allocation3], 0
    // Predicated region
    $region2: #{tpu_custom_call.1} parent=1 // pred_check
      _
    $region3: #{tpu_custom_call.1} parent=1 // pred_check_branch
      %28 = sbr.rel (0) target = $region5
    $region4: #{tpu_custom_call.1} parent=1 // pred_region
      _
    $region5: #{tpu_custom_call.1} parent=1 // pred_fallthru
      _
    // Predicated region
    $region6: #{tpu_custom_call.1} parent=1 // pred_check
      _
    $region7: #{tpu_custom_call.1} parent=1 // pred_check_branch
      %30 = sbr.rel (0) target = $region9
    $region8: #{tpu_custom_call.1} parent=1 // pred_region
      _
    $region9: #{tpu_custom_call.1} parent=1 // pred_fallthru
      _
    // Predicated region
    $region10: #{tpu_custom_call.1} parent=1 // pred_check
      _
    $region11: #{tpu_custom_call.1} parent=1 // pred_check_branch
      %32 = sbr.rel (0) target = $region13
    $region12: #{tpu_custom_call.1} parent=1 // pred_region
      _
    $region13: #{tpu_custom_call.1} parent=1 // pred_fallthru
      _
    // Predicated region
    $region14: #{tpu_custom_call.1} parent=1 // pred_check
      _
    $region15: #{tpu_custom_call.1} parent=1 // pred_check_branch
      %34 = sbr.rel (0) target = $region17
    $region16: #{tpu_custom_call.1} parent=1 // pred_region
      _
    $region17: #{tpu_custom_call.1} parent=1 // pred_fallthru
      _
    // Predicated region
    $region18: #{tpu_custom_call.1} parent=1 // pred_check
      _
    $region19: #{tpu_custom_call.1} parent=1 // pred_check_branch
      %36 = sbr.rel (0) target = $region21
    $region20: #{tpu_custom_call.1} parent=1 // pred_region
      _
    $region21: #{tpu_custom_call.1} parent=1 // pred_fallthru
      _
    // Predicated region
    $region22: #{tpu_custom_call.1} parent=1 // pred_check
      _
    $region23: #{tpu_custom_call.1} parent=1 // pred_check_branch
      %38 = sbr.rel (0) target = $region25
    $region24: #{tpu_custom_call.1} parent=1 // pred_region
      _
    $region25: #{tpu_custom_call.1} parent=1 // pred_fallthru
      _
    // Predicated region
    $region26: #{tpu_custom_call.1} parent=1 // pred_check
      _
    $region27: #{tpu_custom_call.1} parent=1 // pred_check_branch
      %40 = sbr.rel (0) target = $region29
    $region28: #{tpu_custom_call.1} parent=1 // pred_region
      _
    $region29: #{tpu_custom_call.1} parent=1 // pred_fallthru
      _
    // Predicated region
    $region30: #{tpu_custom_call.1} parent=1 // pred_check
      _
    $region31: #{tpu_custom_call.1} parent=1 // pred_check_branch
      %42 = sbr.rel (0) target = $region33
    $region32: #{tpu_custom_call.1} parent=1 // pred_region
      _
    $region33: #{tpu_custom_call.1} parent=1 // pred_fallthru
      _
    // Predicated region
    $region34: #{tpu_custom_call.1} parent=1 // pred_check
      _
    $region35: #{tpu_custom_call.1} parent=1 // pred_check_branch
      %44 = sbr.rel (0) target = $region37
    $region36: #{tpu_custom_call.1} parent=1 // pred_region
      _
    $region37: #{tpu_custom_call.1} parent=1 // pred_fallthru
      _
    // Predicated region
    $region38: #{tpu_custom_call.1} parent=1 // pred_check
      _
    $region39: #{tpu_custom_call.1} parent=1 // pred_check_branch
      %46 = sbr.rel (0) target = $region41
    $region40: #{tpu_custom_call.1} parent=1 // pred_region
      _
    $region41: #{tpu_custom_call.1} parent=1 // pred_fallthru
      _
    // Predicated region
    $region42: #{tpu_custom_call.1} parent=1 // pred_check
      _
    $region43: #{tpu_custom_call.1} parent=1 // pred_check_branch
      %48 = sbr.rel (0) target = $region45
    $region44: #{tpu_custom_call.1} parent=1 // pred_region
      _
    $region45: #{tpu_custom_call.1} parent=1 // pred_fallthru
      _
    // Predicated region
    $region46: #{tpu_custom_call.1} parent=1 // pred_check
      _
    $region47: #{tpu_custom_call.1} parent=1 // pred_check_branch
      %50 = sbr.rel (0) target = $region49
    $region48: #{tpu_custom_call.1} parent=1 // pred_region
      _
    $region49: #{tpu_custom_call.1} parent=1 // pred_fallthru
      _
    // Predicated region
    $region50: #{tpu_custom_call.1} parent=1 // pred_check
      _
    $region51: #{tpu_custom_call.1} parent=1 // pred_check_branch
      %52 = sbr.rel (0) target = $region53
    $region52: #{tpu_custom_call.1} parent=1 // pred_region
      _
    $region53: #{tpu_custom_call.1} parent=1 // pred_fallthru
      _
    // Predicated region
    $region54: #{tpu_custom_call.1} parent=1 // pred_check
      _
    $region55: #{tpu_custom_call.1} parent=1 // pred_check_branch
      %54 = sbr.rel (0) target = $region57
    $region56: #{tpu_custom_call.1} parent=1 // pred_region
      _
    $region57: #{tpu_custom_call.1} parent=1 // pred_fallthru
      _
    // Predicated region
    $region58: #{tpu_custom_call.1} parent=1 // pred_check
      _
    $region59: #{tpu_custom_call.1} parent=1 // pred_check_branch
      %56 = sbr.rel (0) target = $region61
    $region60: #{tpu_custom_call.1} parent=1 // pred_region
      _
    $region61: #{tpu_custom_call.1} parent=1 // pred_fallthru
      _
    // Predicated region
    $region62: #{tpu_custom_call.1} parent=1 // pred_check
      _
    $region63: #{tpu_custom_call.1} parent=1 // pred_check_branch
      %58 = sbr.rel (0) target = $region65
    $region64: #{tpu_custom_call.1} parent=1 // pred_region
      _
    $region65: #{tpu_custom_call.1} parent=1 // pred_fallthru
      _
    // Predicated region
    $region66: #{tpu_custom_call.1} parent=1 // pred_check
      _
    $region67: #{tpu_custom_call.1} parent=1 // pred_check_branch
      %60 = sbr.rel (0) target = $region69
    $region68: #{tpu_custom_call.1} parent=1 // pred_region
      _
    $region69: #{tpu_custom_call.1} parent=1 // pred_fallthru
      _
    // Predicated region
    $region70: #{tpu_custom_call.1} parent=1 // pred_check
      _
    $region71: #{tpu_custom_call.1} parent=1 // pred_check_branch
      %62 = sbr.rel (0) target = $region73
    $region72: #{tpu_custom_call.1} parent=1 // pred_region
      _
    $region73: #{tpu_custom_call.1} parent=1 // pred_fallthru
      _
    // Predicated region
    $region74: #{tpu_custom_call.1} parent=1 // pred_check
      _
    $region75: #{tpu_custom_call.1} parent=1 // pred_check_branch
      %64 = sbr.rel (0) target = $region77
    $region76: #{tpu_custom_call.1} parent=1 // pred_region
      _
    $region77: #{tpu_custom_call.1} parent=1 // pred_fallthru
      _
    // Predicated region
    $region78: #{tpu_custom_call.1} parent=1 // pred_check
      _
    $region79: #{tpu_custom_call.1} parent=1 // pred_check_branch
      %66 = sbr.rel (0) target = $region81
    $region80: #{tpu_custom_call.1} parent=1 // pred_region
      _
    $region81: #{tpu_custom_call.1} parent=1 // pred_fallthru
      _
    // Predicated region
    $region82: #{tpu_custom_call.1} parent=1 // pred_check
      _
    $region83: #{tpu_custom_call.1} parent=1 // pred_check_branch
      %68 = sbr.rel (0) target = $region85
    $region84: #{tpu_custom_call.1} parent=1 // pred_region
      _
    $region85: #{tpu_custom_call.1} parent=1 // pred_fallthru
      _
    %v70 = vld [vmem:[%s0] sm:$0xff]
    %v71 = vld [vmem:[%s0 + $0x8] sm:$0xff]
    %v72 = vlaneseq
    %v73 = vand.u32 %v72, 127
    %74 = vset.pattern.permute.xlu0 0
    %75 = vperm.xlu0 %74, %v70
    %v76 = vpop.permute.xlu0 %75
    %77 = vset.pattern.permute.xlu0 0
    %78 = vperm.xlu0 %77, %v71
    %v79 = vpop.permute.xlu0 %78
    %vm80 = vcmp.eq.s32.totalorder %v73, %v76
    %vm81 = vcmp.eq.s32.totalorder %v73, %v79
    %v82 = vsel %vm80, 1.0, 0.0
    %v83 = vsel %vm81, 1.0, 0.0
    %v84 = vpack.c.bf16 %v83, %v82
    %v85 = vld [vmem:[%s19] sm:$0xf]
    %v86 = vld [vmem:[%s19 + $0x4] sm:$0xf]
    %v87 = vld [vmem:[%s19 + $0x8] sm:$0xf]
    %v88 = vld [vmem:[%s19 + $0xc] sm:$0xf]
    %v89 = vld [vmem:[%s19 + $0x10] sm:$0xf]
    %v90 = vld [vmem:[%s19 + $0x14] sm:$0xf]
    %v91 = vld [vmem:[%s19 + $0x18] sm:$0xf]
    %v92 = vld [vmem:[%s19 + $0x1c] sm:$0xf]
    %v93 = vld [vmem:[%s2] sm:$0xff]
    %v94 = vld [vmem:[%s2 + $0x8] sm:$0xff]
    %v103 = vunpack.c.l.b16 %v85
    %v104 = vunpack.c.l.b16 %v86
    %v105 = vunpack.c.l.b16 %v87
    %v106 = vunpack.c.l.b16 %v88
    %v107 = vunpack.c.l.b16 %v89
    %v108 = vunpack.c.l.b16 %v90
    %v109 = vunpack.c.l.b16 %v91
    %v110 = vunpack.c.l.b16 %v92
    %v111 = vpack.c.b16 %v104, %v103
    %v112 = vpack.c.b16 %v106, %v105
    %v113 = vpack.c.b16 %v108, %v107
    %v114 = vpack.c.b16 %v110, %v109
    %vm119 = vcmask 523264
    %v121 = vsel %vm119, %v84, 0
    %123 = vmatprep.subr.bf16.mxu0 0
    %124 = vmatpush1.bf16.msra.mxu0 %v111
    %125 = vmatprep.subr.bf16.mxu0 0
    %126 = vmatpush1.bf16.msra.mxu0 %v112
    %127 = vmatprep.subr.bf16.mxu0 0
    %128 = vmatpush1.bf16.msra.mxu0 %v113
    %129 = vmatprep.subr.bf16.mxu0 0
    %130 = vmatpush1.bf16.msra.mxu0 %v114
    %131 = vmatprep.subr.bf16.mxu0 0
    %132 = vmatpush1.bf16.msra.mxu0 0
    %133 = vmatprep.subr.bf16.mxu0 0
    %134 = vmatpush1.bf16.msra.mxu0 0
    %135 = vmatprep.subr.bf16.mxu0 0
    %136 = vmatpush1.bf16.msra.mxu0 0
    %137 = vmatprep.subr.bf16.mxu0 0
    %138 = vmatpush1.bf16.msra.mxu0 0
    %139 = vmatprep.subr.bf16.mxu0 0
    %140 = vmatpush1.bf16.msra.mxu0 0
    %141 = vmatprep.subr.bf16.mxu0 0
    %142 = vmatpush1.bf16.msra.mxu0 0
    %143 = vmatprep.subr.bf16.mxu0 0
    %144 = vmatpush1.bf16.msra.mxu0 0
    %145 = vmatprep.subr.bf16.mxu0 0
    %146 = vmatpush1.bf16.msra.mxu0 0
    %147 = vmatprep.subr.bf16.mxu0 0
    %148 = vmatpush1.bf16.msra.mxu0 0
    %149 = vmatprep.subr.bf16.mxu0 0
    %150 = vmatpush1.bf16.msra.mxu0 0
    %151 = vmatprep.subr.bf16.mxu0 0
    %152 = vmatpush1.bf16.msra.mxu0 0
    %153 = vmatprep.subr.bf16.mxu0 0
    %154 = vmatpush1.bf16.msra.mxu0 0
    %155 = vmatprep.mubr.bf16.mxu0 0
    %156 = vmatmul.mubr.bf16.gmra.mrb[0].mxu0 %v121
    %v157 = vpop.f32.mrb[0].mxu0
    %v158 = vadd.f32 %v93, %v157
    %v159 = vpop.f32.mrb[0].mxu0
    %v160 = vpop.f32.mrb[0].mxu0
    %v161 = vadd.f32 %v94, %v160
    %v162 = vpop.f32.mrb[0].mxu0
    %163 = vdwg.mxu0
    %v164 = vld [vmem:[%s1] sm:$0xff]
    %v165 = vld [vmem:[%s1 + $0x8] sm:$0xff]
    %v166 = vpack.c.bf16 %v161, %v158
    %v167 = vld [vmem:[%s3] sm:$0xf]
    %v168 = vld [vmem:[%s3 + $0x4] sm:$0xf]
    %v169 = vld [vmem:[%s3 + $0x8] sm:$0xf]
    %v170 = vld [vmem:[%s3 + $0xc] sm:$0xf]
    %v171 = vld [vmem:[%s4] sm:$0x1]
    %v173 = vlaneseq
    %v174 = vshrl.u32 %v173, 7
    %v175 = vsub.s32 0, %v174
    %v176 = vrot.slane %v171, %v175
    %v182 = vunpack.c.l.b16 %v167
    %v183 = vunpack.c.l.b16 %v168
    %v184 = vunpack.c.l.b16 %v169
    %v185 = vunpack.c.l.b16 %v170
    %v186 = vpack.c.b16 %v183, %v182
    %v187 = vpack.c.b16 %v185, %v184
    %vm190 = vcmask 261120
    %v192 = vsel %vm190, %v166, 0
    %194 = vmatprep.subr.bf16.mxu0 0
    %195 = vmatpush1.bf16.msra.mxu0 %v186
    %196 = vmatprep.subr.bf16.mxu0 0
    %197 = vmatpush1.bf16.msra.mxu0 %v187
    %198 = vmatprep.subr.bf16.mxu0 0
    %199 = vmatpush1.bf16.msra.mxu0 0
    %200 = vmatprep.subr.bf16.mxu0 0
    %201 = vmatpush1.bf16.msra.mxu0 0
    %202 = vmatprep.subr.bf16.mxu0 0
    %203 = vmatpush1.bf16.msra.mxu0 0
    %204 = vmatprep.subr.bf16.mxu0 0
    %205 = vmatpush1.bf16.msra.mxu0 0
    %206 = vmatprep.subr.bf16.mxu0 0
    %207 = vmatpush1.bf16.msra.mxu0 0
    %208 = vmatprep.subr.bf16.mxu0 0
    %209 = vmatpush1.bf16.msra.mxu0 0
    %210 = vmatprep.subr.bf16.mxu0 0
    %211 = vmatpush1.bf16.msra.mxu0 0
    %212 = vmatprep.subr.bf16.mxu0 0
    %213 = vmatpush1.bf16.msra.mxu0 0
    %214 = vmatprep.subr.bf16.mxu0 0
    %215 = vmatpush1.bf16.msra.mxu0 0
    %216 = vmatprep.subr.bf16.mxu0 0
    %217 = vmatpush1.bf16.msra.mxu0 0
    %218 = vmatprep.subr.bf16.mxu0 0
    %219 = vmatpush1.bf16.msra.mxu0 0
    %220 = vmatprep.subr.bf16.mxu0 0
    %221 = vmatpush1.bf16.msra.mxu0 0
    %222 = vmatprep.subr.bf16.mxu0 0
    %223 = vmatpush1.bf16.msra.mxu0 0
    %224 = vmatprep.subr.bf16.mxu0 0
    %225 = vmatpush1.bf16.msra.mxu0 0
    %226 = vmatprep.mubr.bf16.mxu0 0
    %227 = vmatmul.mubr.bf16.gmra.mrb[0].mxu0 %v192
    %v228 = vpop.f32.mrb[0].mxu0
    %v229 = vadd.f32 %v176, %v228
    %v230 = vpop.f32.mrb[0].mxu0
    %v231 = vpop.f32.mrb[0].mxu0
    %v232 = vadd.f32 %v176, %v231
    %v233 = vpop.f32.mrb[0].mxu0
    %234 = vdwg.mxu0
    %v235 = vld [vmem:[%s5] sm:$0xf]
    %v236 = vld [vmem:[%s5 + $0x4] sm:$0xf]
    %v237 = vld [vmem:[%s5 + $0x8] sm:$0xf]
    %v238 = vld [vmem:[%s5 + $0xc] sm:$0xf]
    %v239 = vld [vmem:[%s6] sm:$0x1]
    %v241 = vlaneseq
    %v242 = vshrl.u32 %v241, 7
    %v243 = vsub.s32 0, %v242
    %v244 = vrot.slane %v239, %v243
    %v250 = vunpack.c.l.b16 %v235
    %v251 = vunpack.c.l.b16 %v236
    %v252 = vunpack.c.l.b16 %v237
    %v253 = vunpack.c.l.b16 %v238
    %v254 = vpack.c.b16 %v251, %v250
    %v255 = vpack.c.b16 %v253, %v252
    %258 = vmatprep.subr.bf16.mxu0 0
    %259 = vmatpush1.bf16.msra.mxu0 %v254
    %260 = vmatprep.subr.bf16.mxu0 0
    %261 = vmatpush1.bf16.msra.mxu0 %v255
    %262 = vmatprep.subr.bf16.mxu0 0
    %263 = vmatpush1.bf16.msra.mxu0 0
    %264 = vmatprep.subr.bf16.mxu0 0
    %265 = vmatpush1.bf16.msra.mxu0 0
    %266 = vmatprep.subr.bf16.mxu0 0
    %267 = vmatpush1.bf16.msra.mxu0 0
    %268 = vmatprep.subr.bf16.mxu0 0
    %269 = vmatpush1.bf16.msra.mxu0 0
    %270 = vmatprep.subr.bf16.mxu0 0
    %271 = vmatpush1.bf16.msra.mxu0 0
    %272 = vmatprep.subr.bf16.mxu0 0
    %273 = vmatpush1.bf16.msra.mxu0 0
    %274 = vmatprep.subr.bf16.mxu0 0
    %275 = vmatpush1.bf16.msra.mxu0 0
    %276 = vmatprep.subr.bf16.mxu0 0
    %277 = vmatpush1.bf16.msra.mxu0 0
    %278 = vmatprep.subr.bf16.mxu0 0
    %279 = vmatpush1.bf16.msra.mxu0 0
    %280 = vmatprep.subr.bf16.mxu0 0
    %281 = vmatpush1.bf16.msra.mxu0 0
    %282 = vmatprep.subr.bf16.mxu0 0
    %283 = vmatpush1.bf16.msra.mxu0 0
    %284 = vmatprep.subr.bf16.mxu0 0
    %285 = vmatpush1.bf16.msra.mxu0 0
    %286 = vmatprep.subr.bf16.mxu0 0
    %287 = vmatpush1.bf16.msra.mxu0 0
    %288 = vmatprep.subr.bf16.mxu0 0
    %289 = vmatpush1.bf16.msra.mxu0 0
    %290 = vmatprep.mubr.bf16.mxu0 0
    %291 = vmatmul.mubr.bf16.gmra.mrb[0].mxu0 %v192
    %v292 = vpop.f32.mrb[0].mxu0
    %v293 = vadd.f32 %v244, %v292
    %v294 = vpop.f32.mrb[0].mxu0
    %v295 = vpop.f32.mrb[0].mxu0
    %v296 = vadd.f32 %v244, %v295
    %v297 = vpop.f32.mrb[0].mxu0
    %298 = vdwg.mxu0
    %v299 = vld [vmem:[%s7] sm:$0xf]
    %v300 = vld [vmem:[%s7 + $0x4] sm:$0xf]
    %v301 = vld [vmem:[%s7 + $0x8] sm:$0xf]
    %v302 = vld [vmem:[%s7 + $0xc] sm:$0xf]
    %v303 = vld [vmem:[%s8] sm:$0x1]
    %v305 = vlaneseq
    %v306 = vshrl.u32 %v305, 7
    %v307 = vsub.s32 0, %v306
    %v308 = vrot.slane %v303, %v307
    %v314 = vunpack.c.l.b16 %v299
    %v315 = vunpack.c.l.b16 %v300
    %v316 = vunpack.c.l.b16 %v301
    %v317 = vunpack.c.l.b16 %v302
    %v318 = vpack.c.b16 %v315, %v314
    %v319 = vpack.c.b16 %v317, %v316
    %322 = vmatprep.subr.bf16.mxu0 0
    %323 = vmatpush1.bf16.msra.mxu0 %v318
    %324 = vmatprep.subr.bf16.mxu0 0
    %325 = vmatpush1.bf16.msra.mxu0 %v319
    %326 = vmatprep.subr.bf16.mxu0 0
    %327 = vmatpush1.bf16.msra.mxu0 0
    %328 = vmatprep.subr.bf16.mxu0 0
    %329 = vmatpush1.bf16.msra.mxu0 0
    %330 = vmatprep.subr.bf16.mxu0 0
    %331 = vmatpush1.bf16.msra.mxu0 0
    %332 = vmatprep.subr.bf16.mxu0 0
    %333 = vmatpush1.bf16.msra.mxu0 0
    %334 = vmatprep.subr.bf16.mxu0 0
    %335 = vmatpush1.bf16.msra.mxu0 0
    %336 = vmatprep.subr.bf16.mxu0 0
    %337 = vmatpush1.bf16.msra.mxu0 0
    %338 = vmatprep.subr.bf16.mxu0 0
    %339 = vmatpush1.bf16.msra.mxu0 0
    %340 = vmatprep.subr.bf16.mxu0 0
    %341 = vmatpush1.bf16.msra.mxu0 0
    %342 = vmatprep.subr.bf16.mxu0 0
    %343 = vmatpush1.bf16.msra.mxu0 0
    %344 = vmatprep.subr.bf16.mxu0 0
    %345 = vmatpush1.bf16.msra.mxu0 0
    %346 = vmatprep.subr.bf16.mxu0 0
    %347 = vmatpush1.bf16.msra.mxu0 0
    %348 = vmatprep.subr.bf16.mxu0 0
    %349 = vmatpush1.bf16.msra.mxu0 0
    %350 = vmatprep.subr.bf16.mxu0 0
    %351 = vmatpush1.bf16.msra.mxu0 0
    %352 = vmatprep.subr.bf16.mxu0 0
    %353 = vmatpush1.bf16.msra.mxu0 0
    %354 = vmatprep.mubr.bf16.mxu0 0
    %355 = vmatmul.mubr.bf16.gmra.mrb[0].mxu0 %v192
    %v356 = vpop.f32.mrb[0].mxu0
    %v357 = vadd.f32 %v308, %v356
    %v358 = vpop.f32.mrb[0].mxu0
    %v359 = vpop.f32.mrb[0].mxu0
    %v360 = vadd.f32 %v308, %v359
    %v361 = vpop.f32.mrb[0].mxu0
    %362 = vdwg.mxu0
    %v363 = vpack.c.bf16 %v232, %v229
    %v364 = vpack.c.bf16 %v296, %v293
    %vm365 = vcmask 64512
    %v367 = vsel %vm365, %v363, 0
    %v370 = vsel %vm365, %v364, 0
    %372 = vmatprep.subr.bf16.mxu0 0
    %373 = vmatpush1.bf16.xpose.msra.mxu0 %v370
    %374 = vmatprep.subr.bf16.mxu0 0
    %375 = vmatpush1.bf16.xpose.msra.mxu0 0
    %376 = vmatprep.subr.bf16.mxu0 0
    %377 = vmatpush1.bf16.xpose.msra.mxu0 0
    %378 = vmatprep.subr.bf16.mxu0 0
    %379 = vmatpush1.bf16.xpose.msra.mxu0 0
    %380 = vmatprep.subr.bf16.mxu0 0
    %381 = vmatpush1.bf16.xpose.msra.mxu0 0
    %382 = vmatprep.subr.bf16.mxu0 0
    %383 = vmatpush1.bf16.xpose.msra.mxu0 0
    %384 = vmatprep.subr.bf16.mxu0 0
    %385 = vmatpush1.bf16.xpose.msra.mxu0 0
    %386 = vmatprep.subr.bf16.mxu0 0
    %387 = vmatpush1.bf16.xpose.msra.mxu0 0
    %388 = vmatprep.subr.bf16.mxu0 0
    %389 = vmatpush1.bf16.xpose.msra.mxu0 0
    %390 = vmatprep.subr.bf16.mxu0 0
    %391 = vmatpush1.bf16.xpose.msra.mxu0 0
    %392 = vmatprep.subr.bf16.mxu0 0
    %393 = vmatpush1.bf16.xpose.msra.mxu0 0
    %394 = vmatprep.subr.bf16.mxu0 0
    %395 = vmatpush1.bf16.xpose.msra.mxu0 0
    %396 = vmatprep.subr.bf16.mxu0 0
    %397 = vmatpush1.bf16.xpose.msra.mxu0 0
    %398 = vmatprep.subr.bf16.mxu0 0
    %399 = vmatpush1.bf16.xpose.msra.mxu0 0
    %400 = vmatprep.subr.bf16.mxu0 0
    %401 = vmatpush1.bf16.xpose.msra.mxu0 0
    %402 = vmatprep.subr.bf16.mxu0 0
    %403 = vmatpush1.bf16.xpose.msra.mxu0 0
    %404 = vmatprep.mubr.bf16.mxu0 0
    %405 = vmatmul.mubr.bf16.gmra.mrb[0].mxu0 %v367
    %v406 = vpop.f32.mrb[0].mxu0
    %v407 = vadd.f32 %v164, %v406
    %v408 = vpop.f32.mrb[0].mxu0
    %v409 = vpop.f32.mrb[0].mxu0
    %v410 = vadd.f32 %v165, %v409
    %v411 = vpop.f32.mrb[0].mxu0
    %412 = vdwg.mxu0
    %v413 = vmul.f32 %v407, 1.442695
    %v414 = vpow.pop %v413
    %v415 = vmul.f32 %v410, 1.442695
    %v416 = vpow.pop %v415
    %vm417 = vcmask 130048
    %v418 = vsel %vm417, %v414, 0.0
    %419 = vadd.xlane.f32.xlu0 %v418
    %v420 = vpop.xlane.xlu0 %419
    %v421 = vsel %vm417, %v416, 0.0
    %422 = vadd.xlane.f32.xlu0 %v421
    %v423 = vpop.xlane.xlu0 %422
    %v424 = vrcp.pop %v420
    %v425 = vrcp.pop %v423
    %v426 = vmul.f32 %v414, %v424
    %v427 = vmul.f32 %v416, %v425
    %v428 = vpack.c.bf16 %v427, %v426
    %v429 = vpack.c.bf16 %v360, %v357
    %v431 = vsel %vm417, %v428, 0
    %433 = vmatprep.subr.bf16.mxu0 0
    %434 = vmatpush1.bf16.msra.mxu0 %v429
    %435 = vmatprep.subr.bf16.mxu0 0
    %436 = vmatpush1.bf16.msra.mxu0 0
    %437 = vmatprep.subr.bf16.mxu0 0
    %438 = vmatpush1.bf16.msra.mxu0 0
    %439 = vmatprep.subr.bf16.mxu0 0
    %440 = vmatpush1.bf16.msra.mxu0 0
    %441 = vmatprep.subr.bf16.mxu0 0
    %442 = vmatpush1.bf16.msra.mxu0 0
    %443 = vmatprep.subr.bf16.mxu0 0
    %444 = vmatpush1.bf16.msra.mxu0 0
    %445 = vmatprep.subr.bf16.mxu0 0
    %446 = vmatpush1.bf16.msra.mxu0 0
    %447 = vmatprep.subr.bf16.mxu0 0
    %448 = vmatpush1.bf16.msra.mxu0 0
    %449 = vmatprep.subr.bf16.mxu0 0
    %450 = vmatpush1.bf16.msra.mxu0 0
    %451 = vmatprep.subr.bf16.mxu0 0
    %452 = vmatpush1.bf16.msra.mxu0 0
    %453 = vmatprep.subr.bf16.mxu0 0
    %454 = vmatpush1.bf16.msra.mxu0 0
    %455 = vmatprep.subr.bf16.mxu0 0
    %456 = vmatpush1.bf16.msra.mxu0 0
    %457 = vmatprep.subr.bf16.mxu0 0
    %458 = vmatpush1.bf16.msra.mxu0 0
    %459 = vmatprep.subr.bf16.mxu0 0
    %460 = vmatpush1.bf16.msra.mxu0 0
    %461 = vmatprep.subr.bf16.mxu0 0
    %462 = vmatpush1.bf16.msra.mxu0 0
    %463 = vmatprep.subr.bf16.mxu0 0
    %464 = vmatpush1.bf16.msra.mxu0 0
    %465 = vmatprep.mubr.bf16.mxu0 0
    %466 = vmatmul.mubr.bf16.gmra.mrb[0].mxu0 %v431
    %v467 = vpop.f32.mrb[0].mxu0
    %v468 = vadd.f32 0.0, %v467
    %v469 = vpop.f32.mrb[0].mxu0
    %v470 = vpop.f32.mrb[0].mxu0
    %v471 = vadd.f32 0.0, %v470
    %v472 = vpop.f32.mrb[0].mxu0
    %473 = vdwg.mxu0
    %v474 = vpack.c.bf16 %v471, %v468
    %v475 = vld [vmem:[%s9] sm:$0xf]
    %s476 = scalar_lea.vmem %s3, 16
    %v477 = vld [vmem:[%s476] sm:$0xf]
    %v478 = vld [vmem:[%s476 + $0x4] sm:$0xf]
    %v479 = vld [vmem:[%s476 + $0x8] sm:$0xf]
    %v480 = vld [vmem:[%s476 + $0xc] sm:$0xf]
    %s481 = scalar_lea.vmem %s4, 1
    %v482 = vld [vmem:[%s481] sm:$0x1]
    %v484 = vlaneseq
    %v485 = vshrl.u32 %v484, 7
    %v486 = vsub.s32 0, %v485
    %v487 = vrot.slane %v482, %v486
    %v493 = vunpack.c.l.b16 %v477
    %v494 = vunpack.c.l.b16 %v478
    %v495 = vunpack.c.l.b16 %v479
    %v496 = vunpack.c.l.b16 %v480
    %v497 = vpack.c.b16 %v494, %v493
    %v498 = vpack.c.b16 %v496, %v495
    %501 = vmatprep.subr.bf16.mxu0 0
    %502 = vmatpush1.bf16.msra.mxu0 %v497
    %503 = vmatprep.subr.bf16.mxu0 0
    %504 = vmatpush1.bf16.msra.mxu0 %v498
    %505 = vmatprep.subr.bf16.mxu0 0
    %506 = vmatpush1.bf16.msra.mxu0 0
    %507 = vmatprep.subr.bf16.mxu0 0
    %508 = vmatpush1.bf16.msra.mxu0 0
    %509 = vmatprep.subr.bf16.mxu0 0
    %510 = vmatpush1.bf16.msra.mxu0 0
    %511 = vmatprep.subr.bf16.mxu0 0
    %512 = vmatpush1.bf16.msra.mxu0 0
    %513 = vmatprep.subr.bf16.mxu0 0
    %514 = vmatpush1.bf16.msra.mxu0 0
    %515 = vmatprep.subr.bf16.mxu0 0
    %516 = vmatpush1.bf16.msra.mxu0 0
    %517 = vmatprep.subr.bf16.mxu0 0
    %518 = vmatpush1.bf16.msra.mxu0 0
    %519 = vmatprep.subr.bf16.mxu0 0
    %520 = vmatpush1.bf16.msra.mxu0 0
    %521 = vmatprep.subr.bf16.mxu0 0
    %522 = vmatpush1.bf16.msra.mxu0 0
    %523 = vmatprep.subr.bf16.mxu0 0
    %524 = vmatpush1.bf16.msra.mxu0 0
    %525 = vmatprep.subr.bf16.mxu0 0
    %526 = vmatpush1.bf16.msra.mxu0 0
    %527 = vmatprep.subr.bf16.mxu0 0
    %528 = vmatpush1.bf16.msra.mxu0 0
    %529 = vmatprep.subr.bf16.mxu0 0
    %530 = vmatpush1.bf16.msra.mxu0 0
    %531 = vmatprep.subr.bf16.mxu0 0
    %532 = vmatpush1.bf16.msra.mxu0 0
    %533 = vmatprep.mubr.bf16.mxu0 0
    %534 = vmatmul.mubr.bf16.gmra.mrb[0].mxu0 %v192
    %v535 = vpop.f32.mrb[0].mxu0
    %v536 = vadd.f32 %v487, %v535
    %v537 = vpop.f32.mrb[0].mxu0
    %v538 = vpop.f32.mrb[0].mxu0
    %v539 = vadd.f32 %v487, %v538
    %v540 = vpop.f32.mrb[0].mxu0
    %541 = vdwg.mxu0
    %s542 = scalar_lea.vmem %s5, 16
    %v543 = vld [vmem:[%s542] sm:$0xf]
    %v544 = vld [vmem:[%s542 + $0x4] sm:$0xf]
    %v545 = vld [vmem:[%s542 + $0x8] sm:$0xf]
    %v546 = vld [vmem:[%s542 + $0xc] sm:$0xf]
    %s547 = scalar_lea.vmem %s6, 1
    %v548 = vld [vmem:[%s547] sm:$0x1]
    %v550 = vlaneseq
    %v551 = vshrl.u32 %v550, 7
    %v552 = vsub.s32 0, %v551
    %v553 = vrot.slane %v548, %v552
    %v559 = vunpack.c.l.b16 %v543
    %v560 = vunpack.c.l.b16 %v544
    %v561 = vunpack.c.l.b16 %v545
    %v562 = vunpack.c.l.b16 %v546
    %v563 = vpack.c.b16 %v560, %v559
    %v564 = vpack.c.b16 %v562, %v561
    %567 = vmatprep.subr.bf16.mxu0 0
    %568 = vmatpush1.bf16.msra.mxu0 %v563
    %569 = vmatprep.subr.bf16.mxu0 0
    %570 = vmatpush1.bf16.msra.mxu0 %v564
    %571 = vmatprep.subr.bf16.mxu0 0
    %572 = vmatpush1.bf16.msra.mxu0 0
    %573 = vmatprep.subr.bf16.mxu0 0
    %574 = vmatpush1.bf16.msra.mxu0 0
    %575 = vmatprep.subr.bf16.mxu0 0
    %576 = vmatpush1.bf16.msra.mxu0 0
    %577 = vmatprep.subr.bf16.mxu0 0
    %578 = vmatpush1.bf16.msra.mxu0 0
    %579 = vmatprep.subr.bf16.mxu0 0
    %580 = vmatpush1.bf16.msra.mxu0 0
    %581 = vmatprep.subr.bf16.mxu0 0
    %582 = vmatpush1.bf16.msra.mxu0 0
    %583 = vmatprep.subr.bf16.mxu0 0
    %584 = vmatpush1.bf16.msra.mxu0 0
    %585 = vmatprep.subr.bf16.mxu0 0
    %586 = vmatpush1.bf16.msra.mxu0 0
    %587 = vmatprep.subr.bf16.mxu0 0
    %588 = vmatpush1.bf16.msra.mxu0 0
    %589 = vmatprep.subr.bf16.mxu0 0
    %590 = vmatpush1.bf16.msra.mxu0 0
    %591 = vmatprep.subr.bf16.mxu0 0
    %592 = vmatpush1.bf16.msra.mxu0 0
    %593 = vmatprep.subr.bf16.mxu0 0
    %594 = vmatpush1.bf16.msra.mxu0 0
    %595 = vmatprep.subr.bf16.mxu0 0
    %596 = vmatpush1.bf16.msra.mxu0 0
    %597 = vmatprep.subr.bf16.mxu0 0
    %598 = vmatpush1.bf16.msra.mxu0 0
    %599 = vmatprep.mubr.bf16.mxu0 0
    %600 = vmatmul.mubr.bf16.gmra.mrb[0].mxu0 %v192
    %v601 = vpop.f32.mrb[0].mxu0
    %v602 = vadd.f32 %v553, %v601
    %v603 = vpop.f32.mrb[0].mxu0
    %v604 = vpop.f32.mrb[0].mxu0
    %v605 = vadd.f32 %v553, %v604
    %v606 = vpop.f32.mrb[0].mxu0
    %607 = vdwg.mxu0
    %s608 = scalar_lea.vmem %s7, 16
    %v609 = vld [vmem:[%s608] sm:$0xf]
    %v610 = vld [vmem:[%s608 + $0x4] sm:$0xf]
    %v611 = vld [vmem:[%s608 + $0x8] sm:$0xf]
    %v612 = vld [vmem:[%s608 + $0xc] sm:$0xf]
    %s613 = scalar_lea.vmem %s8, 1
    %v614 = vld [vmem:[%s613] sm:$0x1]
    %v616 = vlaneseq
    %v617 = vshrl.u32 %v616, 7
    %v618 = vsub.s32 0, %v617
    %v619 = vrot.slane %v614, %v618
    %v625 = vunpack.c.l.b16 %v609
    %v626 = vunpack.c.l.b16 %v610
    %v627 = vunpack.c.l.b16 %v611
    %v628 = vunpack.c.l.b16 %v612
    %v629 = vpack.c.b16 %v626, %v625
    %v630 = vpack.c.b16 %v628, %v627
    %633 = vmatprep.subr.bf16.mxu0 0
    %634 = vmatpush1.bf16.msra.mxu0 %v629
    %635 = vmatprep.subr.bf16.mxu0 0
    %636 = vmatpush1.bf16.msra.mxu0 %v630
    %637 = vmatprep.subr.bf16.mxu0 0
    %638 = vmatpush1.bf16.msra.mxu0 0
    %639 = vmatprep.subr.bf16.mxu0 0
    %640 = vmatpush1.bf16.msra.mxu0 0
    %641 = vmatprep.subr.bf16.mxu0 0
    %642 = vmatpush1.bf16.msra.mxu0 0
    %643 = vmatprep.subr.bf16.mxu0 0
    %644 = vmatpush1.bf16.msra.mxu0 0
    %645 = vmatprep.subr.bf16.mxu0 0
    %646 = vmatpush1.bf16.msra.mxu0 0
    %647 = vmatprep.subr.bf16.mxu0 0
    %648 = vmatpush1.bf16.msra.mxu0 0
    %649 = vmatprep.subr.bf16.mxu0 0
    %650 = vmatpush1.bf16.msra.mxu0 0
    %651 = vmatprep.subr.bf16.mxu0 0
    %652 = vmatpush1.bf16.msra.mxu0 0
    %653 = vmatprep.subr.bf16.mxu0 0
    %654 = vmatpush1.bf16.msra.mxu0 0
    %655 = vmatprep.subr.bf16.mxu0 0
    %656 = vmatpush1.bf16.msra.mxu0 0
    %657 = vmatprep.subr.bf16.mxu0 0
    %658 = vmatpush1.bf16.msra.mxu0 0
    %659 = vmatprep.subr.bf16.mxu0 0
    %660 = vmatpush1.bf16.msra.mxu0 0
    %661 = vmatprep.subr.bf16.mxu0 0
    %662 = vmatpush1.bf16.msra.mxu0 0
    %663 = vmatprep.subr.bf16.mxu0 0
    %664 = vmatpush1.bf16.msra.mxu0 0
    %665 = vmatprep.mubr.bf16.mxu0 0
    %666 = vmatmul.mubr.bf16.gmra.mrb[0].mxu0 %v192
    %v667 = vpop.f32.mrb[0].mxu0
    %v668 = vadd.f32 %v619, %v667
    %v669 = vpop.f32.mrb[0].mxu0
    %v670 = vpop.f32.mrb[0].mxu0
    %v671 = vadd.f32 %v619, %v670
    %v672 = vpop.f32.mrb[0].mxu0
    %673 = vdwg.mxu0
    %v674 = vpack.c.bf16 %v539, %v536
    %v675 = vpack.c.bf16 %v605, %v602
    %v677 = vsel %vm365, %v674, 0
    %v680 = vsel %vm365, %v675, 0
    %682 = vmatprep.subr.bf16.mxu0 0
    %683 = vmatpush1.bf16.xpose.msra.mxu0 %v680
    %684 = vmatprep.subr.bf16.mxu0 0
    %685 = vmatpush1.bf16.xpose.msra.mxu0 0
    %686 = vmatprep.subr.bf16.mxu0 0
    %687 = vmatpush1.bf16.xpose.msra.mxu0 0
    %688 = vmatprep.subr.bf16.mxu0 0
    %689 = vmatpush1.bf16.xpose.msra.mxu0 0
    %690 = vmatprep.subr.bf16.mxu0 0
    %691 = vmatpush1.bf16.xpose.msra.mxu0 0
    %692 = vmatprep.subr.bf16.mxu0 0
    %693 = vmatpush1.bf16.xpose.msra.mxu0 0
    %694 = vmatprep.subr.bf16.mxu0 0
    %695 = vmatpush1.bf16.xpose.msra.mxu0 0
    %696 = vmatprep.subr.bf16.mxu0 0
    %697 = vmatpush1.bf16.xpose.msra.mxu0 0
    %698 = vmatprep.subr.bf16.mxu0 0
    %699 = vmatpush1.bf16.xpose.msra.mxu0 0
    %700 = vmatprep.subr.bf16.mxu0 0
    %701 = vmatpush1.bf16.xpose.msra.mxu0 0
    %702 = vmatprep.subr.bf16.mxu0 0
    %703 = vmatpush1.bf16.xpose.msra.mxu0 0
    %704 = vmatprep.subr.bf16.mxu0 0
    %705 = vmatpush1.bf16.xpose.msra.mxu0 0
    %706 = vmatprep.subr.bf16.mxu0 0
    %707 = vmatpush1.bf16.xpose.msra.mxu0 0
    %708 = vmatprep.subr.bf16.mxu0 0
    %709 = vmatpush1.bf16.xpose.msra.mxu0 0
    %710 = vmatprep.subr.bf16.mxu0 0
    %711 = vmatpush1.bf16.xpose.msra.mxu0 0
    %712 = vmatprep.subr.bf16.mxu0 0
    %713 = vmatpush1.bf16.xpose.msra.mxu0 0
    %714 = vmatprep.mubr.bf16.mxu0 0
    %715 = vmatmul.mubr.bf16.gmra.mrb[0].mxu0 %v677
    %v716 = vpop.f32.mrb[0].mxu0
    %v717 = vadd.f32 %v164, %v716
    %v718 = vpop.f32.mrb[0].mxu0
    %v719 = vpop.f32.mrb[0].mxu0
    %v720 = vadd.f32 %v165, %v719
    %v721 = vpop.f32.mrb[0].mxu0
    %722 = vdwg.mxu0
    %v723 = vmul.f32 %v717, 1.442695
    %v724 = vpow.pop %v723
    %v725 = vmul.f32 %v720, 1.442695
    %v726 = vpow.pop %v725
    %v727 = vsel %vm417, %v724, 0.0
    %728 = vadd.xlane.f32.xlu0 %v727
    %v729 = vpop.xlane.xlu0 %728
    %v730 = vsel %vm417, %v726, 0.0
    %731 = vadd.xlane.f32.xlu0 %v730
    %v732 = vpop.xlane.xlu0 %731
    %v733 = vrcp.pop %v729
    %v734 = vrcp.pop %v732
    %v735 = vmul.f32 %v724, %v733
    %v736 = vmul.f32 %v726, %v734
    %v737 = vpack.c.bf16 %v736, %v735
    %v738 = vpack.c.bf16 %v671, %v668
    %v740 = vsel %vm417, %v737, 0
    %742 = vmatprep.subr.bf16.mxu0 0
    %743 = vmatpush1.bf16.msra.mxu0 %v738
    %744 = vmatprep.subr.bf16.mxu0 0
    %745 = vmatpush1.bf16.msra.mxu0 0
    %746 = vmatprep.subr.bf16.mxu0 0
    %747 = vmatpush1.bf16.msra.mxu0 0
    %748 = vmatprep.subr.bf16.mxu0 0
    %749 = vmatpush1.bf16.msra.mxu0 0
    %750 = vmatprep.subr.bf16.mxu0 0
    %751 = vmatpush1.bf16.msra.mxu0 0
    %752 = vmatprep.subr.bf16.mxu0 0
    %753 = vmatpush1.bf16.msra.mxu0 0
    %754 = vmatprep.subr.bf16.mxu0 0
    %755 = vmatpush1.bf16.msra.mxu0 0
    %756 = vmatprep.subr.bf16.mxu0 0
    %757 = vmatpush1.bf16.msra.mxu0 0
    %758 = vmatprep.subr.bf16.mxu0 0
    %759 = vmatpush1.bf16.msra.mxu0 0
    %760 = vmatprep.subr.bf16.mxu0 0
    %761 = vmatpush1.bf16.msra.mxu0 0
    %762 = vmatprep.subr.bf16.mxu0 0
    %763 = vmatpush1.bf16.msra.mxu0 0
    %764 = vmatprep.subr.bf16.mxu0 0
    %765 = vmatpush1.bf16.msra.mxu0 0
    %766 = vmatprep.subr.bf16.mxu0 0
    %767 = vmatpush1.bf16.msra.mxu0 0
    %768 = vmatprep.subr.bf16.mxu0 0
    %769 = vmatpush1.bf16.msra.mxu0 0
    %770 = vmatprep.subr.bf16.mxu0 0
    %771 = vmatpush1.bf16.msra.mxu0 0
    %772 = vmatprep.subr.bf16.mxu0 0
    %773 = vmatpush1.bf16.msra.mxu0 0
    %774 = vmatprep.mubr.bf16.mxu0 0
    %775 = vmatmul.mubr.bf16.gmra.mrb[0].mxu0 %v740
    %v776 = vpop.f32.mrb[0].mxu0
    %v777 = vadd.f32 0.0, %v776
    %v778 = vpop.f32.mrb[0].mxu0
    %v779 = vpop.f32.mrb[0].mxu0
    %v780 = vadd.f32 0.0, %v779
    %v781 = vpop.f32.mrb[0].mxu0
    %782 = vdwg.mxu0
    %v783 = vpack.c.bf16 %v780, %v777
    %s784 = scalar_lea.vmem %s9, 4
    %v785 = vld [vmem:[%s784] sm:$0xf]
    %v787 = vsel %vm365, %v783, 0
    %vm789 = vcmask 1043456
    %v791 = vsel %vm789, %v785, 0
    %793 = vmatprep.subr.bf16.mxu0 0
    %794 = vmatpush1.bf16.msra.mxu0 %v791
    %795 = vmatprep.subr.bf16.mxu0 0
    %796 = vmatpush1.bf16.msra.mxu0 0
    %797 = vmatprep.subr.bf16.mxu0 0
    %798 = vmatpush1.bf16.msra.mxu0 0
    %799 = vmatprep.subr.bf16.mxu0 0
    %800 = vmatpush1.bf16.msra.mxu0 0
    %801 = vmatprep.subr.bf16.mxu0 0
    %802 = vmatpush1.bf16.msra.mxu0 0
    %803 = vmatprep.subr.bf16.mxu0 0
    %804 = vmatpush1.bf16.msra.mxu0 0
    %805 = vmatprep.subr.bf16.mxu0 0
    %806 = vmatpush1.bf16.msra.mxu0 0
    %807 = vmatprep.subr.bf16.mxu0 0
    %808 = vmatpush1.bf16.msra.mxu0 0
    %809 = vmatprep.subr.bf16.mxu0 0
    %810 = vmatpush1.bf16.msra.mxu0 0
    %811 = vmatprep.subr.bf16.mxu0 0
    %812 = vmatpush1.bf16.msra.mxu0 0
    %813 = vmatprep.subr.bf16.mxu0 0
    %814 = vmatpush1.bf16.msra.mxu0 0
    %815 = vmatprep.subr.bf16.mxu0 0
    %816 = vmatpush1.bf16.msra.mxu0 0
    %817 = vmatprep.subr.bf16.mxu0 0
    %818 = vmatpush1.bf16.msra.mxu0 0
    %819 = vmatprep.subr.bf16.mxu0 0
    %820 = vmatpush1.bf16.msra.mxu0 0
    %821 = vmatprep.subr.bf16.mxu0 0
    %822 = vmatpush1.bf16.msra.mxu0 0
    %823 = vmatprep.subr.bf16.mxu0 0
    %824 = vmatpush1.bf16.msra.mxu0 0
    %825 = vmatprep.mubr.bf16.mxu0 0
    %826 = vmatmul.mubr.bf16.gmra.mrb[0].mxu0 %v787
    %v827 = vpop.f32.mrb[0].mxu0
    %v828 = vadd.f32 0.0, %v827
    %v829 = vpop.f32.mrb[0].mxu0
    %v830 = vpop.f32.mrb[0].mxu0
    %v831 = vadd.f32 0.0, %v830
    %v832 = vpop.f32.mrb[0].mxu0
    %833 = vdwg.mxu0
    %v835 = vsel %vm365, %v474, 0
    %v838 = vsel %vm789, %v475, 0
    %840 = vmatprep.subr.bf16.mxu0 0
    %841 = vmatpush1.bf16.msra.mxu0 %v838
    %842 = vmatprep.subr.bf16.mxu0 0
    %843 = vmatpush1.bf16.msra.mxu0 0
    %844 = vmatprep.subr.bf16.mxu0 0
    %845 = vmatpush1.bf16.msra.mxu0 0
    %846 = vmatprep.subr.bf16.mxu0 0
    %847 = vmatpush1.bf16.msra.mxu0 0
    %848 = vmatprep.subr.bf16.mxu0 0
    %849 = vmatpush1.bf16.msra.mxu0 0
    %850 = vmatprep.subr.bf16.mxu0 0
    %851 = vmatpush1.bf16.msra.mxu0 0
    %852 = vmatprep.subr.bf16.mxu0 0
    %853 = vmatpush1.bf16.msra.mxu0 0
    %854 = vmatprep.subr.bf16.mxu0 0
    %855 = vmatpush1.bf16.msra.mxu0 0
    %856 = vmatprep.subr.bf16.mxu0 0
    %857 = vmatpush1.bf16.msra.mxu0 0
    %858 = vmatprep.subr.bf16.mxu0 0
    %859 = vmatpush1.bf16.msra.mxu0 0
    %860 = vmatprep.subr.bf16.mxu0 0
    %861 = vmatpush1.bf16.msra.mxu0 0
    %862 = vmatprep.subr.bf16.mxu0 0
    %863 = vmatpush1.bf16.msra.mxu0 0
    %864 = vmatprep.subr.bf16.mxu0 0
    %865 = vmatpush1.bf16.msra.mxu0 0
    %866 = vmatprep.subr.bf16.mxu0 0
    %867 = vmatpush1.bf16.msra.mxu0 0
    %868 = vmatprep.subr.bf16.mxu0 0
    %869 = vmatpush1.bf16.msra.mxu0 0
    %870 = vmatprep.subr.bf16.mxu0 0
    %871 = vmatpush1.bf16.msra.mxu0 0
    %872 = vmatprep.mubr.bf16.mxu0 0
    %873 = vmatmul.mubr.bf16.gmra.mrb[0].mxu0 %v835
    %v874 = vpop.f32.mrb[0].mxu0
    %v875 = vadd.f32 %v828, %v874
    %v876 = vpop.f32.mrb[0].mxu0
    %v877 = vpop.f32.mrb[0].mxu0
    %v878 = vadd.f32 %v831, %v877
    %v879 = vpop.f32.mrb[0].mxu0
    %880 = vdwg.mxu0
    %s881 = scalar_lea.vmem %s3, 32
    %v882 = vld [vmem:[%s881] sm:$0xf]
    %v883 = vld [vmem:[%s881 + $0x4] sm:$0xf]
    %v884 = vld [vmem:[%s881 + $0x8] sm:$0xf]
    %v885 = vld [vmem:[%s881 + $0xc] sm:$0xf]
    %s886 = scalar_lea.vmem %s4, 2
    %v887 = vld [vmem:[%s886] sm:$0x1]
    %v889 = vlaneseq
    %v890 = vshrl.u32 %v889, 7
    %v891 = vsub.s32 0, %v890
    %v892 = vrot.slane %v887, %v891
    %v898 = vunpack.c.l.b16 %v882
    %v899 = vunpack.c.l.b16 %v883
    %v900 = vunpack.c.l.b16 %v884
    %v901 = vunpack.c.l.b16 %v885
    %v902 = vpack.c.b16 %v899, %v898
    %v903 = vpack.c.b16 %v901, %v900
    %906 = vmatprep.subr.bf16.mxu0 0
    %907 = vmatpush1.bf16.msra.mxu0 %v902
    %908 = vmatprep.subr.bf16.mxu0 0
    %909 = vmatpush1.bf16.msra.mxu0 %v903
    %910 = vmatprep.subr.bf16.mxu0 0
    %911 = vmatpush1.bf16.msra.mxu0 0
    %912 = vmatprep.subr.bf16.mxu0 0
    %913 = vmatpush1.bf16.msra.mxu0 0
    %914 = vmatprep.subr.bf16.mxu0 0
    %915 = vmatpush1.bf16.msra.mxu0 0
    %916 = vmatprep.subr.bf16.mxu0 0
    %917 = vmatpush1.bf16.msra.mxu0 0
    %918 = vmatprep.subr.bf16.mxu0 0
    %919 = vmatpush1.bf16.msra.mxu0 0
    %920 = vmatprep.subr.bf16.mxu0 0
    %921 = vmatpush1.bf16.msra.mxu0 0
    %922 = vmatprep.subr.bf16.mxu0 0
    %923 = vmatpush1.bf16.msra.mxu0 0
    %924 = vmatprep.subr.bf16.mxu0 0
    %925 = vmatpush1.bf16.msra.mxu0 0
    %926 = vmatprep.subr.bf16.mxu0 0
    %927 = vmatpush1.bf16.msra.mxu0 0
    %928 = vmatprep.subr.bf16.mxu0 0
    %929 = vmatpush1.bf16.msra.mxu0 0
    %930 = vmatprep.subr.bf16.mxu0 0
    %931 = vmatpush1.bf16.msra.mxu0 0
    %932 = vmatprep.subr.bf16.mxu0 0
    %933 = vmatpush1.bf16.msra.mxu0 0
    %934 = vmatprep.subr.bf16.mxu0 0
    %935 = vmatpush1.bf16.msra.mxu0 0
    %936 = vmatprep.subr.bf16.mxu0 0
    %937 = vmatpush1.bf16.msra.mxu0 0
    %938 = vmatprep.mubr.bf16.mxu0 0
    %939 = vmatmul.mubr.bf16.gmra.mrb[0].mxu0 %v192
    %v940 = vpop.f32.mrb[0].mxu0
    %v941 = vadd.f32 %v892, %v940
    %v942 = vpop.f32.mrb[0].mxu0
    %v943 = vpop.f32.mrb[0].mxu0
    %v944 = vadd.f32 %v892, %v943
    %v945 = vpop.f32.mrb[0].mxu0
    %946 = vdwg.mxu0
    %s947 = scalar_lea.vmem %s5, 32
    %v948 = vld [vmem:[%s947] sm:$0xf]
    %v949 = vld [vmem:[%s947 + $0x4] sm:$0xf]
    %v950 = vld [vmem:[%s947 + $0x8] sm:$0xf]
    %v951 = vld [vmem:[%s947 + $0xc] sm:$0xf]
    %s952 = scalar_lea.vmem %s6, 2
    %v953 = vld [vmem:[%s952] sm:$0x1]
    %v955 = vlaneseq
    %v956 = vshrl.u32 %v955, 7
    %v957 = vsub.s32 0, %v956
    %v958 = vrot.slane %v953, %v957
    %v964 = vunpack.c.l.b16 %v948
    %v965 = vunpack.c.l.b16 %v949
    %v966 = vunpack.c.l.b16 %v950
    %v967 = vunpack.c.l.b16 %v951
    %v968 = vpack.c.b16 %v965, %v964
    %v969 = vpack.c.b16 %v967, %v966
    %972 = vmatprep.subr.bf16.mxu0 0
    %973 = vmatpush1.bf16.msra.mxu0 %v968
    %974 = vmatprep.subr.bf16.mxu0 0
    %975 = vmatpush1.bf16.msra.mxu0 %v969
    %976 = vmatprep.subr.bf16.mxu0 0
    %977 = vmatpush1.bf16.msra.mxu0 0
    %978 = vmatprep.subr.bf16.mxu0 0
    %979 = vmatpush1.bf16.msra.mxu0 0
    %980 = vmatprep.subr.bf16.mxu0 0
    %981 = vmatpush1.bf16.msra.mxu0 0
    %982 = vmatprep.subr.bf16.mxu0 0
    %983 = vmatpush1.bf16.msra.mxu0 0
    %984 = vmatprep.subr.bf16.mxu0 0
    %985 = vmatpush1.bf16.msra.mxu0 0
    %986 = vmatprep.subr.bf16.mxu0 0
    %987 = vmatpush1.bf16.msra.mxu0 0
    %988 = vmatprep.subr.bf16.mxu0 0
    %989 = vmatpush1.bf16.msra.mxu0 0
    %990 = vmatprep.subr.bf16.mxu0 0
    %991 = vmatpush1.bf16.msra.mxu0 0
    %992 = vmatprep.subr.bf16.mxu0 0
    %993 = vmatpush1.bf16.msra.mxu0 0
    %994 = vmatprep.subr.bf16.mxu0 0
    %995 = vmatpush1.bf16.msra.mxu0 0
    %996 = vmatprep.subr.bf16.mxu0 0
    %997 = vmatpush1.bf16.msra.mxu0 0
    %998 = vmatprep.subr.bf16.mxu0 0
    %999 = vmatpush1.bf16.msra.mxu0 0
    %1000 = vmatprep.subr.bf16.mxu0 0
    %1001 = vmatpush1.bf16.msra.mxu0 0
    %1002 = vmatprep.subr.bf16.mxu0 0
    %1003 = vmatpush1.bf16.msra.mxu0 0
    %1004 = vmatprep.mubr.bf16.mxu0 0
    %1005 = vmatmul.mubr.bf16.gmra.mrb[0].mxu0 %v192
    %v1006 = vpop.f32.mrb[0].mxu0
    %v1007 = vadd.f32 %v958, %v1006
    %v1008 = vpop.f32.mrb[0].mxu0
    %v1009 = vpop.f32.mrb[0].mxu0
    %v1010 = vadd.f32 %v958, %v1009
    %v1011 = vpop.f32.mrb[0].mxu0
    %1012 = vdwg.mxu0
    %s1013 = scalar_lea.vmem %s7, 32
    %v1014 = vld [vmem:[%s1013] sm:$0xf]
    %v1015 = vld [vmem:[%s1013 + $0x4] sm:$0xf]
    %v1016 = vld [vmem:[%s1013 + $0x8] sm:$0xf]
    %v1017 = vld [vmem:[%s1013 + $0xc] sm:$0xf]
    %s1018 = scalar_lea.vmem %s8, 2
    %v1019 = vld [vmem:[%s1018] sm:$0x1]
    %v1021 = vlaneseq
    %v1022 = vshrl.u32 %v1021, 7
    %v1023 = vsub.s32 0, %v1022
    %v1024 = vrot.slane %v1019, %v1023
    %v1030 = vunpack.c.l.b16 %v1014
    %v1031 = vunpack.c.l.b16 %v1015
    %v1032 = vunpack.c.l.b16 %v1016
    %v1033 = vunpack.c.l.b16 %v1017
    %v1034 = vpack.c.b16 %v1031, %v1030
    %v1035 = vpack.c.b16 %v1033, %v1032
    %1038 = vmatprep.subr.bf16.mxu0 0
    %1039 = vmatpush1.bf16.msra.mxu0 %v1034
    %1040 = vmatprep.subr.bf16.mxu0 0
    %1041 = vmatpush1.bf16.msra.mxu0 %v1035
    %1042 = vmatprep.subr.bf16.mxu0 0
    %1043 = vmatpush1.bf16.msra.mxu0 0
    %1044 = vmatprep.subr.bf16.mxu0 0
    %1045 = vmatpush1.bf16.msra.mxu0 0
    %1046 = vmatprep.subr.bf16.mxu0 0
    %1047 = vmatpush1.bf16.msra.mxu0 0
    %1048 = vmatprep.subr.bf16.mxu0 0
    %1049 = vmatpush1.bf16.msra.mxu0 0
    %1050 = vmatprep.subr.bf16.mxu0 0
    %1051 = vmatpush1.bf16.msra.mxu0 0
    %1052 = vmatprep.subr.bf16.mxu0 0
    %1053 = vmatpush1.bf16.msra.mxu0 0
    %1054 = vmatprep.subr.bf16.mxu0 0
    %1055 = vmatpush1.bf16.msra.mxu0 0
    %1056 = vmatprep.subr.bf16.mxu0 0
    %1057 = vmatpush1.bf16.msra.mxu0 0
    %1058 = vmatprep.subr.bf16.mxu0 0
    %1059 = vmatpush1.bf16.msra.mxu0 0
    %1060 = vmatprep.subr.bf16.mxu0 0
    %1061 = vmatpush1.bf16.msra.mxu0 0
    %1062 = vmatprep.subr.bf16.mxu0 0
    %1063 = vmatpush1.bf16.msra.mxu0 0
    %1064 = vmatprep.subr.bf16.mxu0 0
    %1065 = vmatpush1.bf16.msra.mxu0 0
    %1066 = vmatprep.subr.bf16.mxu0 0
    %1067 = vmatpush1.bf16.msra.mxu0 0
    %1068 = vmatprep.subr.bf16.mxu0 0
    %1069 = vmatpush1.bf16.msra.mxu0 0
    %1070 = vmatprep.mubr.bf16.mxu0 0
    %1071 = vmatmul.mubr.bf16.gmra.mrb[0].mxu0 %v192
    %v1072 = vpop.f32.mrb[0].mxu0
    %v1073 = vadd.f32 %v1024, %v1072
    %v1074 = vpop.f32.mrb[0].mxu0
    %v1075 = vpop.f32.mrb[0].mxu0
    %v1076 = vadd.f32 %v1024, %v1075
    %v1077 = vpop.f32.mrb[0].mxu0
    %1078 = vdwg.mxu0
    %v1079 = vpack.c.bf16 %v944, %v941
    %v1080 = vpack.c.bf16 %v1010, %v1007
    %v1082 = vsel %vm365, %v1079, 0
    %v1085 = vsel %vm365, %v1080, 0
    %1087 = vmatprep.subr.bf16.mxu0 0
    %1088 = vmatpush1.bf16.xpose.msra.mxu0 %v1085
    %1089 = vmatprep.subr.bf16.mxu0 0
    %1090 = vmatpush1.bf16.xpose.msra.mxu0 0
    %1091 = vmatprep.subr.bf16.mxu0 0
    %1092 = vmatpush1.bf16.xpose.msra.mxu0 0
    %1093 = vmatprep.subr.bf16.mxu0 0
    %1094 = vmatpush1.bf16.xpose.msra.mxu0 0
    %1095 = vmatprep.subr.bf16.mxu0 0
    %1096 = vmatpush1.bf16.xpose.msra.mxu0 0
    %1097 = vmatprep.subr.bf16.mxu0 0
    %1098 = vmatpush1.bf16.xpose.msra.mxu0 0
    %1099 = vmatprep.subr.bf16.mxu0 0
    %1100 = vmatpush1.bf16.xpose.msra.mxu0 0
    %1101 = vmatprep.subr.bf16.mxu0 0
    %1102 = vmatpush1.bf16.xpose.msra.mxu0 0
    %1103 = vmatprep.subr.bf16.mxu0 0
    %1104 = vmatpush1.bf16.xpose.msra.mxu0 0
    %1105 = vmatprep.subr.bf16.mxu0 0
    %1106 = vmatpush1.bf16.xpose.msra.mxu0 0
    %1107 = vmatprep.subr.bf16.mxu0 0
    %1108 = vmatpush1.bf16.xpose.msra.mxu0 0
    %1109 = vmatprep.subr.bf16.mxu0 0
    %1110 = vmatpush1.bf16.xpose.msra.mxu0 0
    %1111 = vmatprep.subr.bf16.mxu0 0
    %1112 = vmatpush1.bf16.xpose.msra.mxu0 0
    %1113 = vmatprep.subr.bf16.mxu0 0
    %1114 = vmatpush1.bf16.xpose.msra.mxu0 0
    %1115 = vmatprep.subr.bf16.mxu0 0
    %1116 = vmatpush1.bf16.xpose.msra.mxu0 0
    %1117 = vmatprep.subr.bf16.mxu0 0
    %1118 = vmatpush1.bf16.xpose.msra.mxu0 0
    %1119 = vmatprep.mubr.bf16.mxu0 0
    %1120 = vmatmul.mubr.bf16.gmra.mrb[0].mxu0 %v1082
    %v1121 = vpop.f32.mrb[0].mxu0
    %v1122 = vadd.f32 %v164, %v1121
    %v1123 = vpop.f32.mrb[0].mxu0
    %v1124 = vpop.f32.mrb[0].mxu0
    %v1125 = vadd.f32 %v165, %v1124
    %v1126 = vpop.f32.mrb[0].mxu0
    %1127 = vdwg.mxu0
    %v1128 = vmul.f32 %v1122, 1.442695
    %v1129 = vpow.pop %v1128
    %v1130 = vmul.f32 %v1125, 1.442695
    %v1131 = vpow.pop %v1130
    %v1132 = vsel %vm417, %v1129, 0.0
    %1133 = vadd.xlane.f32.xlu0 %v1132
    %v1134 = vpop.xlane.xlu0 %1133
    %v1135 = vsel %vm417, %v1131, 0.0
    %1136 = vadd.xlane.f32.xlu0 %v1135
    %v1137 = vpop.xlane.xlu0 %1136
    %v1138 = vrcp.pop %v1134
    %v1139 = vrcp.pop %v1137
    %v1140 = vmul.f32 %v1129, %v1138
    %v1141 = vmul.f32 %v1131, %v1139
    %v1142 = vpack.c.bf16 %v1141, %v1140
    %v1143 = vpack.c.bf16 %v1076, %v1073
    %v1145 = vsel %vm417, %v1142, 0
    %1147 = vmatprep.subr.bf16.mxu0 0
    %1148 = vmatpush1.bf16.msra.mxu0 %v1143
    %1149 = vmatprep.subr.bf16.mxu0 0
    %1150 = vmatpush1.bf16.msra.mxu0 0
    %1151 = vmatprep.subr.bf16.mxu0 0
    %1152 = vmatpush1.bf16.msra.mxu0 0
    %1153 = vmatprep.subr.bf16.mxu0 0
    %1154 = vmatpush1.bf16.msra.mxu0 0
    %1155 = vmatprep.subr.bf16.mxu0 0
    %1156 = vmatpush1.bf16.msra.mxu0 0
    %1157 = vmatprep.subr.bf16.mxu0 0
    %1158 = vmatpush1.bf16.msra.mxu0 0
    %1159 = vmatprep.subr.bf16.mxu0 0
    %1160 = vmatpush1.bf16.msra.mxu0 0
    %1161 = vmatprep.subr.bf16.mxu0 0
    %1162 = vmatpush1.bf16.msra.mxu0 0
    %1163 = vmatprep.subr.bf16.mxu0 0
    %1164 = vmatpush1.bf16.msra.mxu0 0
    %1165 = vmatprep.subr.bf16.mxu0 0
    %1166 = vmatpush1.bf16.msra.mxu0 0
    %1167 = vmatprep.subr.bf16.mxu0 0
    %1168 = vmatpush1.bf16.msra.mxu0 0
    %1169 = vmatprep.subr.bf16.mxu0 0
    %1170 = vmatpush1.bf16.msra.mxu0 0
    %1171 = vmatprep.subr.bf16.mxu0 0
    %1172 = vmatpush1.bf16.msra.mxu0 0
    %1173 = vmatprep.subr.bf16.mxu0 0
    %1174 = vmatpush1.bf16.msra.mxu0 0
    %1175 = vmatprep.subr.bf16.mxu0 0
    %1176 = vmatpush1.bf16.msra.mxu0 0
    %1177 = vmatprep.subr.bf16.mxu0 0
    %1178 = vmatpush1.bf16.msra.mxu0 0
    %1179 = vmatprep.mubr.bf16.mxu0 0
    %1180 = vmatmul.mubr.bf16.gmra.mrb[0].mxu0 %v1145
    %v1181 = vpop.f32.mrb[0].mxu0
    %v1182 = vadd.f32 0.0, %v1181
    %v1183 = vpop.f32.mrb[0].mxu0
    %v1184 = vpop.f32.mrb[0].mxu0
    %v1185 = vadd.f32 0.0, %v1184
    %v1186 = vpop.f32.mrb[0].mxu0
    %1187 = vdwg.mxu0
    %v1188 = vpack.c.bf16 %v1185, %v1182
    %s1189 = scalar_lea.vmem %s9, 8
    %v1190 = vld [vmem:[%s1189] sm:$0xf]
    %v1192 = vsel %vm365, %v1188, 0
    %v1195 = vsel %vm789, %v1190, 0
    %1197 = vmatprep.subr.bf16.mxu0 0
    %1198 = vmatpush1.bf16.msra.mxu0 %v1195
    %1199 = vmatprep.subr.bf16.mxu0 0
    %1200 = vmatpush1.bf16.msra.mxu0 0
    %1201 = vmatprep.subr.bf16.mxu0 0
    %1202 = vmatpush1.bf16.msra.mxu0 0
    %1203 = vmatprep.subr.bf16.mxu0 0
    %1204 = vmatpush1.bf16.msra.mxu0 0
    %1205 = vmatprep.subr.bf16.mxu0 0
    %1206 = vmatpush1.bf16.msra.mxu0 0
    %1207 = vmatprep.subr.bf16.mxu0 0
    %1208 = vmatpush1.bf16.msra.mxu0 0
    %1209 = vmatprep.subr.bf16.mxu0 0
    %1210 = vmatpush1.bf16.msra.mxu0 0
    %1211 = vmatprep.subr.bf16.mxu0 0
    %1212 = vmatpush1.bf16.msra.mxu0 0
    %1213 = vmatprep.subr.bf16.mxu0 0
    %1214 = vmatpush1.bf16.msra.mxu0 0
    %1215 = vmatprep.subr.bf16.mxu0 0
    %1216 = vmatpush1.bf16.msra.mxu0 0
    %1217 = vmatprep.subr.bf16.mxu0 0
    %1218 = vmatpush1.bf16.msra.mxu0 0
    %1219 = vmatprep.subr.bf16.mxu0 0
    %1220 = vmatpush1.bf16.msra.mxu0 0
    %1221 = vmatprep.subr.bf16.mxu0 0
    %1222 = vmatpush1.bf16.msra.mxu0 0
    %1223 = vmatprep.subr.bf16.mxu0 0
    %1224 = vmatpush1.bf16.msra.mxu0 0
    %1225 = vmatprep.subr.bf16.mxu0 0
    %1226 = vmatpush1.bf16.msra.mxu0 0
    %1227 = vmatprep.subr.bf16.mxu0 0
    %1228 = vmatpush1.bf16.msra.mxu0 0
    %1229 = vmatprep.mubr.bf16.mxu0 0
    %1230 = vmatmul.mubr.bf16.gmra.mrb[0].mxu0 %v1192
    %v1231 = vpop.f32.mrb[0].mxu0
    %v1232 = vadd.f32 0.0, %v1231
    %v1233 = vpop.f32.mrb[0].mxu0
    %v1234 = vpop.f32.mrb[0].mxu0
    %v1235 = vadd.f32 0.0, %v1234
    %v1236 = vpop.f32.mrb[0].mxu0
    %1237 = vdwg.mxu0
    %v1238 = vadd.f32 %v875, %v1232
    %v1239 = vadd.f32 %v878, %v1235
    %s1240 = scalar_lea.vmem %s3, 48
    %v1241 = vld [vmem:[%s1240] sm:$0xf]
    %v1242 = vld [vmem:[%s1240 + $0x4] sm:$0xf]
    %v1243 = vld [vmem:[%s1240 + $0x8] sm:$0xf]
    %v1244 = vld [vmem:[%s1240 + $0xc] sm:$0xf]
    %s1245 = scalar_lea.vmem %s4, 3
    %v1246 = vld [vmem:[%s1245] sm:$0x1]
    %v1248 = vlaneseq
    %v1249 = vshrl.u32 %v1248, 7
    %v1250 = vsub.s32 0, %v1249
    %v1251 = vrot.slane %v1246, %v1250
    %v1257 = vunpack.c.l.b16 %v1241
    %v1258 = vunpack.c.l.b16 %v1242
    %v1259 = vunpack.c.l.b16 %v1243
    %v1260 = vunpack.c.l.b16 %v1244
    %v1261 = vpack.c.b16 %v1258, %v1257
    %v1262 = vpack.c.b16 %v1260, %v1259
    %1265 = vmatprep.subr.bf16.mxu0 0
    %1266 = vmatpush1.bf16.msra.mxu0 %v1261
    %1267 = vmatprep.subr.bf16.mxu0 0
    %1268 = vmatpush1.bf16.msra.mxu0 %v1262
    %1269 = vmatprep.subr.bf16.mxu0 0
    %1270 = vmatpush1.bf16.msra.mxu0 0
    %1271 = vmatprep.subr.bf16.mxu0 0
    %1272 = vmatpush1.bf16.msra.mxu0 0
    %1273 = vmatprep.subr.bf16.mxu0 0
    %1274 = vmatpush1.bf16.msra.mxu0 0
    %1275 = vmatprep.subr.bf16.mxu0 0
    %1276 = vmatpush1.bf16.msra.mxu0 0
    %1277 = vmatprep.subr.bf16.mxu0 0
    %1278 = vmatpush1.bf16.msra.mxu0 0
    %1279 = vmatprep.subr.bf16.mxu0 0
    %1280 = vmatpush1.bf16.msra.mxu0 0
    %1281 = vmatprep.subr.bf16.mxu0 0
    %1282 = vmatpush1.bf16.msra.mxu0 0
    %1283 = vmatprep.subr.bf16.mxu0 0
    %1284 = vmatpush1.bf16.msra.mxu0 0
    %1285 = vmatprep.subr.bf16.mxu0 0
    %1286 = vmatpush1.bf16.msra.mxu0 0
    %1287 = vmatprep.subr.bf16.mxu0 0
    %1288 = vmatpush1.bf16.msra.mxu0 0
    %1289 = vmatprep.subr.bf16.mxu0 0
    %1290 = vmatpush1.bf16.msra.mxu0 0
    %1291 = vmatprep.subr.bf16.mxu0 0
    %1292 = vmatpush1.bf16.msra.mxu0 0
    %1293 = vmatprep.subr.bf16.mxu0 0
    %1294 = vmatpush1.bf16.msra.mxu0 0
    %1295 = vmatprep.subr.bf16.mxu0 0
    %1296 = vmatpush1.bf16.msra.mxu0 0
    %1297 = vmatprep.mubr.bf16.mxu0 0
    %1298 = vmatmul.mubr.bf16.gmra.mrb[0].mxu0 %v192
    %v1299 = vpop.f32.mrb[0].mxu0
    %v1300 = vadd.f32 %v1251, %v1299
    %v1301 = vpop.f32.mrb[0].mxu0
    %v1302 = vpop.f32.mrb[0].mxu0
    %v1303 = vadd.f32 %v1251, %v1302
    %v1304 = vpop.f32.mrb[0].mxu0
    %1305 = vdwg.mxu0
    %s1306 = scalar_lea.vmem %s5, 48
    %v1307 = vld [vmem:[%s1306] sm:$0xf]
    %v1308 = vld [vmem:[%s1306 + $0x4] sm:$0xf]
    %v1309 = vld [vmem:[%s1306 + $0x8] sm:$0xf]
    %v1310 = vld [vmem:[%s1306 + $0xc] sm:$0xf]
    %s1311 = scalar_lea.vmem %s6, 3
    %v1312 = vld [vmem:[%s1311] sm:$0x1]
    %v1314 = vlaneseq
    %v1315 = vshrl.u32 %v1314, 7
    %v1316 = vsub.s32 0, %v1315
    %v1317 = vrot.slane %v1312, %v1316
    %v1323 = vunpack.c.l.b16 %v1307
    %v1324 = vunpack.c.l.b16 %v1308
    %v1325 = vunpack.c.l.b16 %v1309
    %v1326 = vunpack.c.l.b16 %v1310
    %v1327 = vpack.c.b16 %v1324, %v1323
    %v1328 = vpack.c.b16 %v1326, %v1325
    %1331 = vmatprep.subr.bf16.mxu0 0
    %1332 = vmatpush1.bf16.msra.mxu0 %v1327
    %1333 = vmatprep.subr.bf16.mxu0 0
    %1334 = vmatpush1.bf16.msra.mxu0 %v1328
    %1335 = vmatprep.subr.bf16.mxu0 0
    %1336 = vmatpush1.bf16.msra.mxu0 0
    %1337 = vmatprep.subr.bf16.mxu0 0
    %1338 = vmatpush1.bf16.msra.mxu0 0
    %1339 = vmatprep.subr.bf16.mxu0 0
    %1340 = vmatpush1.bf16.msra.mxu0 0
    %1341 = vmatprep.subr.bf16.mxu0 0
    %1342 = vmatpush1.bf16.msra.mxu0 0
    %1343 = vmatprep.subr.bf16.mxu0 0
    %1344 = vmatpush1.bf16.msra.mxu0 0
    %1345 = vmatprep.subr.bf16.mxu0 0
    %1346 = vmatpush1.bf16.msra.mxu0 0
    %1347 = vmatprep.subr.bf16.mxu0 0
    %1348 = vmatpush1.bf16.msra.mxu0 0
    %1349 = vmatprep.subr.bf16.mxu0 0
    %1350 = vmatpush1.bf16.msra.mxu0 0
    %1351 = vmatprep.subr.bf16.mxu0 0
    %1352 = vmatpush1.bf16.msra.mxu0 0
    %1353 = vmatprep.subr.bf16.mxu0 0
    %1354 = vmatpush1.bf16.msra.mxu0 0
    %1355 = vmatprep.subr.bf16.mxu0 0
    %1356 = vmatpush1.bf16.msra.mxu0 0
    %1357 = vmatprep.subr.bf16.mxu0 0
    %1358 = vmatpush1.bf16.msra.mxu0 0
    %1359 = vmatprep.subr.bf16.mxu0 0
    %1360 = vmatpush1.bf16.msra.mxu0 0
    %1361 = vmatprep.subr.bf16.mxu0 0
    %1362 = vmatpush1.bf16.msra.mxu0 0
    %1363 = vmatprep.mubr.bf16.mxu0 0
    %1364 = vmatmul.mubr.bf16.gmra.mrb[0].mxu0 %v192
    %v1365 = vpop.f32.mrb[0].mxu0
    %v1366 = vadd.f32 %v1317, %v1365
    %v1367 = vpop.f32.mrb[0].mxu0
    %v1368 = vpop.f32.mrb[0].mxu0
    %v1369 = vadd.f32 %v1317, %v1368
    %v1370 = vpop.f32.mrb[0].mxu0
    %1371 = vdwg.mxu0
    %s1372 = scalar_lea.vmem %s7, 48
    %v1373 = vld [vmem:[%s1372] sm:$0xf]
    %v1374 = vld [vmem:[%s1372 + $0x4] sm:$0xf]
    %v1375 = vld [vmem:[%s1372 + $0x8] sm:$0xf]
    %v1376 = vld [vmem:[%s1372 + $0xc] sm:$0xf]
    %s1377 = scalar_lea.vmem %s8, 3
    %v1378 = vld [vmem:[%s1377] sm:$0x1]
    %v1380 = vlaneseq
    %v1381 = vshrl.u32 %v1380, 7
    %v1382 = vsub.s32 0, %v1381
    %v1383 = vrot.slane %v1378, %v1382
    %v1389 = vunpack.c.l.b16 %v1373
    %v1390 = vunpack.c.l.b16 %v1374
    %v1391 = vunpack.c.l.b16 %v1375
    %v1392 = vunpack.c.l.b16 %v1376
    %v1393 = vpack.c.b16 %v1390, %v1389
    %v1394 = vpack.c.b16 %v1392, %v1391
    %1397 = vmatprep.subr.bf16.mxu0 0
    %1398 = vmatpush1.bf16.msra.mxu0 %v1393
    %1399 = vmatprep.subr.bf16.mxu0 0
    %1400 = vmatpush1.bf16.msra.mxu0 %v1394
    %1401 = vmatprep.subr.bf16.mxu0 0
    %1402 = vmatpush1.bf16.msra.mxu0 0
    %1403 = vmatprep.subr.bf16.mxu0 0
    %1404 = vmatpush1.bf16.msra.mxu0 0
    %1405 = vmatprep.subr.bf16.mxu0 0
    %1406 = vmatpush1.bf16.msra.mxu0 0
    %1407 = vmatprep.subr.bf16.mxu0 0
    %1408 = vmatpush1.bf16.msra.mxu0 0
    %1409 = vmatprep.subr.bf16.mxu0 0
    %1410 = vmatpush1.bf16.msra.mxu0 0
    %1411 = vmatprep.subr.bf16.mxu0 0
    %1412 = vmatpush1.bf16.msra.mxu0 0
    %1413 = vmatprep.subr.bf16.mxu0 0
    %1414 = vmatpush1.bf16.msra.mxu0 0
    %1415 = vmatprep.subr.bf16.mxu0 0
    %1416 = vmatpush1.bf16.msra.mxu0 0
    %1417 = vmatprep.subr.bf16.mxu0 0
    %1418 = vmatpush1.bf16.msra.mxu0 0
    %1419 = vmatprep.subr.bf16.mxu0 0
    %1420 = vmatpush1.bf16.msra.mxu0 0
    %1421 = vmatprep.subr.bf16.mxu0 0
    %1422 = vmatpush1.bf16.msra.mxu0 0
    %1423 = vmatprep.subr.bf16.mxu0 0
    %1424 = vmatpush1.bf16.msra.mxu0 0
    %1425 = vmatprep.subr.bf16.mxu0 0
    %1426 = vmatpush1.bf16.msra.mxu0 0
    %1427 = vmatprep.subr.bf16.mxu0 0
    %1428 = vmatpush1.bf16.msra.mxu0 0
    %1429 = vmatprep.mubr.bf16.mxu0 0
    %1430 = vmatmul.mubr.bf16.gmra.mrb[0].mxu0 %v192
    %v1431 = vpop.f32.mrb[0].mxu0
    %v1432 = vadd.f32 %v1383, %v1431
    %v1433 = vpop.f32.mrb[0].mxu0
    %v1434 = vpop.f32.mrb[0].mxu0
    %v1435 = vadd.f32 %v1383, %v1434
    %v1436 = vpop.f32.mrb[0].mxu0
    %1437 = vdwg.mxu0
    %v1438 = vpack.c.bf16 %v1303, %v1300
    %v1439 = vpack.c.bf16 %v1369, %v1366
    %v1441 = vsel %vm365, %v1438, 0
    %v1444 = vsel %vm365, %v1439, 0
    %1446 = vmatprep.subr.bf16.mxu0 0
    %1447 = vmatpush1.bf16.xpose.msra.mxu0 %v1444
    %1448 = vmatprep.subr.bf16.mxu0 0
    %1449 = vmatpush1.bf16.xpose.msra.mxu0 0
    %1450 = vmatprep.subr.bf16.mxu0 0
    %1451 = vmatpush1.bf16.xpose.msra.mxu0 0
    %1452 = vmatprep.subr.bf16.mxu0 0
    %1453 = vmatpush1.bf16.xpose.msra.mxu0 0
    %1454 = vmatprep.subr.bf16.mxu0 0
    %1455 = vmatpush1.bf16.xpose.msra.mxu0 0
    %1456 = vmatprep.subr.bf16.mxu0 0
    %1457 = vmatpush1.bf16.xpose.msra.mxu0 0
    %1458 = vmatprep.subr.bf16.mxu0 0
    %1459 = vmatpush1.bf16.xpose.msra.mxu0 0
    %1460 = vmatprep.subr.bf16.mxu0 0
    %1461 = vmatpush1.bf16.xpose.msra.mxu0 0
    %1462 = vmatprep.subr.bf16.mxu0 0
    %1463 = vmatpush1.bf16.xpose.msra.mxu0 0
    %1464 = vmatprep.subr.bf16.mxu0 0
    %1465 = vmatpush1.bf16.xpose.msra.mxu0 0
    %1466 = vmatprep.subr.bf16.mxu0 0
    %1467 = vmatpush1.bf16.xpose.msra.mxu0 0
    %1468 = vmatprep.subr.bf16.mxu0 0
    %1469 = vmatpush1.bf16.xpose.msra.mxu0 0
    %1470 = vmatprep.subr.bf16.mxu0 0
    %1471 = vmatpush1.bf16.xpose.msra.mxu0 0
    %1472 = vmatprep.subr.bf16.mxu0 0
    %1473 = vmatpush1.bf16.xpose.msra.mxu0 0
    %1474 = vmatprep.subr.bf16.mxu0 0
    %1475 = vmatpush1.bf16.xpose.msra.mxu0 0
    %1476 = vmatprep.subr.bf16.mxu0 0
    %1477 = vmatpush1.bf16.xpose.msra.mxu0 0
    %1478 = vmatprep.mubr.bf16.mxu0 0
    %1479 = vmatmul.mubr.bf16.gmra.mrb[0].mxu0 %v1441
    %v1480 = vpop.f32.mrb[0].mxu0
    %v1481 = vadd.f32 %v164, %v1480
    %v1482 = vpop.f32.mrb[0].mxu0
    %v1483 = vpop.f32.mrb[0].mxu0
    %v1484 = vadd.f32 %v165, %v1483
    %v1485 = vpop.f32.mrb[0].mxu0
    %1486 = vdwg.mxu0
    %v1487 = vmul.f32 %v1481, 1.442695
    %v1488 = vpow.pop %v1487
    %v1489 = vmul.f32 %v1484, 1.442695
    %v1490 = vpow.pop %v1489
    %v1491 = vsel %vm417, %v1488, 0.0
    %1492 = vadd.xlane.f32.xlu0 %v1491
    %v1493 = vpop.xlane.xlu0 %1492
    %v1494 = vsel %vm417, %v1490, 0.0
    %1495 = vadd.xlane.f32.xlu0 %v1494
    %v1496 = vpop.xlane.xlu0 %1495
    %v1497 = vrcp.pop %v1493
    %v1498 = vrcp.pop %v1496
    %v1499 = vmul.f32 %v1488, %v1497
    %v1500 = vmul.f32 %v1490, %v1498
    %v1501 = vpack.c.bf16 %v1500, %v1499
    %v1502 = vpack.c.bf16 %v1435, %v1432
    %v1504 = vsel %vm417, %v1501, 0
    %1506 = vmatprep.subr.bf16.mxu0 0
    %1507 = vmatpush1.bf16.msra.mxu0 %v1502
    %1508 = vmatprep.subr.bf16.mxu0 0
    %1509 = vmatpush1.bf16.msra.mxu0 0
    %1510 = vmatprep.subr.bf16.mxu0 0
    %1511 = vmatpush1.bf16.msra.mxu0 0
    %1512 = vmatprep.subr.bf16.mxu0 0
    %1513 = vmatpush1.bf16.msra.mxu0 0
    %1514 = vmatprep.subr.bf16.mxu0 0
    %1515 = vmatpush1.bf16.msra.mxu0 0
    %1516 = vmatprep.subr.bf16.mxu0 0
    %1517 = vmatpush1.bf16.msra.mxu0 0
    %1518 = vmatprep.subr.bf16.mxu0 0
    %1519 = vmatpush1.bf16.msra.mxu0 0
    %1520 = vmatprep.subr.bf16.mxu0 0
    %1521 = vmatpush1.bf16.msra.mxu0 0
    %1522 = vmatprep.subr.bf16.mxu0 0
    %1523 = vmatpush1.bf16.msra.mxu0 0
    %1524 = vmatprep.subr.bf16.mxu0 0
    %1525 = vmatpush1.bf16.msra.mxu0 0
    %1526 = vmatprep.subr.bf16.mxu0 0
    %1527 = vmatpush1.bf16.msra.mxu0 0
    %1528 = vmatprep.subr.bf16.mxu0 0
    %1529 = vmatpush1.bf16.msra.mxu0 0
    %1530 = vmatprep.subr.bf16.mxu0 0
    %1531 = vmatpush1.bf16.msra.mxu0 0
    %1532 = vmatprep.subr.bf16.mxu0 0
    %1533 = vmatpush1.bf16.msra.mxu0 0
    %1534 = vmatprep.subr.bf16.mxu0 0
    %1535 = vmatpush1.bf16.msra.mxu0 0
    %1536 = vmatprep.subr.bf16.mxu0 0
    %1537 = vmatpush1.bf16.msra.mxu0 0
    %1538 = vmatprep.mubr.bf16.mxu0 0
    %1539 = vmatmul.mubr.bf16.gmra.mrb[0].mxu0 %v1504
    %v1540 = vpop.f32.mrb[0].mxu0
    %v1541 = vadd.f32 0.0, %v1540
    %v1542 = vpop.f32.mrb[0].mxu0
    %v1543 = vpop.f32.mrb[0].mxu0
    %v1544 = vadd.f32 0.0, %v1543
    %v1545 = vpop.f32.mrb[0].mxu0
    %1546 = vdwg.mxu0
    %v1547 = vpack.c.bf16 %v1544, %v1541
    %s1548 = scalar_lea.vmem %s9, 12
    %v1549 = vld [vmem:[%s1548] sm:$0xf]
    %v1551 = vsel %vm365, %v1547, 0
    %v1554 = vsel %vm789, %v1549, 0
    %1556 = vmatprep.subr.bf16.mxu0 0
    %1557 = vmatpush1.bf16.msra.mxu0 %v1554
    %1558 = vmatprep.subr.bf16.mxu0 0
    %1559 = vmatpush1.bf16.msra.mxu0 0
    %1560 = vmatprep.subr.bf16.mxu0 0
    %1561 = vmatpush1.bf16.msra.mxu0 0
    %1562 = vmatprep.subr.bf16.mxu0 0
    %1563 = vmatpush1.bf16.msra.mxu0 0
    %1564 = vmatprep.subr.bf16.mxu0 0
    %1565 = vmatpush1.bf16.msra.mxu0 0
    %1566 = vmatprep.subr.bf16.mxu0 0
    %1567 = vmatpush1.bf16.msra.mxu0 0
    %1568 = vmatprep.subr.bf16.mxu0 0
    %1569 = vmatpush1.bf16.msra.mxu0 0
    %1570 = vmatprep.subr.bf16.mxu0 0
    %1571 = vmatpush1.bf16.msra.mxu0 0
    %1572 = vmatprep.subr.bf16.mxu0 0
    %1573 = vmatpush1.bf16.msra.mxu0 0
    %1574 = vmatprep.subr.bf16.mxu0 0
    %1575 = vmatpush1.bf16.msra.mxu0 0
    %1576 = vmatprep.subr.bf16.mxu0 0
    %1577 = vmatpush1.bf16.msra.mxu0 0
    %1578 = vmatprep.subr.bf16.mxu0 0
    %1579 = vmatpush1.bf16.msra.mxu0 0
    %1580 = vmatprep.subr.bf16.mxu0 0
    %1581 = vmatpush1.bf16.msra.mxu0 0
    %1582 = vmatprep.subr.bf16.mxu0 0
    %1583 = vmatpush1.bf16.msra.mxu0 0
    %1584 = vmatprep.subr.bf16.mxu0 0
    %1585 = vmatpush1.bf16.msra.mxu0 0
    %1586 = vmatprep.subr.bf16.mxu0 0
    %1587 = vmatpush1.bf16.msra.mxu0 0
    %1588 = vmatprep.mubr.bf16.mxu0 0
    %1589 = vmatmul.mubr.bf16.gmra.mrb[0].mxu0 %v1551
    %v1590 = vpop.f32.mrb[0].mxu0
    %v1591 = vadd.f32 0.0, %v1590
    %v1592 = vpop.f32.mrb[0].mxu0
    %v1593 = vpop.f32.mrb[0].mxu0
    %v1594 = vadd.f32 0.0, %v1593
    %v1595 = vpop.f32.mrb[0].mxu0
    %1596 = vdwg.mxu0
    %v1597 = vadd.f32 %v1238, %v1591
    %v1598 = vadd.f32 %v1239, %v1594
    %v1599 = vld [vmem:[%s10] sm:$0x1]
    %v1601 = vlaneseq
    %v1602 = vshrl.u32 %v1601, 7
    %v1603 = vsub.s32 0, %v1602
    %v1604 = vrot.slane %v1599, %v1603
    %v1606 = vadd.f32 %v1597, %v1604
    %v1607 = vadd.f32 %v1598, %v1604
    %v1608 = vadd.f32 %v158, %v1606
    %v1609 = vadd.f32 %v161, %v1607
    %v1610 = vld [vmem:[%s11] sm:$0x1]
    %v1611 = vld [vmem:[%s12] sm:$0x1]
    %v1612 = vsel %vm190, %v1608, 0.0
    %1613 = vadd.xlane.f32.xlu0 %v1612
    %v1614 = vpop.xlane.xlu0 %1613
    %v1615 = vsel %vm190, %v1609, 0.0
    %1616 = vadd.xlane.f32.xlu0 %v1615
    %v1617 = vpop.xlane.xlu0 %1616
    %v1618 = vrcp.pop 32.0
    %v1619 = vmul.f32 %v1614, %v1618
    %v1620 = vmul.f32 %v1617, %v1618
    %v1621 = vsub.f32 %v1608, %v1619
    %v1622 = vsub.f32 %v1609, %v1620
    %v1623 = vmul.f32 %v1621, %v1621
    %v1624 = vmul.f32 %v1622, %v1622
    %v1625 = vsel %vm190, %v1623, 0.0
    %1626 = vadd.xlane.f32.xlu0 %v1625
    %v1627 = vpop.xlane.xlu0 %1626
    %v1628 = vsel %vm190, %v1624, 0.0
    %1629 = vadd.xlane.f32.xlu0 %v1628
    %v1630 = vpop.xlane.xlu0 %1629
    %v1631 = vmul.f32 %v1627, %v1618
    %v1632 = vmul.f32 %v1630, %v1618
    %v1633 = vadd.f32 %v1631, 1e-05
    %v1634 = vadd.f32 %v1632, 1e-05
    %v1635 = vrsqrt.pop %v1633
    %v1636 = vrsqrt.pop %v1634
    %v1637 = vmul.f32 %v1621, %v1635
    %v1638 = vmul.f32 %v1622, %v1636
    %v1640 = vlaneseq
    %v1641 = vshrl.u32 %v1640, 7
    %v1642 = vsub.s32 0, %v1641
    %v1643 = vrot.slane %v1610, %v1642
    %v1645 = vmul.f32 %v1637, %v1643
    %v1646 = vmul.f32 %v1638, %v1643
    %v1648 = vlaneseq
    %v1649 = vshrl.u32 %v1648, 7
    %v1650 = vsub.s32 0, %v1649
    %v1651 = vrot.slane %v1611, %v1650
    %v1653 = vadd.f32 %v1645, %v1651
    %v1654 = vadd.f32 %v1646, %v1651
    %v1655 = vpack.c.bf16 %v1654, %v1653
    %v1656 = vld [vmem:[%s13] sm:$0xf]
    %v1657 = vld [vmem:[%s13 + $0x4] sm:$0xf]
    %v1658 = vld [vmem:[%s13 + $0x8] sm:$0xf]
    %v1659 = vld [vmem:[%s13 + $0xc] sm:$0xf]
    %v1660 = vld [vmem:[%s14] sm:$0x1]
    %v1662 = vlaneseq
    %v1663 = vshrl.u32 %v1662, 7
    %v1664 = vsub.s32 0, %v1663
    %v1665 = vrot.slane %v1660, %v1664
    %v1671 = vunpack.c.l.b16 %v1656
    %v1672 = vunpack.c.l.b16 %v1657
    %v1673 = vunpack.c.l.b16 %v1658
    %v1674 = vunpack.c.l.b16 %v1659
    %v1675 = vpack.c.b16 %v1672, %v1671
    %v1676 = vpack.c.b16 %v1674, %v1673
    %v1680 = vsel %vm190, %v1655, 0
    %1682 = vmatprep.subr.bf16.mxu0 0
    %1683 = vmatpush1.bf16.msra.mxu0 %v1675
    %1684 = vmatprep.subr.bf16.mxu0 0
    %1685 = vmatpush1.bf16.msra.mxu0 %v1676
    %1686 = vmatprep.subr.bf16.mxu0 0
    %1687 = vmatpush1.bf16.msra.mxu0 0
    %1688 = vmatprep.subr.bf16.mxu0 0
    %1689 = vmatpush1.bf16.msra.mxu0 0
    %1690 = vmatprep.subr.bf16.mxu0 0
    %1691 = vmatpush1.bf16.msra.mxu0 0
    %1692 = vmatprep.subr.bf16.mxu0 0
    %1693 = vmatpush1.bf16.msra.mxu0 0
    %1694 = vmatprep.subr.bf16.mxu0 0
    %1695 = vmatpush1.bf16.msra.mxu0 0
    %1696 = vmatprep.subr.bf16.mxu0 0
    %1697 = vmatpush1.bf16.msra.mxu0 0
    %1698 = vmatprep.subr.bf16.mxu0 0
    %1699 = vmatpush1.bf16.msra.mxu0 0
    %1700 = vmatprep.subr.bf16.mxu0 0
    %1701 = vmatpush1.bf16.msra.mxu0 0
    %1702 = vmatprep.subr.bf16.mxu0 0
    %1703 = vmatpush1.bf16.msra.mxu0 0
    %1704 = vmatprep.subr.bf16.mxu0 0
    %1705 = vmatpush1.bf16.msra.mxu0 0
    %1706 = vmatprep.subr.bf16.mxu0 0
    %1707 = vmatpush1.bf16.msra.mxu0 0
    %1708 = vmatprep.subr.bf16.mxu0 0
    %1709 = vmatpush1.bf16.msra.mxu0 0
    %1710 = vmatprep.subr.bf16.mxu0 0
    %1711 = vmatpush1.bf16.msra.mxu0 0
    %1712 = vmatprep.subr.bf16.mxu0 0
    %1713 = vmatpush1.bf16.msra.mxu0 0
    %1714 = vmatprep.mubr.bf16.mxu0 0
    %1715 = vmatmul.mubr.bf16.gmra.mrb[0].mxu0 %v1680
    %v1716 = vpop.f32.mrb[0].mxu0
    %v1717 = vadd.f32 %v1665, %v1716
    %v1718 = vpop.f32.mrb[0].mxu0
    %v1719 = vpop.f32.mrb[0].mxu0
    %v1720 = vadd.f32 %v1665, %v1719
    %v1721 = vpop.f32.mrb[0].mxu0
    %1722 = vdwg.mxu0
    %v1723 = vmul.f32 %v1717, 0.5
    %v1724 = vmul.f32 %v1720, 0.5
    %v1725 = vmul.f32 %v1717, 0.044715
    %v1726 = vmul.f32 %v1720, 0.044715
    %v1727 = vmul.f32 %v1725, %v1717
    %v1728 = vmul.f32 %v1726, %v1720
    %v1729 = vmul.f32 %v1727, %v1717
    %v1730 = vmul.f32 %v1728, %v1720
    %v1731 = vadd.f32 %v1717, %v1729
    %v1732 = vadd.f32 %v1720, %v1730
    %v1733 = vmul.f32 %v1731, 0.7978846
    %v1734 = vmul.f32 %v1732, 0.7978846
    %v1735 = vtanh.pop %v1733
    %v1736 = vtanh.pop %v1734
    %v1737 = vadd.f32 %v1735, 1.0
    %v1738 = vadd.f32 %v1736, 1.0
    %v1739 = vmul.f32 %v1723, %v1737
    %v1740 = vmul.f32 %v1724, %v1738
    %v1741 = vpack.c.bf16 %v1740, %v1739
    %v1742 = vld [vmem:[%s15] sm:$0xf]
    %v1743 = vld [vmem:[%s15 + $0x4] sm:$0xf]
    %v1744 = vld [vmem:[%s15 + $0x8] sm:$0xf]
    %v1745 = vld [vmem:[%s15 + $0xc] sm:$0xf]
    %v1746 = vld [vmem:[%s15 + $0x10] sm:$0xf]
    %v1747 = vld [vmem:[%s15 + $0x14] sm:$0xf]
    %v1748 = vld [vmem:[%s15 + $0x18] sm:$0xf]
    %v1749 = vld [vmem:[%s15 + $0x1c] sm:$0xf]
    %v1750 = vld [vmem:[%s15 + $0x20] sm:$0xf]
    %v1751 = vld [vmem:[%s15 + $0x24] sm:$0xf]
    %v1752 = vld [vmem:[%s15 + $0x28] sm:$0xf]
    %v1753 = vld [vmem:[%s15 + $0x2c] sm:$0xf]
    %v1754 = vld [vmem:[%s15 + $0x30] sm:$0xf]
    %v1755 = vld [vmem:[%s15 + $0x34] sm:$0xf]
    %v1756 = vld [vmem:[%s15 + $0x38] sm:$0xf]
    %v1757 = vld [vmem:[%s15 + $0x3c] sm:$0xf]
    %v1758 = vld [vmem:[%s16] sm:$0x1]
    %v1760 = vlaneseq
    %v1761 = vshrl.u32 %v1760, 7
    %v1762 = vsub.s32 0, %v1761
    %v1763 = vrot.slane %v1758, %v1762
    %v1781 = vunpack.c.l.b16 %v1742
    %v1782 = vunpack.c.l.b16 %v1743
    %v1783 = vunpack.c.l.b16 %v1744
    %v1784 = vunpack.c.l.b16 %v1745
    %v1785 = vunpack.c.l.b16 %v1746
    %v1786 = vunpack.c.l.b16 %v1747
    %v1787 = vunpack.c.l.b16 %v1748
    %v1788 = vunpack.c.l.b16 %v1749
    %v1789 = vunpack.c.l.b16 %v1750
    %v1790 = vunpack.c.l.b16 %v1751
    %v1791 = vunpack.c.l.b16 %v1752
    %v1792 = vunpack.c.l.b16 %v1753
    %v1793 = vunpack.c.l.b16 %v1754
    %v1794 = vunpack.c.l.b16 %v1755
    %v1795 = vunpack.c.l.b16 %v1756
    %v1796 = vunpack.c.l.b16 %v1757
    %v1797 = vpack.c.b16 %v1782, %v1781
    %v1798 = vpack.c.b16 %v1784, %v1783
    %v1799 = vpack.c.b16 %v1786, %v1785
    %v1800 = vpack.c.b16 %v1788, %v1787
    %v1801 = vpack.c.b16 %v1790, %v1789
    %v1802 = vpack.c.b16 %v1792, %v1791
    %v1803 = vpack.c.b16 %v1794, %v1793
    %v1804 = vpack.c.b16 %v1796, %v1795
    %1813 = vmatprep.subr.bf16.mxu0 0
    %1814 = vmatpush1.bf16.msra.mxu0 %v1797
    %1815 = vmatprep.subr.bf16.mxu0 0
    %1816 = vmatpush1.bf16.msra.mxu0 %v1798
    %1817 = vmatprep.subr.bf16.mxu0 0
    %1818 = vmatpush1.bf16.msra.mxu0 %v1799
    %1819 = vmatprep.subr.bf16.mxu0 0
    %1820 = vmatpush1.bf16.msra.mxu0 %v1800
    %1821 = vmatprep.subr.bf16.mxu0 0
    %1822 = vmatpush1.bf16.msra.mxu0 %v1801
    %1823 = vmatprep.subr.bf16.mxu0 0
    %1824 = vmatpush1.bf16.msra.mxu0 %v1802
    %1825 = vmatprep.subr.bf16.mxu0 0
    %1826 = vmatpush1.bf16.msra.mxu0 %v1803
    %1827 = vmatprep.subr.bf16.mxu0 0
    %1828 = vmatpush1.bf16.msra.mxu0 %v1804
    %1829 = vmatprep.subr.bf16.mxu0 0
    %1830 = vmatpush1.bf16.msra.mxu0 0
    %1831 = vmatprep.subr.bf16.mxu0 0
    %1832 = vmatpush1.bf16.msra.mxu0 0
    %1833 = vmatprep.subr.bf16.mxu0 0
    %1834 = vmatpush1.bf16.msra.mxu0 0
    %1835 = vmatprep.subr.bf16.mxu0 0
    %1836 = vmatpush1.bf16.msra.mxu0 0
    %1837 = vmatprep.subr.bf16.mxu0 0
    %1838 = vmatpush1.bf16.msra.mxu0 0
    %1839 = vmatprep.subr.bf16.mxu0 0
    %1840 = vmatpush1.bf16.msra.mxu0 0
    %1841 = vmatprep.subr.bf16.mxu0 0
    %1842 = vmatpush1.bf16.msra.mxu0 0
    %1843 = vmatprep.subr.bf16.mxu0 0
    %1844 = vmatpush1.bf16.msra.mxu0 0
    %1845 = vmatprep.mubr.bf16.mxu0 0
    %1846 = vmatmul.mubr.bf16.gmra.mrb[0].mxu0 %v1741
    %v1847 = vpop.f32.mrb[0].mxu0
    %v1848 = vadd.f32 %v1763, %v1847
    %v1849 = vpop.f32.mrb[0].mxu0
    %v1850 = vpop.f32.mrb[0].mxu0
    %v1851 = vadd.f32 %v1763, %v1850
    %v1852 = vpop.f32.mrb[0].mxu0
    %1853 = vdwg.mxu0
    %v1854 = vadd.f32 %v1653, %v1848
    %v1855 = vadd.f32 %v1654, %v1851
    %v1856 = vld [vmem:[%s17] sm:$0x1]
    %v1857 = vld [vmem:[%s18] sm:$0x1]
    %v1858 = vsel %vm190, %v1854, 0.0
    %1859 = vadd.xlane.f32.xlu0 %v1858
    %v1860 = vpop.xlane.xlu0 %1859
    %v1861 = vsel %vm190, %v1855, 0.0
    %1862 = vadd.xlane.f32.xlu0 %v1861
    %v1863 = vpop.xlane.xlu0 %1862
    %v1864 = vmul.f32 %v1860, %v1618
    %v1865 = vmul.f32 %v1863, %v1618
    %v1866 = vsub.f32 %v1854, %v1864
    %v1867 = vsub.f32 %v1855, %v1865
    %v1868 = vmul.f32 %v1866, %v1866
    %v1869 = vmul.f32 %v1867, %v1867
    %v1870 = vsel %vm190, %v1868, 0.0
    %1871 = vadd.xlane.f32.xlu0 %v1870
    %v1872 = vpop.xlane.xlu0 %1871
    %v1873 = vsel %vm190, %v1869, 0.0
    %1874 = vadd.xlane.f32.xlu0 %v1873
    %v1875 = vpop.xlane.xlu0 %1874
    %v1876 = vmul.f32 %v1872, %v1618
    %v1877 = vmul.f32 %v1875, %v1618
    %v1878 = vadd.f32 %v1876, 1e-05
    %v1879 = vadd.f32 %v1877, 1e-05
    %v1880 = vrsqrt.pop %v1878
    %v1881 = vrsqrt.pop %v1879
    %v1882 = vmul.f32 %v1866, %v1880
    %v1883 = vmul.f32 %v1867, %v1881
    %v1885 = vlaneseq
    %v1886 = vshrl.u32 %v1885, 7
    %v1887 = vsub.s32 0, %v1886
    %v1888 = vrot.slane %v1856, %v1887
    %v1890 = vmul.f32 %v1882, %v1888
    %v1891 = vmul.f32 %v1883, %v1888
    %v1893 = vlaneseq
    %v1894 = vshrl.u32 %v1893, 7
    %v1895 = vsub.s32 0, %v1894
    %v1896 = vrot.slane %v1857, %v1895
    %v1898 = vadd.f32 %v1890, %v1896
    %v1899 = vadd.f32 %v1891, %v1896
    %v1900 = vpack.c.bf16 %v1899, %v1898
    %s1901 = scalar_lea.vmem %s3, 64
    %v1902 = vld [vmem:[%s1901] sm:$0xf]
    %v1903 = vld [vmem:[%s1901 + $0x4] sm:$0xf]
    %v1904 = vld [vmem:[%s1901 + $0x8] sm:$0xf]
    %v1905 = vld [vmem:[%s1901 + $0xc] sm:$0xf]
    %s1906 = scalar_lea.vmem %s4, 4
    %v1907 = vld [vmem:[%s1906] sm:$0x1]
    %v1909 = vlaneseq
    %v1910 = vshrl.u32 %v1909, 7
    %v1911 = vsub.s32 0, %v1910
    %v1912 = vrot.slane %v1907, %v1911
    %v1918 = vunpack.c.l.b16 %v1902
    %v1919 = vunpack.c.l.b16 %v1903
    %v1920 = vunpack.c.l.b16 %v1904
    %v1921 = vunpack.c.l.b16 %v1905
    %v1922 = vpack.c.b16 %v1919, %v1918
    %v1923 = vpack.c.b16 %v1921, %v1920
    %v1927 = vsel %vm190, %v1900, 0
    %1929 = vmatprep.subr.bf16.mxu0 0
    %1930 = vmatpush1.bf16.msra.mxu0 %v1922
    %1931 = vmatprep.subr.bf16.mxu0 0
    %1932 = vmatpush1.bf16.msra.mxu0 %v1923
    %1933 = vmatprep.subr.bf16.mxu0 0
    %1934 = vmatpush1.bf16.msra.mxu0 0
    %1935 = vmatprep.subr.bf16.mxu0 0
    %1936 = vmatpush1.bf16.msra.mxu0 0
    %1937 = vmatprep.subr.bf16.mxu0 0
    %1938 = vmatpush1.bf16.msra.mxu0 0
    %1939 = vmatprep.subr.bf16.mxu0 0
    %1940 = vmatpush1.bf16.msra.mxu0 0
    %1941 = vmatprep.subr.bf16.mxu0 0
    %1942 = vmatpush1.bf16.msra.mxu0 0
    %1943 = vmatprep.subr.bf16.mxu0 0
    %1944 = vmatpush1.bf16.msra.mxu0 0
    %1945 = vmatprep.subr.bf16.mxu0 0
    %1946 = vmatpush1.bf16.msra.mxu0 0
    %1947 = vmatprep.subr.bf16.mxu0 0
    %1948 = vmatpush1.bf16.msra.mxu0 0
    %1949 = vmatprep.subr.bf16.mxu0 0
    %1950 = vmatpush1.bf16.msra.mxu0 0
    %1951 = vmatprep.subr.bf16.mxu0 0
    %1952 = vmatpush1.bf16.msra.mxu0 0
    %1953 = vmatprep.subr.bf16.mxu0 0
    %1954 = vmatpush1.bf16.msra.mxu0 0
    %1955 = vmatprep.subr.bf16.mxu0 0
    %1956 = vmatpush1.bf16.msra.mxu0 0
    %1957 = vmatprep.subr.bf16.mxu0 0
    %1958 = vmatpush1.bf16.msra.mxu0 0
    %1959 = vmatprep.subr.bf16.mxu0 0
    %1960 = vmatpush1.bf16.msra.mxu0 0
    %1961 = vmatprep.mubr.bf16.mxu0 0
    %1962 = vmatmul.mubr.bf16.gmra.mrb[0].mxu0 %v1927
    %v1963 = vpop.f32.mrb[0].mxu0
    %v1964 = vadd.f32 %v1912, %v1963
    %v1965 = vpop.f32.mrb[0].mxu0
    %v1966 = vpop.f32.mrb[0].mxu0
    %v1967 = vadd.f32 %v1912, %v1966
    %v1968 = vpop.f32.mrb[0].mxu0
    %1969 = vdwg.mxu0
    %s1970 = scalar_lea.vmem %s5, 64
    %v1971 = vld [vmem:[%s1970] sm:$0xf]
    %v1972 = vld [vmem:[%s1970 + $0x4] sm:$0xf]
    %v1973 = vld [vmem:[%s1970 + $0x8] sm:$0xf]
    %v1974 = vld [vmem:[%s1970 + $0xc] sm:$0xf]
    %s1975 = scalar_lea.vmem %s6, 4
    %v1976 = vld [vmem:[%s1975] sm:$0x1]
    %v1978 = vlaneseq
    %v1979 = vshrl.u32 %v1978, 7
    %v1980 = vsub.s32 0, %v1979
    %v1981 = vrot.slane %v1976, %v1980
    %v1987 = vunpack.c.l.b16 %v1971
    %v1988 = vunpack.c.l.b16 %v1972
    %v1989 = vunpack.c.l.b16 %v1973
    %v1990 = vunpack.c.l.b16 %v1974
    %v1991 = vpack.c.b16 %v1988, %v1987
    %v1992 = vpack.c.b16 %v1990, %v1989
    %1995 = vmatprep.subr.bf16.mxu0 0
    %1996 = vmatpush1.bf16.msra.mxu0 %v1991
    %1997 = vmatprep.subr.bf16.mxu0 0
    %1998 = vmatpush1.bf16.msra.mxu0 %v1992
    %1999 = vmatprep.subr.bf16.mxu0 0
    %2000 = vmatpush1.bf16.msra.mxu0 0
    %2001 = vmatprep.subr.bf16.mxu0 0
    %2002 = vmatpush1.bf16.msra.mxu0 0
    %2003 = vmatprep.subr.bf16.mxu0 0
    %2004 = vmatpush1.bf16.msra.mxu0 0
    %2005 = vmatprep.subr.bf16.mxu0 0
    %2006 = vmatpush1.bf16.msra.mxu0 0
    %2007 = vmatprep.subr.bf16.mxu0 0
    %2008 = vmatpush1.bf16.msra.mxu0 0
    %2009 = vmatprep.subr.bf16.mxu0 0
    %2010 = vmatpush1.bf16.msra.mxu0 0
    %2011 = vmatprep.subr.bf16.mxu0 0
    %2012 = vmatpush1.bf16.msra.mxu0 0
    %2013 = vmatprep.subr.bf16.mxu0 0
    %2014 = vmatpush1.bf16.msra.mxu0 0
    %2015 = vmatprep.subr.bf16.mxu0 0
    %2016 = vmatpush1.bf16.msra.mxu0 0
    %2017 = vmatprep.subr.bf16.mxu0 0
    %2018 = vmatpush1.bf16.msra.mxu0 0
    %2019 = vmatprep.subr.bf16.mxu0 0
    %2020 = vmatpush1.bf16.msra.mxu0 0
    %2021 = vmatprep.subr.bf16.mxu0 0
    %2022 = vmatpush1.bf16.msra.mxu0 0
    %2023 = vmatprep.subr.bf16.mxu0 0
    %2024 = vmatpush1.bf16.msra.mxu0 0
    %2025 = vmatprep.subr.bf16.mxu0 0
    %2026 = vmatpush1.bf16.msra.mxu0 0
    %2027 = vmatprep.mubr.bf16.mxu0 0
    %2028 = vmatmul.mubr.bf16.gmra.mrb[0].mxu0 %v1927
    %v2029 = vpop.f32.mrb[0].mxu0
    %v2030 = vadd.f32 %v1981, %v2029
    %v2031 = vpop.f32.mrb[0].mxu0
    %v2032 = vpop.f32.mrb[0].mxu0
    %v2033 = vadd.f32 %v1981, %v2032
    %v2034 = vpop.f32.mrb[0].mxu0
    %2035 = vdwg.mxu0
    %s2036 = scalar_lea.vmem %s7, 64
    %v2037 = vld [vmem:[%s2036] sm:$0xf]
    %v2038 = vld [vmem:[%s2036 + $0x4] sm:$0xf]
    %v2039 = vld [vmem:[%s2036 + $0x8] sm:$0xf]
    %v2040 = vld [vmem:[%s2036 + $0xc] sm:$0xf]
    %s2041 = scalar_lea.vmem %s8, 4
    %v2042 = vld [vmem:[%s2041] sm:$0x1]
    %v2044 = vlaneseq
    %v2045 = vshrl.u32 %v2044, 7
    %v2046 = vsub.s32 0, %v2045
    %v2047 = vrot.slane %v2042, %v2046
    %v2053 = vunpack.c.l.b16 %v2037
    %v2054 = vunpack.c.l.b16 %v2038
    %v2055 = vunpack.c.l.b16 %v2039
    %v2056 = vunpack.c.l.b16 %v2040
    %v2057 = vpack.c.b16 %v2054, %v2053
    %v2058 = vpack.c.b16 %v2056, %v2055
    %2061 = vmatprep.subr.bf16.mxu0 0
    %2062 = vmatpush1.bf16.msra.mxu0 %v2057
    %2063 = vmatprep.subr.bf16.mxu0 0
    %2064 = vmatpush1.bf16.msra.mxu0 %v2058
    %2065 = vmatprep.subr.bf16.mxu0 0
    %2066 = vmatpush1.bf16.msra.mxu0 0
    %2067 = vmatprep.subr.bf16.mxu0 0
    %2068 = vmatpush1.bf16.msra.mxu0 0
    %2069 = vmatprep.subr.bf16.mxu0 0
    %2070 = vmatpush1.bf16.msra.mxu0 0
    %2071 = vmatprep.subr.bf16.mxu0 0
    %2072 = vmatpush1.bf16.msra.mxu0 0
    %2073 = vmatprep.subr.bf16.mxu0 0
    %2074 = vmatpush1.bf16.msra.mxu0 0
    %2075 = vmatprep.subr.bf16.mxu0 0
    %2076 = vmatpush1.bf16.msra.mxu0 0
    %2077 = vmatprep.subr.bf16.mxu0 0
    %2078 = vmatpush1.bf16.msra.mxu0 0
    %2079 = vmatprep.subr.bf16.mxu0 0
    %2080 = vmatpush1.bf16.msra.mxu0 0
    %2081 = vmatprep.subr.bf16.mxu0 0
    %2082 = vmatpush1.bf16.msra.mxu0 0
    %2083 = vmatprep.subr.bf16.mxu0 0
    %2084 = vmatpush1.bf16.msra.mxu0 0
    %2085 = vmatprep.subr.bf16.mxu0 0
    %2086 = vmatpush1.bf16.msra.mxu0 0
    %2087 = vmatprep.subr.bf16.mxu0 0
    %2088 = vmatpush1.bf16.msra.mxu0 0
    %2089 = vmatprep.subr.bf16.mxu0 0
    %2090 = vmatpush1.bf16.msra.mxu0 0
    %2091 = vmatprep.subr.bf16.mxu0 0
    %2092 = vmatpush1.bf16.msra.mxu0 0
    %2093 = vmatprep.mubr.bf16.mxu0 0
    %2094 = vmatmul.mubr.bf16.gmra.mrb[0].mxu0 %v1927
    %v2095 = vpop.f32.mrb[0].mxu0
    %v2096 = vadd.f32 %v2047, %v2095
    %v2097 = vpop.f32.mrb[0].mxu0
    %v2098 = vpop.f32.mrb[0].mxu0
    %v2099 = vadd.f32 %v2047, %v2098
    %v2100 = vpop.f32.mrb[0].mxu0
    %2101 = vdwg.mxu0
    %v2102 = vpack.c.bf16 %v1967, %v1964
    %v2103 = vpack.c.bf16 %v2033, %v2030
    %v2105 = vsel %vm365, %v2102, 0
    %v2108 = vsel %vm365, %v2103, 0
    %2110 = vmatprep.subr.bf16.mxu0 0
    %2111 = vmatpush1.bf16.xpose.msra.mxu0 %v2108
    %2112 = vmatprep.subr.bf16.mxu0 0
    %2113 = vmatpush1.bf16.xpose.msra.mxu0 0
    %2114 = vmatprep.subr.bf16.mxu0 0
    %2115 = vmatpush1.bf16.xpose.msra.mxu0 0
    %2116 = vmatprep.subr.bf16.mxu0 0
    %2117 = vmatpush1.bf16.xpose.msra.mxu0 0
    %2118 = vmatprep.subr.bf16.mxu0 0
    %2119 = vmatpush1.bf16.xpose.msra.mxu0 0
    %2120 = vmatprep.subr.bf16.mxu0 0
    %2121 = vmatpush1.bf16.xpose.msra.mxu0 0
    %2122 = vmatprep.subr.bf16.mxu0 0
    %2123 = vmatpush1.bf16.xpose.msra.mxu0 0
    %2124 = vmatprep.subr.bf16.mxu0 0
    %2125 = vmatpush1.bf16.xpose.msra.mxu0 0
    %2126 = vmatprep.subr.bf16.mxu0 0
    %2127 = vmatpush1.bf16.xpose.msra.mxu0 0
    %2128 = vmatprep.subr.bf16.mxu0 0
    %2129 = vmatpush1.bf16.xpose.msra.mxu0 0
    %2130 = vmatprep.subr.bf16.mxu0 0
    %2131 = vmatpush1.bf16.xpose.msra.mxu0 0
    %2132 = vmatprep.subr.bf16.mxu0 0
    %2133 = vmatpush1.bf16.xpose.msra.mxu0 0
    %2134 = vmatprep.subr.bf16.mxu0 0
    %2135 = vmatpush1.bf16.xpose.msra.mxu0 0
    %2136 = vmatprep.subr.bf16.mxu0 0
    %2137 = vmatpush1.bf16.xpose.msra.mxu0 0
    %2138 = vmatprep.subr.bf16.mxu0 0
    %2139 = vmatpush1.bf16.xpose.msra.mxu0 0
    %2140 = vmatprep.subr.bf16.mxu0 0
    %2141 = vmatpush1.bf16.xpose.msra.mxu0 0
    %2142 = vmatprep.mubr.bf16.mxu0 0
    %2143 = vmatmul.mubr.bf16.gmra.mrb[0].mxu0 %v2105
    %v2144 = vpop.f32.mrb[0].mxu0
    %v2145 = vadd.f32 %v164, %v2144
    %v2146 = vpop.f32.mrb[0].mxu0
    %v2147 = vpop.f32.mrb[0].mxu0
    %v2148 = vadd.f32 %v165, %v2147
    %v2149 = vpop.f32.mrb[0].mxu0
    %2150 = vdwg.mxu0
    %v2151 = vmul.f32 %v2145, 1.442695
    %v2152 = vpow.pop %v2151
    %v2153 = vmul.f32 %v2148, 1.442695
    %v2154 = vpow.pop %v2153
    %v2155 = vsel %vm417, %v2152, 0.0
    %2156 = vadd.xlane.f32.xlu0 %v2155
    %v2157 = vpop.xlane.xlu0 %2156
    %v2158 = vsel %vm417, %v2154, 0.0
    %2159 = vadd.xlane.f32.xlu0 %v2158
    %v2160 = vpop.xlane.xlu0 %2159
    %v2161 = vrcp.pop %v2157
    %v2162 = vrcp.pop %v2160
    %v2163 = vmul.f32 %v2152, %v2161
    %v2164 = vmul.f32 %v2154, %v2162
    %v2165 = vpack.c.bf16 %v2164, %v2163
    %v2166 = vpack.c.bf16 %v2099, %v2096
    %v2168 = vsel %vm417, %v2165, 0
    %2170 = vmatprep.subr.bf16.mxu0 0
    %2171 = vmatpush1.bf16.msra.mxu0 %v2166
    %2172 = vmatprep.subr.bf16.mxu0 0
    %2173 = vmatpush1.bf16.msra.mxu0 0
    %2174 = vmatprep.subr.bf16.mxu0 0
    %2175 = vmatpush1.bf16.msra.mxu0 0
    %2176 = vmatprep.subr.bf16.mxu0 0
    %2177 = vmatpush1.bf16.msra.mxu0 0
    %2178 = vmatprep.subr.bf16.mxu0 0
    %2179 = vmatpush1.bf16.msra.mxu0 0
    %2180 = vmatprep.subr.bf16.mxu0 0
    %2181 = vmatpush1.bf16.msra.mxu0 0
    %2182 = vmatprep.subr.bf16.mxu0 0
    %2183 = vmatpush1.bf16.msra.mxu0 0
    %2184 = vmatprep.subr.bf16.mxu0 0
    %2185 = vmatpush1.bf16.msra.mxu0 0
    %2186 = vmatprep.subr.bf16.mxu0 0
    %2187 = vmatpush1.bf16.msra.mxu0 0
    %2188 = vmatprep.subr.bf16.mxu0 0
    %2189 = vmatpush1.bf16.msra.mxu0 0
    %2190 = vmatprep.subr.bf16.mxu0 0
    %2191 = vmatpush1.bf16.msra.mxu0 0
    %2192 = vmatprep.subr.bf16.mxu0 0
    %2193 = vmatpush1.bf16.msra.mxu0 0
    %2194 = vmatprep.subr.bf16.mxu0 0
    %2195 = vmatpush1.bf16.msra.mxu0 0
    %2196 = vmatprep.subr.bf16.mxu0 0
    %2197 = vmatpush1.bf16.msra.mxu0 0
    %2198 = vmatprep.subr.bf16.mxu0 0
    %2199 = vmatpush1.bf16.msra.mxu0 0
    %2200 = vmatprep.subr.bf16.mxu0 0
    %2201 = vmatpush1.bf16.msra.mxu0 0
    %2202 = vmatprep.mubr.bf16.mxu0 0
    %2203 = vmatmul.mubr.bf16.gmra.mrb[0].mxu0 %v2168
    %v2204 = vpop.f32.mrb[0].mxu0
    %v2205 = vadd.f32 0.0, %v2204
    %v2206 = vpop.f32.mrb[0].mxu0
    %v2207 = vpop.f32.mrb[0].mxu0
    %v2208 = vadd.f32 0.0, %v2207
    %v2209 = vpop.f32.mrb[0].mxu0
    %2210 = vdwg.mxu0
    %v2211 = vpack.c.bf16 %v2208, %v2205
    %s2212 = scalar_lea.vmem %s9, 16
    %v2213 = vld [vmem:[%s2212] sm:$0xf]
    %s2214 = scalar_lea.vmem %s3, 80
    %v2215 = vld [vmem:[%s2214] sm:$0xf]
    %v2216 = vld [vmem:[%s2214 + $0x4] sm:$0xf]
    %v2217 = vld [vmem:[%s2214 + $0x8] sm:$0xf]
    %v2218 = vld [vmem:[%s2214 + $0xc] sm:$0xf]
    %s2219 = scalar_lea.vmem %s4, 5
    %v2220 = vld [vmem:[%s2219] sm:$0x1]
    %v2222 = vlaneseq
    %v2223 = vshrl.u32 %v2222, 7
    %v2224 = vsub.s32 0, %v2223
    %v2225 = vrot.slane %v2220, %v2224
    %v2231 = vunpack.c.l.b16 %v2215
    %v2232 = vunpack.c.l.b16 %v2216
    %v2233 = vunpack.c.l.b16 %v2217
    %v2234 = vunpack.c.l.b16 %v2218
    %v2235 = vpack.c.b16 %v2232, %v2231
    %v2236 = vpack.c.b16 %v2234, %v2233
    %2239 = vmatprep.subr.bf16.mxu0 0
    %2240 = vmatpush1.bf16.msra.mxu0 %v2235
    %2241 = vmatprep.subr.bf16.mxu0 0
    %2242 = vmatpush1.bf16.msra.mxu0 %v2236
    %2243 = vmatprep.subr.bf16.mxu0 0
    %2244 = vmatpush1.bf16.msra.mxu0 0
    %2245 = vmatprep.subr.bf16.mxu0 0
    %2246 = vmatpush1.bf16.msra.mxu0 0
    %2247 = vmatprep.subr.bf16.mxu0 0
    %2248 = vmatpush1.bf16.msra.mxu0 0
    %2249 = vmatprep.subr.bf16.mxu0 0
    %2250 = vmatpush1.bf16.msra.mxu0 0
    %2251 = vmatprep.subr.bf16.mxu0 0
    %2252 = vmatpush1.bf16.msra.mxu0 0
    %2253 = vmatprep.subr.bf16.mxu0 0
    %2254 = vmatpush1.bf16.msra.mxu0 0
    %2255 = vmatprep.subr.bf16.mxu0 0
    %2256 = vmatpush1.bf16.msra.mxu0 0
    %2257 = vmatprep.subr.bf16.mxu0 0
    %2258 = vmatpush1.bf16.msra.mxu0 0
    %2259 = vmatprep.subr.bf16.mxu0 0
    %2260 = vmatpush1.bf16.msra.mxu0 0
    %2261 = vmatprep.subr.bf16.mxu0 0
    %2262 = vmatpush1.bf16.msra.mxu0 0
    %2263 = vmatprep.subr.bf16.mxu0 0
    %2264 = vmatpush1.bf16.msra.mxu0 0
    %2265 = vmatprep.subr.bf16.mxu0 0
    %2266 = vmatpush1.bf16.msra.mxu0 0
    %2267 = vmatprep.subr.bf16.mxu0 0
    %2268 = vmatpush1.bf16.msra.mxu0 0
    %2269 = vmatprep.subr.bf16.mxu0 0
    %2270 = vmatpush1.bf16.msra.mxu0 0
    %2271 = vmatprep.mubr.bf16.mxu0 0
    %2272 = vmatmul.mubr.bf16.gmra.mrb[0].mxu0 %v1927
    %v2273 = vpop.f32.mrb[0].mxu0
    %v2274 = vadd.f32 %v2225, %v2273
    %v2275 = vpop.f32.mrb[0].mxu0
    %v2276 = vpop.f32.mrb[0].mxu0
    %v2277 = vadd.f32 %v2225, %v2276
    %v2278 = vpop.f32.mrb[0].mxu0
    %2279 = vdwg.mxu0
    %s2280 = scalar_lea.vmem %s5, 80
    %v2281 = vld [vmem:[%s2280] sm:$0xf]
    %v2282 = vld [vmem:[%s2280 + $0x4] sm:$0xf]
    %v2283 = vld [vmem:[%s2280 + $0x8] sm:$0xf]
    %v2284 = vld [vmem:[%s2280 + $0xc] sm:$0xf]
    %s2285 = scalar_lea.vmem %s6, 5
    %v2286 = vld [vmem:[%s2285] sm:$0x1]
    %v2288 = vlaneseq
    %v2289 = vshrl.u32 %v2288, 7
    %v2290 = vsub.s32 0, %v2289
    %v2291 = vrot.slane %v2286, %v2290
    %v2297 = vunpack.c.l.b16 %v2281
    %v2298 = vunpack.c.l.b16 %v2282
    %v2299 = vunpack.c.l.b16 %v2283
    %v2300 = vunpack.c.l.b16 %v2284
    %v2301 = vpack.c.b16 %v2298, %v2297
    %v2302 = vpack.c.b16 %v2300, %v2299
    %2305 = vmatprep.subr.bf16.mxu0 0
    %2306 = vmatpush1.bf16.msra.mxu0 %v2301
    %2307 = vmatprep.subr.bf16.mxu0 0
    %2308 = vmatpush1.bf16.msra.mxu0 %v2302
    %2309 = vmatprep.subr.bf16.mxu0 0
    %2310 = vmatpush1.bf16.msra.mxu0 0
    %2311 = vmatprep.subr.bf16.mxu0 0
    %2312 = vmatpush1.bf16.msra.mxu0 0
    %2313 = vmatprep.subr.bf16.mxu0 0
    %2314 = vmatpush1.bf16.msra.mxu0 0
    %2315 = vmatprep.subr.bf16.mxu0 0
    %2316 = vmatpush1.bf16.msra.mxu0 0
    %2317 = vmatprep.subr.bf16.mxu0 0
    %2318 = vmatpush1.bf16.msra.mxu0 0
    %2319 = vmatprep.subr.bf16.mxu0 0
    %2320 = vmatpush1.bf16.msra.mxu0 0
    %2321 = vmatprep.subr.bf16.mxu0 0
    %2322 = vmatpush1.bf16.msra.mxu0 0
    %2323 = vmatprep.subr.bf16.mxu0 0
    %2324 = vmatpush1.bf16.msra.mxu0 0
    %2325 = vmatprep.subr.bf16.mxu0 0
    %2326 = vmatpush1.bf16.msra.mxu0 0
    %2327 = vmatprep.subr.bf16.mxu0 0
    %2328 = vmatpush1.bf16.msra.mxu0 0
    %2329 = vmatprep.subr.bf16.mxu0 0
    %2330 = vmatpush1.bf16.msra.mxu0 0
    %2331 = vmatprep.subr.bf16.mxu0 0
    %2332 = vmatpush1.bf16.msra.mxu0 0
    %2333 = vmatprep.subr.bf16.mxu0 0
    %2334 = vmatpush1.bf16.msra.mxu0 0
    %2335 = vmatprep.subr.bf16.mxu0 0
    %2336 = vmatpush1.bf16.msra.mxu0 0
    %2337 = vmatprep.mubr.bf16.mxu0 0
    %2338 = vmatmul.mubr.bf16.gmra.mrb[0].mxu0 %v1927
    %v2339 = vpop.f32.mrb[0].mxu0
    %v2340 = vadd.f32 %v2291, %v2339
    %v2341 = vpop.f32.mrb[0].mxu0
    %v2342 = vpop.f32.mrb[0].mxu0
    %v2343 = vadd.f32 %v2291, %v2342
    %v2344 = vpop.f32.mrb[0].mxu0
    %2345 = vdwg.mxu0
    %s2346 = scalar_lea.vmem %s7, 80
    %v2347 = vld [vmem:[%s2346] sm:$0xf]
    %v2348 = vld [vmem:[%s2346 + $0x4] sm:$0xf]
    %v2349 = vld [vmem:[%s2346 + $0x8] sm:$0xf]
    %v2350 = vld [vmem:[%s2346 + $0xc] sm:$0xf]
    %s2351 = scalar_lea.vmem %s8, 5
    %v2352 = vld [vmem:[%s2351] sm:$0x1]
    %v2354 = vlaneseq
    %v2355 = vshrl.u32 %v2354, 7
    %v2356 = vsub.s32 0, %v2355
    %v2357 = vrot.slane %v2352, %v2356
    %v2363 = vunpack.c.l.b16 %v2347
    %v2364 = vunpack.c.l.b16 %v2348
    %v2365 = vunpack.c.l.b16 %v2349
    %v2366 = vunpack.c.l.b16 %v2350
    %v2367 = vpack.c.b16 %v2364, %v2363
    %v2368 = vpack.c.b16 %v2366, %v2365
    %2371 = vmatprep.subr.bf16.mxu0 0
    %2372 = vmatpush1.bf16.msra.mxu0 %v2367
    %2373 = vmatprep.subr.bf16.mxu0 0
    %2374 = vmatpush1.bf16.msra.mxu0 %v2368
    %2375 = vmatprep.subr.bf16.mxu0 0
    %2376 = vmatpush1.bf16.msra.mxu0 0
    %2377 = vmatprep.subr.bf16.mxu0 0
    %2378 = vmatpush1.bf16.msra.mxu0 0
    %2379 = vmatprep.subr.bf16.mxu0 0
    %2380 = vmatpush1.bf16.msra.mxu0 0
    %2381 = vmatprep.subr.bf16.mxu0 0
    %2382 = vmatpush1.bf16.msra.mxu0 0
    %2383 = vmatprep.subr.bf16.mxu0 0
    %2384 = vmatpush1.bf16.msra.mxu0 0
    %2385 = vmatprep.subr.bf16.mxu0 0
    %2386 = vmatpush1.bf16.msra.mxu0 0
    %2387 = vmatprep.subr.bf16.mxu0 0
    %2388 = vmatpush1.bf16.msra.mxu0 0
    %2389 = vmatprep.subr.bf16.mxu0 0
    %2390 = vmatpush1.bf16.msra.mxu0 0
    %2391 = vmatprep.subr.bf16.mxu0 0
    %2392 = vmatpush1.bf16.msra.mxu0 0
    %2393 = vmatprep.subr.bf16.mxu0 0
    %2394 = vmatpush1.bf16.msra.mxu0 0
    %2395 = vmatprep.subr.bf16.mxu0 0
    %2396 = vmatpush1.bf16.msra.mxu0 0
    %2397 = vmatprep.subr.bf16.mxu0 0
    %2398 = vmatpush1.bf16.msra.mxu0 0
    %2399 = vmatprep.subr.bf16.mxu0 0
    %2400 = vmatpush1.bf16.msra.mxu0 0
    %2401 = vmatprep.subr.bf16.mxu0 0
    %2402 = vmatpush1.bf16.msra.mxu0 0
    %2403 = vmatprep.mubr.bf16.mxu0 0
    %2404 = vmatmul.mubr.bf16.gmra.mrb[0].mxu0 %v1927
    %v2405 = vpop.f32.mrb[0].mxu0
    %v2406 = vadd.f32 %v2357, %v2405
    %v2407 = vpop.f32.mrb[0].mxu0
    %v2408 = vpop.f32.mrb[0].mxu0
    %v2409 = vadd.f32 %v2357, %v2408
    %v2410 = vpop.f32.mrb[0].mxu0
    %2411 = vdwg.mxu0
    %v2412 = vpack.c.bf16 %v2277, %v2274
    %v2413 = vpack.c.bf16 %v2343, %v2340
    %v2415 = vsel %vm365, %v2412, 0
    %v2418 = vsel %vm365, %v2413, 0
    %2420 = vmatprep.subr.bf16.mxu0 0
    %2421 = vmatpush1.bf16.xpose.msra.mxu0 %v2418
    %2422 = vmatprep.subr.bf16.mxu0 0
    %2423 = vmatpush1.bf16.xpose.msra.mxu0 0
    %2424 = vmatprep.subr.bf16.mxu0 0
    %2425 = vmatpush1.bf16.xpose.msra.mxu0 0
    %2426 = vmatprep.subr.bf16.mxu0 0
    %2427 = vmatpush1.bf16.xpose.msra.mxu0 0
    %2428 = vmatprep.subr.bf16.mxu0 0
    %2429 = vmatpush1.bf16.xpose.msra.mxu0 0
    %2430 = vmatprep.subr.bf16.mxu0 0
    %2431 = vmatpush1.bf16.xpose.msra.mxu0 0
    %2432 = vmatprep.subr.bf16.mxu0 0
    %2433 = vmatpush1.bf16.xpose.msra.mxu0 0
    %2434 = vmatprep.subr.bf16.mxu0 0
    %2435 = vmatpush1.bf16.xpose.msra.mxu0 0
    %2436 = vmatprep.subr.bf16.mxu0 0
    %2437 = vmatpush1.bf16.xpose.msra.mxu0 0
    %2438 = vmatprep.subr.bf16.mxu0 0
    %2439 = vmatpush1.bf16.xpose.msra.mxu0 0
    %2440 = vmatprep.subr.bf16.mxu0 0
    %2441 = vmatpush1.bf16.xpose.msra.mxu0 0
    %2442 = vmatprep.subr.bf16.mxu0 0
    %2443 = vmatpush1.bf16.xpose.msra.mxu0 0
    %2444 = vmatprep.subr.bf16.mxu0 0
    %2445 = vmatpush1.bf16.xpose.msra.mxu0 0
    %2446 = vmatprep.subr.bf16.mxu0 0
    %2447 = vmatpush1.bf16.xpose.msra.mxu0 0
    %2448 = vmatprep.subr.bf16.mxu0 0
    %2449 = vmatpush1.bf16.xpose.msra.mxu0 0
    %2450 = vmatprep.subr.bf16.mxu0 0
    %2451 = vmatpush1.bf16.xpose.msra.mxu0 0
    %2452 = vmatprep.mubr.bf16.mxu0 0
    %2453 = vmatmul.mubr.bf16.gmra.mrb[0].mxu0 %v2415
    %v2454 = vpop.f32.mrb[0].mxu0
    %v2455 = vadd.f32 %v164, %v2454
    %v2456 = vpop.f32.mrb[0].mxu0
    %v2457 = vpop.f32.mrb[0].mxu0
    %v2458 = vadd.f32 %v165, %v2457
    %v2459 = vpop.f32.mrb[0].mxu0
    %2460 = vdwg.mxu0
    %v2461 = vmul.f32 %v2455, 1.442695
    %v2462 = vpow.pop %v2461
    %v2463 = vmul.f32 %v2458, 1.442695
    %v2464 = vpow.pop %v2463
    %v2465 = vsel %vm417, %v2462, 0.0
    %2466 = vadd.xlane.f32.xlu0 %v2465
    %v2467 = vpop.xlane.xlu0 %2466
    %v2468 = vsel %vm417, %v2464, 0.0
    %2469 = vadd.xlane.f32.xlu0 %v2468
    %v2470 = vpop.xlane.xlu0 %2469
    %v2471 = vrcp.pop %v2467
    %v2472 = vrcp.pop %v2470
    %v2473 = vmul.f32 %v2462, %v2471
    %v2474 = vmul.f32 %v2464, %v2472
    %v2475 = vpack.c.bf16 %v2474, %v2473
    %v2476 = vpack.c.bf16 %v2409, %v2406
    %v2478 = vsel %vm417, %v2475, 0
    %2480 = vmatprep.subr.bf16.mxu0 0
    %2481 = vmatpush1.bf16.msra.mxu0 %v2476
    %2482 = vmatprep.subr.bf16.mxu0 0
    %2483 = vmatpush1.bf16.msra.mxu0 0
    %2484 = vmatprep.subr.bf16.mxu0 0
    %2485 = vmatpush1.bf16.msra.mxu0 0
    %2486 = vmatprep.subr.bf16.mxu0 0
    %2487 = vmatpush1.bf16.msra.mxu0 0
    %2488 = vmatprep.subr.bf16.mxu0 0
    %2489 = vmatpush1.bf16.msra.mxu0 0
    %2490 = vmatprep.subr.bf16.mxu0 0
    %2491 = vmatpush1.bf16.msra.mxu0 0
    %2492 = vmatprep.subr.bf16.mxu0 0
    %2493 = vmatpush1.bf16.msra.mxu0 0
    %2494 = vmatprep.subr.bf16.mxu0 0
    %2495 = vmatpush1.bf16.msra.mxu0 0
    %2496 = vmatprep.subr.bf16.mxu0 0
    %2497 = vmatpush1.bf16.msra.mxu0 0
    %2498 = vmatprep.subr.bf16.mxu0 0
    %2499 = vmatpush1.bf16.msra.mxu0 0
    %2500 = vmatprep.subr.bf16.mxu0 0
    %2501 = vmatpush1.bf16.msra.mxu0 0
    %2502 = vmatprep.subr.bf16.mxu0 0
    %2503 = vmatpush1.bf16.msra.mxu0 0
    %2504 = vmatprep.subr.bf16.mxu0 0
    %2505 = vmatpush1.bf16.msra.mxu0 0
    %2506 = vmatprep.subr.bf16.mxu0 0
    %2507 = vmatpush1.bf16.msra.mxu0 0
    %2508 = vmatprep.subr.bf16.mxu0 0
    %2509 = vmatpush1.bf16.msra.mxu0 0
    %2510 = vmatprep.subr.bf16.mxu0 0
    %2511 = vmatpush1.bf16.msra.mxu0 0
    %2512 = vmatprep.mubr.bf16.mxu0 0
    %2513 = vmatmul.mubr.bf16.gmra.mrb[0].mxu0 %v2478
    %v2514 = vpop.f32.mrb[0].mxu0
    %v2515 = vadd.f32 0.0, %v2514
    %v2516 = vpop.f32.mrb[0].mxu0
    %v2517 = vpop.f32.mrb[0].mxu0
    %v2518 = vadd.f32 0.0, %v2517
    %v2519 = vpop.f32.mrb[0].mxu0
    %2520 = vdwg.mxu0
    %v2521 = vpack.c.bf16 %v2518, %v2515
    %s2522 = scalar_lea.vmem %s9, 20
    %v2523 = vld [vmem:[%s2522] sm:$0xf]
    %v2525 = vsel %vm365, %v2521, 0
    %v2528 = vsel %vm789, %v2523, 0
    %2530 = vmatprep.subr.bf16.mxu0 0
    %2531 = vmatpush1.bf16.msra.mxu0 %v2528
    %2532 = vmatprep.subr.bf16.mxu0 0
    %2533 = vmatpush1.bf16.msra.mxu0 0
    %2534 = vmatprep.subr.bf16.mxu0 0
    %2535 = vmatpush1.bf16.msra.mxu0 0
    %2536 = vmatprep.subr.bf16.mxu0 0
    %2537 = vmatpush1.bf16.msra.mxu0 0
    %2538 = vmatprep.subr.bf16.mxu0 0
    %2539 = vmatpush1.bf16.msra.mxu0 0
    %2540 = vmatprep.subr.bf16.mxu0 0
    %2541 = vmatpush1.bf16.msra.mxu0 0
    %2542 = vmatprep.subr.bf16.mxu0 0
    %2543 = vmatpush1.bf16.msra.mxu0 0
    %2544 = vmatprep.subr.bf16.mxu0 0
    %2545 = vmatpush1.bf16.msra.mxu0 0
    %2546 = vmatprep.subr.bf16.mxu0 0
    %2547 = vmatpush1.bf16.msra.mxu0 0
    %2548 = vmatprep.subr.bf16.mxu0 0
    %2549 = vmatpush1.bf16.msra.mxu0 0
    %2550 = vmatprep.subr.bf16.mxu0 0
    %2551 = vmatpush1.bf16.msra.mxu0 0
    %2552 = vmatprep.subr.bf16.mxu0 0
    %2553 = vmatpush1.bf16.msra.mxu0 0
    %2554 = vmatprep.subr.bf16.mxu0 0
    %2555 = vmatpush1.bf16.msra.mxu0 0
    %2556 = vmatprep.subr.bf16.mxu0 0
    %2557 = vmatpush1.bf16.msra.mxu0 0
    %2558 = vmatprep.subr.bf16.mxu0 0
    %2559 = vmatpush1.bf16.msra.mxu0 0
    %2560 = vmatprep.subr.bf16.mxu0 0
    %2561 = vmatpush1.bf16.msra.mxu0 0
    %2562 = vmatprep.mubr.bf16.mxu0 0
    %2563 = vmatmul.mubr.bf16.gmra.mrb[0].mxu0 %v2525
    %v2564 = vpop.f32.mrb[0].mxu0
    %v2565 = vadd.f32 0.0, %v2564
    %v2566 = vpop.f32.mrb[0].mxu0
    %v2567 = vpop.f32.mrb[0].mxu0
    %v2568 = vadd.f32 0.0, %v2567
    %v2569 = vpop.f32.mrb[0].mxu0
    %2570 = vdwg.mxu0
    %v2572 = vsel %vm365, %v2211, 0
    %v2575 = vsel %vm789, %v2213, 0
    %2577 = vmatprep.subr.bf16.mxu0 0
    %2578 = vmatpush1.bf16.msra.mxu0 %v2575
    %2579 = vmatprep.subr.bf16.mxu0 0
    %2580 = vmatpush1.bf16.msra.mxu0 0
    %2581 = vmatprep.subr.bf16.mxu0 0
    %2582 = vmatpush1.bf16.msra.mxu0 0
    %2583 = vmatprep.subr.bf16.mxu0 0
    %2584 = vmatpush1.bf16.msra.mxu0 0
    %2585 = vmatprep.subr.bf16.mxu0 0
    %2586 = vmatpush1.bf16.msra.mxu0 0
    %2587 = vmatprep.subr.bf16.mxu0 0
    %2588 = vmatpush1.bf16.msra.mxu0 0
    %2589 = vmatprep.subr.bf16.mxu0 0
    %2590 = vmatpush1.bf16.msra.mxu0 0
    %2591 = vmatprep.subr.bf16.mxu0 0
    %2592 = vmatpush1.bf16.msra.mxu0 0
    %2593 = vmatprep.subr.bf16.mxu0 0
    %2594 = vmatpush1.bf16.msra.mxu0 0
    %2595 = vmatprep.subr.bf16.mxu0 0
    %2596 = vmatpush1.bf16.msra.mxu0 0
    %2597 = vmatprep.subr.bf16.mxu0 0
    %2598 = vmatpush1.bf16.msra.mxu0 0
    %2599 = vmatprep.subr.bf16.mxu0 0
    %2600 = vmatpush1.bf16.msra.mxu0 0
    %2601 = vmatprep.subr.bf16.mxu0 0
    %2602 = vmatpush1.bf16.msra.mxu0 0
    %2603 = vmatprep.subr.bf16.mxu0 0
    %2604 = vmatpush1.bf16.msra.mxu0 0
    %2605 = vmatprep.subr.bf16.mxu0 0
    %2606 = vmatpush1.bf16.msra.mxu0 0
    %2607 = vmatprep.subr.bf16.mxu0 0
    %2608 = vmatpush1.bf16.msra.mxu0 0
    %2609 = vmatprep.mubr.bf16.mxu0 0
    %2610 = vmatmul.mubr.bf16.gmra.mrb[0].mxu0 %v2572
    %v2611 = vpop.f32.mrb[0].mxu0
    %v2612 = vadd.f32 %v2565, %v2611
    %v2613 = vpop.f32.mrb[0].mxu0
    %v2614 = vpop.f32.mrb[0].mxu0
    %v2615 = vadd.f32 %v2568, %v2614
    %v2616 = vpop.f32.mrb[0].mxu0
    %2617 = vdwg.mxu0
    %s2618 = scalar_lea.vmem %s3, 96
    %v2619 = vld [vmem:[%s2618] sm:$0xf]
    %v2620 = vld [vmem:[%s2618 + $0x4] sm:$0xf]
    %v2621 = vld [vmem:[%s2618 + $0x8] sm:$0xf]
    %v2622 = vld [vmem:[%s2618 + $0xc] sm:$0xf]
    %s2623 = scalar_lea.vmem %s4, 6
    %v2624 = vld [vmem:[%s2623] sm:$0x1]
    %v2626 = vlaneseq
    %v2627 = vshrl.u32 %v2626, 7
    %v2628 = vsub.s32 0, %v2627
    %v2629 = vrot.slane %v2624, %v2628
    %v2635 = vunpack.c.l.b16 %v2619
    %v2636 = vunpack.c.l.b16 %v2620
    %v2637 = vunpack.c.l.b16 %v2621
    %v2638 = vunpack.c.l.b16 %v2622
    %v2639 = vpack.c.b16 %v2636, %v2635
    %v2640 = vpack.c.b16 %v2638, %v2637
    %2643 = vmatprep.subr.bf16.mxu0 0
    %2644 = vmatpush1.bf16.msra.mxu0 %v2639
    %2645 = vmatprep.subr.bf16.mxu0 0
    %2646 = vmatpush1.bf16.msra.mxu0 %v2640
    %2647 = vmatprep.subr.bf16.mxu0 0
    %2648 = vmatpush1.bf16.msra.mxu0 0
    %2649 = vmatprep.subr.bf16.mxu0 0
    %2650 = vmatpush1.bf16.msra.mxu0 0
    %2651 = vmatprep.subr.bf16.mxu0 0
    %2652 = vmatpush1.bf16.msra.mxu0 0
    %2653 = vmatprep.subr.bf16.mxu0 0
    %2654 = vmatpush1.bf16.msra.mxu0 0
    %2655 = vmatprep.subr.bf16.mxu0 0
    %2656 = vmatpush1.bf16.msra.mxu0 0
    %2657 = vmatprep.subr.bf16.mxu0 0
    %2658 = vmatpush1.bf16.msra.mxu0 0
    %2659 = vmatprep.subr.bf16.mxu0 0
    %2660 = vmatpush1.bf16.msra.mxu0 0
    %2661 = vmatprep.subr.bf16.mxu0 0
    %2662 = vmatpush1.bf16.msra.mxu0 0
    %2663 = vmatprep.subr.bf16.mxu0 0
    %2664 = vmatpush1.bf16.msra.mxu0 0
    %2665 = vmatprep.subr.bf16.mxu0 0
    %2666 = vmatpush1.bf16.msra.mxu0 0
    %2667 = vmatprep.subr.bf16.mxu0 0
    %2668 = vmatpush1.bf16.msra.mxu0 0
    %2669 = vmatprep.subr.bf16.mxu0 0
    %2670 = vmatpush1.bf16.msra.mxu0 0
    %2671 = vmatprep.subr.bf16.mxu0 0
    %2672 = vmatpush1.bf16.msra.mxu0 0
    %2673 = vmatprep.subr.bf16.mxu0 0
    %2674 = vmatpush1.bf16.msra.mxu0 0
    %2675 = vmatprep.mubr.bf16.mxu0 0
    %2676 = vmatmul.mubr.bf16.gmra.mrb[0].mxu0 %v1927
    %v2677 = vpop.f32.mrb[0].mxu0
    %v2678 = vadd.f32 %v2629, %v2677
    %v2679 = vpop.f32.mrb[0].mxu0
    %v2680 = vpop.f32.mrb[0].mxu0
    %v2681 = vadd.f32 %v2629, %v2680
    %v2682 = vpop.f32.mrb[0].mxu0
    %2683 = vdwg.mxu0
    %s2684 = scalar_lea.vmem %s5, 96
    %v2685 = vld [vmem:[%s2684] sm:$0xf]
    %v2686 = vld [vmem:[%s2684 + $0x4] sm:$0xf]
    %v2687 = vld [vmem:[%s2684 + $0x8] sm:$0xf]
    %v2688 = vld [vmem:[%s2684 + $0xc] sm:$0xf]
    %s2689 = scalar_lea.vmem %s6, 6
    %v2690 = vld [vmem:[%s2689] sm:$0x1]
    %v2692 = vlaneseq
    %v2693 = vshrl.u32 %v2692, 7
    %v2694 = vsub.s32 0, %v2693
    %v2695 = vrot.slane %v2690, %v2694
    %v2701 = vunpack.c.l.b16 %v2685
    %v2702 = vunpack.c.l.b16 %v2686
    %v2703 = vunpack.c.l.b16 %v2687
    %v2704 = vunpack.c.l.b16 %v2688
    %v2705 = vpack.c.b16 %v2702, %v2701
    %v2706 = vpack.c.b16 %v2704, %v2703
    %2709 = vmatprep.subr.bf16.mxu0 0
    %2710 = vmatpush1.bf16.msra.mxu0 %v2705
    %2711 = vmatprep.subr.bf16.mxu0 0
    %2712 = vmatpush1.bf16.msra.mxu0 %v2706
    %2713 = vmatprep.subr.bf16.mxu0 0
    %2714 = vmatpush1.bf16.msra.mxu0 0
    %2715 = vmatprep.subr.bf16.mxu0 0
    %2716 = vmatpush1.bf16.msra.mxu0 0
    %2717 = vmatprep.subr.bf16.mxu0 0
    %2718 = vmatpush1.bf16.msra.mxu0 0
    %2719 = vmatprep.subr.bf16.mxu0 0
    %2720 = vmatpush1.bf16.msra.mxu0 0
    %2721 = vmatprep.subr.bf16.mxu0 0
    %2722 = vmatpush1.bf16.msra.mxu0 0
    %2723 = vmatprep.subr.bf16.mxu0 0
    %2724 = vmatpush1.bf16.msra.mxu0 0
    %2725 = vmatprep.subr.bf16.mxu0 0
    %2726 = vmatpush1.bf16.msra.mxu0 0
    %2727 = vmatprep.subr.bf16.mxu0 0
    %2728 = vmatpush1.bf16.msra.mxu0 0
    %2729 = vmatprep.subr.bf16.mxu0 0
    %2730 = vmatpush1.bf16.msra.mxu0 0
    %2731 = vmatprep.subr.bf16.mxu0 0
    %2732 = vmatpush1.bf16.msra.mxu0 0
    %2733 = vmatprep.subr.bf16.mxu0 0
    %2734 = vmatpush1.bf16.msra.mxu0 0
    %2735 = vmatprep.subr.bf16.mxu0 0
    %2736 = vmatpush1.bf16.msra.mxu0 0
    %2737 = vmatprep.subr.bf16.mxu0 0
    %2738 = vmatpush1.bf16.msra.mxu0 0
    %2739 = vmatprep.subr.bf16.mxu0 0
    %2740 = vmatpush1.bf16.msra.mxu0 0
    %2741 = vmatprep.mubr.bf16.mxu0 0
    %2742 = vmatmul.mubr.bf16.gmra.mrb[0].mxu0 %v1927
    %v2743 = vpop.f32.mrb[0].mxu0
    %v2744 = vadd.f32 %v2695, %v2743
    %v2745 = vpop.f32.mrb[0].mxu0
    %v2746 = vpop.f32.mrb[0].mxu0
    %v2747 = vadd.f32 %v2695, %v2746
    %v2748 = vpop.f32.mrb[0].mxu0
    %2749 = vdwg.mxu0
    %s2750 = scalar_lea.vmem %s7, 96
    %v2751 = vld [vmem:[%s2750] sm:$0xf]
    %v2752 = vld [vmem:[%s2750 + $0x4] sm:$0xf]
    %v2753 = vld [vmem:[%s2750 + $0x8] sm:$0xf]
    %v2754 = vld [vmem:[%s2750 + $0xc] sm:$0xf]
    %s2755 = scalar_lea.vmem %s8, 6
    %v2756 = vld [vmem:[%s2755] sm:$0x1]
    %v2758 = vlaneseq
    %v2759 = vshrl.u32 %v2758, 7
    %v2760 = vsub.s32 0, %v2759
    %v2761 = vrot.slane %v2756, %v2760
    %v2767 = vunpack.c.l.b16 %v2751
    %v2768 = vunpack.c.l.b16 %v2752
    %v2769 = vunpack.c.l.b16 %v2753
    %v2770 = vunpack.c.l.b16 %v2754
    %v2771 = vpack.c.b16 %v2768, %v2767
    %v2772 = vpack.c.b16 %v2770, %v2769
    %2775 = vmatprep.subr.bf16.mxu0 0
    %2776 = vmatpush1.bf16.msra.mxu0 %v2771
    %2777 = vmatprep.subr.bf16.mxu0 0
    %2778 = vmatpush1.bf16.msra.mxu0 %v2772
    %2779 = vmatprep.subr.bf16.mxu0 0
    %2780 = vmatpush1.bf16.msra.mxu0 0
    %2781 = vmatprep.subr.bf16.mxu0 0
    %2782 = vmatpush1.bf16.msra.mxu0 0
    %2783 = vmatprep.subr.bf16.mxu0 0
    %2784 = vmatpush1.bf16.msra.mxu0 0
    %2785 = vmatprep.subr.bf16.mxu0 0
    %2786 = vmatpush1.bf16.msra.mxu0 0
    %2787 = vmatprep.subr.bf16.mxu0 0
    %2788 = vmatpush1.bf16.msra.mxu0 0
    %2789 = vmatprep.subr.bf16.mxu0 0
    %2790 = vmatpush1.bf16.msra.mxu0 0
    %2791 = vmatprep.subr.bf16.mxu0 0
    %2792 = vmatpush1.bf16.msra.mxu0 0
    %2793 = vmatprep.subr.bf16.mxu0 0
    %2794 = vmatpush1.bf16.msra.mxu0 0
    %2795 = vmatprep.subr.bf16.mxu0 0
    %2796 = vmatpush1.bf16.msra.mxu0 0
    %2797 = vmatprep.subr.bf16.mxu0 0
    %2798 = vmatpush1.bf16.msra.mxu0 0
    %2799 = vmatprep.subr.bf16.mxu0 0
    %2800 = vmatpush1.bf16.msra.mxu0 0
    %2801 = vmatprep.subr.bf16.mxu0 0
    %2802 = vmatpush1.bf16.msra.mxu0 0
    %2803 = vmatprep.subr.bf16.mxu0 0
    %2804 = vmatpush1.bf16.msra.mxu0 0
    %2805 = vmatprep.subr.bf16.mxu0 0
    %2806 = vmatpush1.bf16.msra.mxu0 0
    %2807 = vmatprep.mubr.bf16.mxu0 0
    %2808 = vmatmul.mubr.bf16.gmra.mrb[0].mxu0 %v1927
    %v2809 = vpop.f32.mrb[0].mxu0
    %v2810 = vadd.f32 %v2761, %v2809
    %v2811 = vpop.f32.mrb[0].mxu0
    %v2812 = vpop.f32.mrb[0].mxu0
    %v2813 = vadd.f32 %v2761, %v2812
    %v2814 = vpop.f32.mrb[0].mxu0
    %2815 = vdwg.mxu0
    %v2816 = vpack.c.bf16 %v2681, %v2678
    %v2817 = vpack.c.bf16 %v2747, %v2744
    %v2819 = vsel %vm365, %v2816, 0
    %v2822 = vsel %vm365, %v2817, 0
    %2824 = vmatprep.subr.bf16.mxu0 0
    %2825 = vmatpush1.bf16.xpose.msra.mxu0 %v2822
    %2826 = vmatprep.subr.bf16.mxu0 0
    %2827 = vmatpush1.bf16.xpose.msra.mxu0 0
    %2828 = vmatprep.subr.bf16.mxu0 0
    %2829 = vmatpush1.bf16.xpose.msra.mxu0 0
    %2830 = vmatprep.subr.bf16.mxu0 0
    %2831 = vmatpush1.bf16.xpose.msra.mxu0 0
    %2832 = vmatprep.subr.bf16.mxu0 0
    %2833 = vmatpush1.bf16.xpose.msra.mxu0 0
    %2834 = vmatprep.subr.bf16.mxu0 0
    %2835 = vmatpush1.bf16.xpose.msra.mxu0 0
    %2836 = vmatprep.subr.bf16.mxu0 0
    %2837 = vmatpush1.bf16.xpose.msra.mxu0 0
    %2838 = vmatprep.subr.bf16.mxu0 0
    %2839 = vmatpush1.bf16.xpose.msra.mxu0 0
    %2840 = vmatprep.subr.bf16.mxu0 0
    %2841 = vmatpush1.bf16.xpose.msra.mxu0 0
    %2842 = vmatprep.subr.bf16.mxu0 0
    %2843 = vmatpush1.bf16.xpose.msra.mxu0 0
    %2844 = vmatprep.subr.bf16.mxu0 0
    %2845 = vmatpush1.bf16.xpose.msra.mxu0 0
    %2846 = vmatprep.subr.bf16.mxu0 0
    %2847 = vmatpush1.bf16.xpose.msra.mxu0 0
    %2848 = vmatprep.subr.bf16.mxu0 0
    %2849 = vmatpush1.bf16.xpose.msra.mxu0 0
    %2850 = vmatprep.subr.bf16.mxu0 0
    %2851 = vmatpush1.bf16.xpose.msra.mxu0 0
    %2852 = vmatprep.subr.bf16.mxu0 0
    %2853 = vmatpush1.bf16.xpose.msra.mxu0 0
    %2854 = vmatprep.subr.bf16.mxu0 0
    %2855 = vmatpush1.bf16.xpose.msra.mxu0 0
    %2856 = vmatprep.mubr.bf16.mxu0 0
    %2857 = vmatmul.mubr.bf16.gmra.mrb[0].mxu0 %v2819
    %v2858 = vpop.f32.mrb[0].mxu0
    %v2859 = vadd.f32 %v164, %v2858
    %v2860 = vpop.f32.mrb[0].mxu0
    %v2861 = vpop.f32.mrb[0].mxu0
    %v2862 = vadd.f32 %v165, %v2861
    %v2863 = vpop.f32.mrb[0].mxu0
    %2864 = vdwg.mxu0
    %v2865 = vmul.f32 %v2859, 1.442695
    %v2866 = vpow.pop %v2865
    %v2867 = vmul.f32 %v2862, 1.442695
    %v2868 = vpow.pop %v2867
    %v2869 = vsel %vm417, %v2866, 0.0
    %2870 = vadd.xlane.f32.xlu0 %v2869
    %v2871 = vpop.xlane.xlu0 %2870
    %v2872 = vsel %vm417, %v2868, 0.0
    %2873 = vadd.xlane.f32.xlu0 %v2872
    %v2874 = vpop.xlane.xlu0 %2873
    %v2875 = vrcp.pop %v2871
    %v2876 = vrcp.pop %v2874
    %v2877 = vmul.f32 %v2866, %v2875
    %v2878 = vmul.f32 %v2868, %v2876
    %v2879 = vpack.c.bf16 %v2878, %v2877
    %v2880 = vpack.c.bf16 %v2813, %v2810
    %v2882 = vsel %vm417, %v2879, 0
    %2884 = vmatprep.subr.bf16.mxu0 0
    %2885 = vmatpush1.bf16.msra.mxu0 %v2880
    %2886 = vmatprep.subr.bf16.mxu0 0
    %2887 = vmatpush1.bf16.msra.mxu0 0
    %2888 = vmatprep.subr.bf16.mxu0 0
    %2889 = vmatpush1.bf16.msra.mxu0 0
    %2890 = vmatprep.subr.bf16.mxu0 0
    %2891 = vmatpush1.bf16.msra.mxu0 0
    %2892 = vmatprep.subr.bf16.mxu0 0
    %2893 = vmatpush1.bf16.msra.mxu0 0
    %2894 = vmatprep.subr.bf16.mxu0 0
    %2895 = vmatpush1.bf16.msra.mxu0 0
    %2896 = vmatprep.subr.bf16.mxu0 0
    %2897 = vmatpush1.bf16.msra.mxu0 0
    %2898 = vmatprep.subr.bf16.mxu0 0
    %2899 = vmatpush1.bf16.msra.mxu0 0
    %2900 = vmatprep.subr.bf16.mxu0 0
    %2901 = vmatpush1.bf16.msra.mxu0 0
    %2902 = vmatprep.subr.bf16.mxu0 0
    %2903 = vmatpush1.bf16.msra.mxu0 0
    %2904 = vmatprep.subr.bf16.mxu0 0
    %2905 = vmatpush1.bf16.msra.mxu0 0
    %2906 = vmatprep.subr.bf16.mxu0 0
    %2907 = vmatpush1.bf16.msra.mxu0 0
    %2908 = vmatprep.subr.bf16.mxu0 0
    %2909 = vmatpush1.bf16.msra.mxu0 0
    %2910 = vmatprep.subr.bf16.mxu0 0
    %2911 = vmatpush1.bf16.msra.mxu0 0
    %2912 = vmatprep.subr.bf16.mxu0 0
    %2913 = vmatpush1.bf16.msra.mxu0 0
    %2914 = vmatprep.subr.bf16.mxu0 0
    %2915 = vmatpush1.bf16.msra.mxu0 0
    %2916 = vmatprep.mubr.bf16.mxu0 0
    %2917 = vmatmul.mubr.bf16.gmra.mrb[0].mxu0 %v2882
    %v2918 = vpop.f32.mrb[0].mxu0
    %v2919 = vadd.f32 0.0, %v2918
    %v2920 = vpop.f32.mrb[0].mxu0
    %v2921 = vpop.f32.mrb[0].mxu0
    %v2922 = vadd.f32 0.0, %v2921
    %v2923 = vpop.f32.mrb[0].mxu0
    %2924 = vdwg.mxu0
    %v2925 = vpack.c.bf16 %v2922, %v2919
    %s2926 = scalar_lea.vmem %s9, 24
    %v2927 = vld [vmem:[%s2926] sm:$0xf]
    %v2929 = vsel %vm365, %v2925, 0
    %v2932 = vsel %vm789, %v2927, 0
    %2934 = vmatprep.subr.bf16.mxu0 0
    %2935 = vmatpush1.bf16.msra.mxu0 %v2932
    %2936 = vmatprep.subr.bf16.mxu0 0
    %2937 = vmatpush1.bf16.msra.mxu0 0
    %2938 = vmatprep.subr.bf16.mxu0 0
    %2939 = vmatpush1.bf16.msra.mxu0 0
    %2940 = vmatprep.subr.bf16.mxu0 0
    %2941 = vmatpush1.bf16.msra.mxu0 0
    %2942 = vmatprep.subr.bf16.mxu0 0
    %2943 = vmatpush1.bf16.msra.mxu0 0
    %2944 = vmatprep.subr.bf16.mxu0 0
    %2945 = vmatpush1.bf16.msra.mxu0 0
    %2946 = vmatprep.subr.bf16.mxu0 0
    %2947 = vmatpush1.bf16.msra.mxu0 0
    %2948 = vmatprep.subr.bf16.mxu0 0
    %2949 = vmatpush1.bf16.msra.mxu0 0
    %2950 = vmatprep.subr.bf16.mxu0 0
    %2951 = vmatpush1.bf16.msra.mxu0 0
    %2952 = vmatprep.subr.bf16.mxu0 0
    %2953 = vmatpush1.bf16.msra.mxu0 0
    %2954 = vmatprep.subr.bf16.mxu0 0
    %2955 = vmatpush1.bf16.msra.mxu0 0
    %2956 = vmatprep.subr.bf16.mxu0 0
    %2957 = vmatpush1.bf16.msra.mxu0 0
    %2958 = vmatprep.subr.bf16.mxu0 0
    %2959 = vmatpush1.bf16.msra.mxu0 0
    %2960 = vmatprep.subr.bf16.mxu0 0
    %2961 = vmatpush1.bf16.msra.mxu0 0
    %2962 = vmatprep.subr.bf16.mxu0 0
    %2963 = vmatpush1.bf16.msra.mxu0 0
    %2964 = vmatprep.subr.bf16.mxu0 0
    %2965 = vmatpush1.bf16.msra.mxu0 0
    %2966 = vmatprep.mubr.bf16.mxu0 0
    %2967 = vmatmul.mubr.bf16.gmra.mrb[0].mxu0 %v2929
    %v2968 = vpop.f32.mrb[0].mxu0
    %v2969 = vadd.f32 0.0, %v2968
    %v2970 = vpop.f32.mrb[0].mxu0
    %v2971 = vpop.f32.mrb[0].mxu0
    %v2972 = vadd.f32 0.0, %v2971
    %v2973 = vpop.f32.mrb[0].mxu0
    %2974 = vdwg.mxu0
    %v2975 = vadd.f32 %v2612, %v2969
    %v2976 = vadd.f32 %v2615, %v2972
    %s2977 = scalar_lea.vmem %s3, 112
    %v2978 = vld [vmem:[%s2977] sm:$0xf]
    %v2979 = vld [vmem:[%s2977 + $0x4] sm:$0xf]
    %v2980 = vld [vmem:[%s2977 + $0x8] sm:$0xf]
    %v2981 = vld [vmem:[%s2977 + $0xc] sm:$0xf]
    %s2982 = scalar_lea.vmem %s4, 7
    %v2983 = vld [vmem:[%s2982] sm:$0x1]
    %v2985 = vlaneseq
    %v2986 = vshrl.u32 %v2985, 7
    %v2987 = vsub.s32 0, %v2986
    %v2988 = vrot.slane %v2983, %v2987
    %v2994 = vunpack.c.l.b16 %v2978
    %v2995 = vunpack.c.l.b16 %v2979
    %v2996 = vunpack.c.l.b16 %v2980
    %v2997 = vunpack.c.l.b16 %v2981
    %v2998 = vpack.c.b16 %v2995, %v2994
    %v2999 = vpack.c.b16 %v2997, %v2996
    %3002 = vmatprep.subr.bf16.mxu0 0
    %3003 = vmatpush1.bf16.msra.mxu0 %v2998
    %3004 = vmatprep.subr.bf16.mxu0 0
    %3005 = vmatpush1.bf16.msra.mxu0 %v2999
    %3006 = vmatprep.subr.bf16.mxu0 0
    %3007 = vmatpush1.bf16.msra.mxu0 0
    %3008 = vmatprep.subr.bf16.mxu0 0
    %3009 = vmatpush1.bf16.msra.mxu0 0
    %3010 = vmatprep.subr.bf16.mxu0 0
    %3011 = vmatpush1.bf16.msra.mxu0 0
    %3012 = vmatprep.subr.bf16.mxu0 0
    %3013 = vmatpush1.bf16.msra.mxu0 0
    %3014 = vmatprep.subr.bf16.mxu0 0
    %3015 = vmatpush1.bf16.msra.mxu0 0
    %3016 = vmatprep.subr.bf16.mxu0 0
    %3017 = vmatpush1.bf16.msra.mxu0 0
    %3018 = vmatprep.subr.bf16.mxu0 0
    %3019 = vmatpush1.bf16.msra.mxu0 0
    %3020 = vmatprep.subr.bf16.mxu0 0
    %3021 = vmatpush1.bf16.msra.mxu0 0
    %3022 = vmatprep.subr.bf16.mxu0 0
    %3023 = vmatpush1.bf16.msra.mxu0 0
    %3024 = vmatprep.subr.bf16.mxu0 0
    %3025 = vmatpush1.bf16.msra.mxu0 0
    %3026 = vmatprep.subr.bf16.mxu0 0
    %3027 = vmatpush1.bf16.msra.mxu0 0
    %3028 = vmatprep.subr.bf16.mxu0 0
    %3029 = vmatpush1.bf16.msra.mxu0 0
    %3030 = vmatprep.subr.bf16.mxu0 0
    %3031 = vmatpush1.bf16.msra.mxu0 0
    %3032 = vmatprep.subr.bf16.mxu0 0
    %3033 = vmatpush1.bf16.msra.mxu0 0
    %3034 = vmatprep.mubr.bf16.mxu0 0
    %3035 = vmatmul.mubr.bf16.gmra.mrb[0].mxu0 %v1927
    %v3036 = vpop.f32.mrb[0].mxu0
    %v3037 = vadd.f32 %v2988, %v3036
    %v3038 = vpop.f32.mrb[0].mxu0
    %v3039 = vpop.f32.mrb[0].mxu0
    %v3040 = vadd.f32 %v2988, %v3039
    %v3041 = vpop.f32.mrb[0].mxu0
    %3042 = vdwg.mxu0
    %s3043 = scalar_lea.vmem %s5, 112
    %v3044 = vld [vmem:[%s3043] sm:$0xf]
    %v3045 = vld [vmem:[%s3043 + $0x4] sm:$0xf]
    %v3046 = vld [vmem:[%s3043 + $0x8] sm:$0xf]
    %v3047 = vld [vmem:[%s3043 + $0xc] sm:$0xf]
    %s3048 = scalar_lea.vmem %s6, 7
    %v3049 = vld [vmem:[%s3048] sm:$0x1]
    %v3051 = vlaneseq
    %v3052 = vshrl.u32 %v3051, 7
    %v3053 = vsub.s32 0, %v3052
    %v3054 = vrot.slane %v3049, %v3053
    %v3060 = vunpack.c.l.b16 %v3044
    %v3061 = vunpack.c.l.b16 %v3045
    %v3062 = vunpack.c.l.b16 %v3046
    %v3063 = vunpack.c.l.b16 %v3047
    %v3064 = vpack.c.b16 %v3061, %v3060
    %v3065 = vpack.c.b16 %v3063, %v3062
    %3068 = vmatprep.subr.bf16.mxu0 0
    %3069 = vmatpush1.bf16.msra.mxu0 %v3064
    %3070 = vmatprep.subr.bf16.mxu0 0
    %3071 = vmatpush1.bf16.msra.mxu0 %v3065
    %3072 = vmatprep.subr.bf16.mxu0 0
    %3073 = vmatpush1.bf16.msra.mxu0 0
    %3074 = vmatprep.subr.bf16.mxu0 0
    %3075 = vmatpush1.bf16.msra.mxu0 0
    %3076 = vmatprep.subr.bf16.mxu0 0
    %3077 = vmatpush1.bf16.msra.mxu0 0
    %3078 = vmatprep.subr.bf16.mxu0 0
    %3079 = vmatpush1.bf16.msra.mxu0 0
    %3080 = vmatprep.subr.bf16.mxu0 0
    %3081 = vmatpush1.bf16.msra.mxu0 0
    %3082 = vmatprep.subr.bf16.mxu0 0
    %3083 = vmatpush1.bf16.msra.mxu0 0
    %3084 = vmatprep.subr.bf16.mxu0 0
    %3085 = vmatpush1.bf16.msra.mxu0 0
    %3086 = vmatprep.subr.bf16.mxu0 0
    %3087 = vmatpush1.bf16.msra.mxu0 0
    %3088 = vmatprep.subr.bf16.mxu0 0
    %3089 = vmatpush1.bf16.msra.mxu0 0
    %3090 = vmatprep.subr.bf16.mxu0 0
    %3091 = vmatpush1.bf16.msra.mxu0 0
    %3092 = vmatprep.subr.bf16.mxu0 0
    %3093 = vmatpush1.bf16.msra.mxu0 0
    %3094 = vmatprep.subr.bf16.mxu0 0
    %3095 = vmatpush1.bf16.msra.mxu0 0
    %3096 = vmatprep.subr.bf16.mxu0 0
    %3097 = vmatpush1.bf16.msra.mxu0 0
    %3098 = vmatprep.subr.bf16.mxu0 0
    %3099 = vmatpush1.bf16.msra.mxu0 0
    %3100 = vmatprep.mubr.bf16.mxu0 0
    %3101 = vmatmul.mubr.bf16.gmra.mrb[0].mxu0 %v1927
    %v3102 = vpop.f32.mrb[0].mxu0
    %v3103 = vadd.f32 %v3054, %v3102
    %v3104 = vpop.f32.mrb[0].mxu0
    %v3105 = vpop.f32.mrb[0].mxu0
    %v3106 = vadd.f32 %v3054, %v3105
    %v3107 = vpop.f32.mrb[0].mxu0
    %3108 = vdwg.mxu0
    %s3109 = scalar_lea.vmem %s7, 112
    %v3110 = vld [vmem:[%s3109] sm:$0xf]
    %v3111 = vld [vmem:[%s3109 + $0x4] sm:$0xf]
    %v3112 = vld [vmem:[%s3109 + $0x8] sm:$0xf]
    %v3113 = vld [vmem:[%s3109 + $0xc] sm:$0xf]
    %s3114 = scalar_lea.vmem %s8, 7
    %v3115 = vld [vmem:[%s3114] sm:$0x1]
    %v3117 = vlaneseq
    %v3118 = vshrl.u32 %v3117, 7
    %v3119 = vsub.s32 0, %v3118
    %v3120 = vrot.slane %v3115, %v3119
    %v3126 = vunpack.c.l.b16 %v3110
    %v3127 = vunpack.c.l.b16 %v3111
    %v3128 = vunpack.c.l.b16 %v3112
    %v3129 = vunpack.c.l.b16 %v3113
    %v3130 = vpack.c.b16 %v3127, %v3126
    %v3131 = vpack.c.b16 %v3129, %v3128
    %3134 = vmatprep.subr.bf16.mxu0 0
    %3135 = vmatpush1.bf16.msra.mxu0 %v3130
    %3136 = vmatprep.subr.bf16.mxu0 0
    %3137 = vmatpush1.bf16.msra.mxu0 %v3131
    %3138 = vmatprep.subr.bf16.mxu0 0
    %3139 = vmatpush1.bf16.msra.mxu0 0
    %3140 = vmatprep.subr.bf16.mxu0 0
    %3141 = vmatpush1.bf16.msra.mxu0 0
    %3142 = vmatprep.subr.bf16.mxu0 0
    %3143 = vmatpush1.bf16.msra.mxu0 0
    %3144 = vmatprep.subr.bf16.mxu0 0
    %3145 = vmatpush1.bf16.msra.mxu0 0
    %3146 = vmatprep.subr.bf16.mxu0 0
    %3147 = vmatpush1.bf16.msra.mxu0 0
    %3148 = vmatprep.subr.bf16.mxu0 0
    %3149 = vmatpush1.bf16.msra.mxu0 0
    %3150 = vmatprep.subr.bf16.mxu0 0
    %3151 = vmatpush1.bf16.msra.mxu0 0
    %3152 = vmatprep.subr.bf16.mxu0 0
    %3153 = vmatpush1.bf16.msra.mxu0 0
    %3154 = vmatprep.subr.bf16.mxu0 0
    %3155 = vmatpush1.bf16.msra.mxu0 0
    %3156 = vmatprep.subr.bf16.mxu0 0
    %3157 = vmatpush1.bf16.msra.mxu0 0
    %3158 = vmatprep.subr.bf16.mxu0 0
    %3159 = vmatpush1.bf16.msra.mxu0 0
    %3160 = vmatprep.subr.bf16.mxu0 0
    %3161 = vmatpush1.bf16.msra.mxu0 0
    %3162 = vmatprep.subr.bf16.mxu0 0
    %3163 = vmatpush1.bf16.msra.mxu0 0
    %3164 = vmatprep.subr.bf16.mxu0 0
    %3165 = vmatpush1.bf16.msra.mxu0 0
    %3166 = vmatprep.mubr.bf16.mxu0 0
    %3167 = vmatmul.mubr.bf16.gmra.mrb[0].mxu0 %v1927
    %v3168 = vpop.f32.mrb[0].mxu0
    %v3169 = vadd.f32 %v3120, %v3168
    %v3170 = vpop.f32.mrb[0].mxu0
    %v3171 = vpop.f32.mrb[0].mxu0
    %v3172 = vadd.f32 %v3120, %v3171
    %v3173 = vpop.f32.mrb[0].mxu0
    %3174 = vdwg.mxu0
    %v3175 = vpack.c.bf16 %v3040, %v3037
    %v3176 = vpack.c.bf16 %v3106, %v3103
    %v3178 = vsel %vm365, %v3175, 0
    %v3181 = vsel %vm365, %v3176, 0
    %3183 = vmatprep.subr.bf16.mxu0 0
    %3184 = vmatpush1.bf16.xpose.msra.mxu0 %v3181
    %3185 = vmatprep.subr.bf16.mxu0 0
    %3186 = vmatpush1.bf16.xpose.msra.mxu0 0
    %3187 = vmatprep.subr.bf16.mxu0 0
    %3188 = vmatpush1.bf16.xpose.msra.mxu0 0
    %3189 = vmatprep.subr.bf16.mxu0 0
    %3190 = vmatpush1.bf16.xpose.msra.mxu0 0
    %3191 = vmatprep.subr.bf16.mxu0 0
    %3192 = vmatpush1.bf16.xpose.msra.mxu0 0
    %3193 = vmatprep.subr.bf16.mxu0 0
    %3194 = vmatpush1.bf16.xpose.msra.mxu0 0
    %3195 = vmatprep.subr.bf16.mxu0 0
    %3196 = vmatpush1.bf16.xpose.msra.mxu0 0
    %3197 = vmatprep.subr.bf16.mxu0 0
    %3198 = vmatpush1.bf16.xpose.msra.mxu0 0
    %3199 = vmatprep.subr.bf16.mxu0 0
    %3200 = vmatpush1.bf16.xpose.msra.mxu0 0
    %3201 = vmatprep.subr.bf16.mxu0 0
    %3202 = vmatpush1.bf16.xpose.msra.mxu0 0
    %3203 = vmatprep.subr.bf16.mxu0 0
    %3204 = vmatpush1.bf16.xpose.msra.mxu0 0
    %3205 = vmatprep.subr.bf16.mxu0 0
    %3206 = vmatpush1.bf16.xpose.msra.mxu0 0
    %3207 = vmatprep.subr.bf16.mxu0 0
    %3208 = vmatpush1.bf16.xpose.msra.mxu0 0
    %3209 = vmatprep.subr.bf16.mxu0 0
    %3210 = vmatpush1.bf16.xpose.msra.mxu0 0
    %3211 = vmatprep.subr.bf16.mxu0 0
    %3212 = vmatpush1.bf16.xpose.msra.mxu0 0
    %3213 = vmatprep.subr.bf16.mxu0 0
    %3214 = vmatpush1.bf16.xpose.msra.mxu0 0
    %3215 = vmatprep.mubr.bf16.mxu0 0
    %3216 = vmatmul.mubr.bf16.gmra.mrb[0].mxu0 %v3178
    %v3217 = vpop.f32.mrb[0].mxu0
    %v3218 = vadd.f32 %v164, %v3217
    %v3219 = vpop.f32.mrb[0].mxu0
    %v3220 = vpop.f32.mrb[0].mxu0
    %v3221 = vadd.f32 %v165, %v3220
    %v3222 = vpop.f32.mrb[0].mxu0
    %3223 = vdwg.mxu0
    %v3224 = vmul.f32 %v3218, 1.442695
    %v3225 = vpow.pop %v3224
    %v3226 = vmul.f32 %v3221, 1.442695
    %v3227 = vpow.pop %v3226
    %v3228 = vsel %vm417, %v3225, 0.0
    %3229 = vadd.xlane.f32.xlu0 %v3228
    %v3230 = vpop.xlane.xlu0 %3229
    %v3231 = vsel %vm417, %v3227, 0.0
    %3232 = vadd.xlane.f32.xlu0 %v3231
    %v3233 = vpop.xlane.xlu0 %3232
    %v3234 = vrcp.pop %v3230
    %v3235 = vrcp.pop %v3233
    %v3236 = vmul.f32 %v3225, %v3234
    %v3237 = vmul.f32 %v3227, %v3235
    %v3238 = vpack.c.bf16 %v3237, %v3236
    %v3239 = vpack.c.bf16 %v3172, %v3169
    %v3241 = vsel %vm417, %v3238, 0
    %3243 = vmatprep.subr.bf16.mxu0 0
    %3244 = vmatpush1.bf16.msra.mxu0 %v3239
    %3245 = vmatprep.subr.bf16.mxu0 0
    %3246 = vmatpush1.bf16.msra.mxu0 0
    %3247 = vmatprep.subr.bf16.mxu0 0
    %3248 = vmatpush1.bf16.msra.mxu0 0
    %3249 = vmatprep.subr.bf16.mxu0 0
    %3250 = vmatpush1.bf16.msra.mxu0 0
    %3251 = vmatprep.subr.bf16.mxu0 0
    %3252 = vmatpush1.bf16.msra.mxu0 0
    %3253 = vmatprep.subr.bf16.mxu0 0
    %3254 = vmatpush1.bf16.msra.mxu0 0
    %3255 = vmatprep.subr.bf16.mxu0 0
    %3256 = vmatpush1.bf16.msra.mxu0 0
    %3257 = vmatprep.subr.bf16.mxu0 0
    %3258 = vmatpush1.bf16.msra.mxu0 0
    %3259 = vmatprep.subr.bf16.mxu0 0
    %3260 = vmatpush1.bf16.msra.mxu0 0
    %3261 = vmatprep.subr.bf16.mxu0 0
    %3262 = vmatpush1.bf16.msra.mxu0 0
    %3263 = vmatprep.subr.bf16.mxu0 0
    %3264 = vmatpush1.bf16.msra.mxu0 0
    %3265 = vmatprep.subr.bf16.mxu0 0
    %3266 = vmatpush1.bf16.msra.mxu0 0
    %3267 = vmatprep.subr.bf16.mxu0 0
    %3268 = vmatpush1.bf16.msra.mxu0 0
    %3269 = vmatprep.subr.bf16.mxu0 0
    %3270 = vmatpush1.bf16.msra.mxu0 0
    %3271 = vmatprep.subr.bf16.mxu0 0
    %3272 = vmatpush1.bf16.msra.mxu0 0
    %3273 = vmatprep.subr.bf16.mxu0 0
    %3274 = vmatpush1.bf16.msra.mxu0 0
    %3275 = vmatprep.mubr.bf16.mxu0 0
    %3276 = vmatmul.mubr.bf16.gmra.mrb[0].mxu0 %v3241
    %v3277 = vpop.f32.mrb[0].mxu0
    %v3278 = vadd.f32 0.0, %v3277
    %v3279 = vpop.f32.mrb[0].mxu0
    %v3280 = vpop.f32.mrb[0].mxu0
    %v3281 = vadd.f32 0.0, %v3280
    %v3282 = vpop.f32.mrb[0].mxu0
    %3283 = vdwg.mxu0
    %v3284 = vpack.c.bf16 %v3281, %v3278
    %s3285 = scalar_lea.vmem %s9, 28
    %v3286 = vld [vmem:[%s3285] sm:$0xf]
    %v3288 = vsel %vm365, %v3284, 0
    %v3291 = vsel %vm789, %v3286, 0
    %3293 = vmatprep.subr.bf16.mxu0 0
    %3294 = vmatpush1.bf16.msra.mxu0 %v3291
    %3295 = vmatprep.subr.bf16.mxu0 0
    %3296 = vmatpush1.bf16.msra.mxu0 0
    %3297 = vmatprep.subr.bf16.mxu0 0
    %3298 = vmatpush1.bf16.msra.mxu0 0
    %3299 = vmatprep.subr.bf16.mxu0 0
    %3300 = vmatpush1.bf16.msra.mxu0 0
    %3301 = vmatprep.subr.bf16.mxu0 0
    %3302 = vmatpush1.bf16.msra.mxu0 0
    %3303 = vmatprep.subr.bf16.mxu0 0
    %3304 = vmatpush1.bf16.msra.mxu0 0
    %3305 = vmatprep.subr.bf16.mxu0 0
    %3306 = vmatpush1.bf16.msra.mxu0 0
    %3307 = vmatprep.subr.bf16.mxu0 0
    %3308 = vmatpush1.bf16.msra.mxu0 0
    %3309 = vmatprep.subr.bf16.mxu0 0
    %3310 = vmatpush1.bf16.msra.mxu0 0
    %3311 = vmatprep.subr.bf16.mxu0 0
    %3312 = vmatpush1.bf16.msra.mxu0 0
    %3313 = vmatprep.subr.bf16.mxu0 0
    %3314 = vmatpush1.bf16.msra.mxu0 0
    %3315 = vmatprep.subr.bf16.mxu0 0
    %3316 = vmatpush1.bf16.msra.mxu0 0
    %3317 = vmatprep.subr.bf16.mxu0 0
    %3318 = vmatpush1.bf16.msra.mxu0 0
    %3319 = vmatprep.subr.bf16.mxu0 0
    %3320 = vmatpush1.bf16.msra.mxu0 0
    %3321 = vmatprep.subr.bf16.mxu0 0
    %3322 = vmatpush1.bf16.msra.mxu0 0
    %3323 = vmatprep.subr.bf16.mxu0 0
    %3324 = vmatpush1.bf16.msra.mxu0 0
    %3325 = vmatprep.mubr.bf16.mxu0 0
    %3326 = vmatmul.mubr.bf16.gmra.mrb[0].mxu0 %v3288
    %v3327 = vpop.f32.mrb[0].mxu0
    %v3328 = vadd.f32 0.0, %v3327
    %v3329 = vpop.f32.mrb[0].mxu0
    %v3330 = vpop.f32.mrb[0].mxu0
    %v3331 = vadd.f32 0.0, %v3330
    %v3332 = vpop.f32.mrb[0].mxu0
    %3333 = vdwg.mxu0
    %v3334 = vadd.f32 %v2975, %v3328
    %v3335 = vadd.f32 %v2976, %v3331
    %s3336 = scalar_lea.vmem %s10, 1
    %v3337 = vld [vmem:[%s3336] sm:$0x1]
    %v3339 = vlaneseq
    %v3340 = vshrl.u32 %v3339, 7
    %v3341 = vsub.s32 0, %v3340
    %v3342 = vrot.slane %v3337, %v3341
    %v3344 = vadd.f32 %v3334, %v3342
    %v3345 = vadd.f32 %v3335, %v3342
    %v3346 = vadd.f32 %v1898, %v3344
    %v3347 = vadd.f32 %v1899, %v3345
    %s3348 = scalar_lea.vmem %s11, 1
    %v3349 = vld [vmem:[%s3348] sm:$0x1]
    %s3350 = scalar_lea.vmem %s12, 1
    %v3351 = vld [vmem:[%s3350] sm:$0x1]
    %v3352 = vsel %vm190, %v3346, 0.0
    %3353 = vadd.xlane.f32.xlu0 %v3352
    %v3354 = vpop.xlane.xlu0 %3353
    %v3355 = vsel %vm190, %v3347, 0.0
    %3356 = vadd.xlane.f32.xlu0 %v3355
    %v3357 = vpop.xlane.xlu0 %3356
    %v3358 = vmul.f32 %v3354, %v1618
    %v3359 = vmul.f32 %v3357, %v1618
    %v3360 = vsub.f32 %v3346, %v3358
    %v3361 = vsub.f32 %v3347, %v3359
    %v3362 = vmul.f32 %v3360, %v3360
    %v3363 = vmul.f32 %v3361, %v3361
    %v3364 = vsel %vm190, %v3362, 0.0
    %3365 = vadd.xlane.f32.xlu0 %v3364
    %v3366 = vpop.xlane.xlu0 %3365
    %v3367 = vsel %vm190, %v3363, 0.0
    %3368 = vadd.xlane.f32.xlu0 %v3367
    %v3369 = vpop.xlane.xlu0 %3368
    %v3370 = vmul.f32 %v3366, %v1618
    %v3371 = vmul.f32 %v3369, %v1618
    %v3372 = vadd.f32 %v3370, 1e-05
    %v3373 = vadd.f32 %v3371, 1e-05
    %v3374 = vrsqrt.pop %v3372
    %v3375 = vrsqrt.pop %v3373
    %v3376 = vmul.f32 %v3360, %v3374
    %v3377 = vmul.f32 %v3361, %v3375
    %v3379 = vlaneseq
    %v3380 = vshrl.u32 %v3379, 7
    %v3381 = vsub.s32 0, %v3380
    %v3382 = vrot.slane %v3349, %v3381
    %v3384 = vmul.f32 %v3376, %v3382
    %v3385 = vmul.f32 %v3377, %v3382
    %v3387 = vlaneseq
    %v3388 = vshrl.u32 %v3387, 7
    %v3389 = vsub.s32 0, %v3388
    %v3390 = vrot.slane %v3351, %v3389
    %v3392 = vadd.f32 %v3384, %v3390
    %v3393 = vadd.f32 %v3385, %v3390
    %v3394 = vpack.c.bf16 %v3393, %v3392
    %s3395 = scalar_lea.vmem %s13, 16
    %v3396 = vld [vmem:[%s3395] sm:$0xf]
    %v3397 = vld [vmem:[%s3395 + $0x4] sm:$0xf]
    %v3398 = vld [vmem:[%s3395 + $0x8] sm:$0xf]
    %v3399 = vld [vmem:[%s3395 + $0xc] sm:$0xf]
    %s3400 = scalar_lea.vmem %s14, 1
    %v3401 = vld [vmem:[%s3400] sm:$0x1]
    %v3403 = vlaneseq
    %v3404 = vshrl.u32 %v3403, 7
    %v3405 = vsub.s32 0, %v3404
    %v3406 = vrot.slane %v3401, %v3405
    %v3412 = vunpack.c.l.b16 %v3396
    %v3413 = vunpack.c.l.b16 %v3397
    %v3414 = vunpack.c.l.b16 %v3398
    %v3415 = vunpack.c.l.b16 %v3399
    %v3416 = vpack.c.b16 %v3413, %v3412
    %v3417 = vpack.c.b16 %v3415, %v3414
    %v3421 = vsel %vm190, %v3394, 0
    %3423 = vmatprep.subr.bf16.mxu0 0
    %3424 = vmatpush1.bf16.msra.mxu0 %v3416
    %3425 = vmatprep.subr.bf16.mxu0 0
    %3426 = vmatpush1.bf16.msra.mxu0 %v3417
    %3427 = vmatprep.subr.bf16.mxu0 0
    %3428 = vmatpush1.bf16.msra.mxu0 0
    %3429 = vmatprep.subr.bf16.mxu0 0
    %3430 = vmatpush1.bf16.msra.mxu0 0
    %3431 = vmatprep.subr.bf16.mxu0 0
    %3432 = vmatpush1.bf16.msra.mxu0 0
    %3433 = vmatprep.subr.bf16.mxu0 0
    %3434 = vmatpush1.bf16.msra.mxu0 0
    %3435 = vmatprep.subr.bf16.mxu0 0
    %3436 = vmatpush1.bf16.msra.mxu0 0
    %3437 = vmatprep.subr.bf16.mxu0 0
    %3438 = vmatpush1.bf16.msra.mxu0 0
    %3439 = vmatprep.subr.bf16.mxu0 0
    %3440 = vmatpush1.bf16.msra.mxu0 0
    %3441 = vmatprep.subr.bf16.mxu0 0
    %3442 = vmatpush1.bf16.msra.mxu0 0
    %3443 = vmatprep.subr.bf16.mxu0 0
    %3444 = vmatpush1.bf16.msra.mxu0 0
    %3445 = vmatprep.subr.bf16.mxu0 0
    %3446 = vmatpush1.bf16.msra.mxu0 0
    %3447 = vmatprep.subr.bf16.mxu0 0
    %3448 = vmatpush1.bf16.msra.mxu0 0
    %3449 = vmatprep.subr.bf16.mxu0 0
    %3450 = vmatpush1.bf16.msra.mxu0 0
    %3451 = vmatprep.subr.bf16.mxu0 0
    %3452 = vmatpush1.bf16.msra.mxu0 0
    %3453 = vmatprep.subr.bf16.mxu0 0
    %3454 = vmatpush1.bf16.msra.mxu0 0
    %3455 = vmatprep.mubr.bf16.mxu0 0
    %3456 = vmatmul.mubr.bf16.gmra.mrb[0].mxu0 %v3421
    %v3457 = vpop.f32.mrb[0].mxu0
    %v3458 = vadd.f32 %v3406, %v3457
    %v3459 = vpop.f32.mrb[0].mxu0
    %v3460 = vpop.f32.mrb[0].mxu0
    %v3461 = vadd.f32 %v3406, %v3460
    %v3462 = vpop.f32.mrb[0].mxu0
    %3463 = vdwg.mxu0
    %v3464 = vmul.f32 %v3458, 0.5
    %v3465 = vmul.f32 %v3461, 0.5
    %v3466 = vmul.f32 %v3458, 0.044715
    %v3467 = vmul.f32 %v3461, 0.044715
    %v3468 = vmul.f32 %v3466, %v3458
    %v3469 = vmul.f32 %v3467, %v3461
    %v3470 = vmul.f32 %v3468, %v3458
    %v3471 = vmul.f32 %v3469, %v3461
    %v3472 = vadd.f32 %v3458, %v3470
    %v3473 = vadd.f32 %v3461, %v3471
    %v3474 = vmul.f32 %v3472, 0.7978846
    %v3475 = vmul.f32 %v3473, 0.7978846
    %v3476 = vtanh.pop %v3474
    %v3477 = vtanh.pop %v3475
    %v3478 = vadd.f32 %v3476, 1.0
    %v3479 = vadd.f32 %v3477, 1.0
    %v3480 = vmul.f32 %v3464, %v3478
    %v3481 = vmul.f32 %v3465, %v3479
    %v3482 = vpack.c.bf16 %v3481, %v3480
    %s3483 = scalar_lea.vmem %s15, 64
    %v3484 = vld [vmem:[%s3483] sm:$0xf]
    %v3485 = vld [vmem:[%s3483 + $0x4] sm:$0xf]
    %v3486 = vld [vmem:[%s3483 + $0x8] sm:$0xf]
    %v3487 = vld [vmem:[%s3483 + $0xc] sm:$0xf]
    %v3488 = vld [vmem:[%s3483 + $0x10] sm:$0xf]
    %v3489 = vld [vmem:[%s3483 + $0x14] sm:$0xf]
    %v3490 = vld [vmem:[%s3483 + $0x18] sm:$0xf]
    %v3491 = vld [vmem:[%s3483 + $0x1c] sm:$0xf]
    %v3492 = vld [vmem:[%s3483 + $0x20] sm:$0xf]
    %v3493 = vld [vmem:[%s3483 + $0x24] sm:$0xf]
    %v3494 = vld [vmem:[%s3483 + $0x28] sm:$0xf]
    %v3495 = vld [vmem:[%s3483 + $0x2c] sm:$0xf]
    %v3496 = vld [vmem:[%s3483 + $0x30] sm:$0xf]
    %v3497 = vld [vmem:[%s3483 + $0x34] sm:$0xf]
    %v3498 = vld [vmem:[%s3483 + $0x38] sm:$0xf]
    %v3499 = vld [vmem:[%s3483 + $0x3c] sm:$0xf]
    %s3500 = scalar_lea.vmem %s16, 1
    %v3501 = vld [vmem:[%s3500] sm:$0x1]
    %v3503 = vlaneseq
    %v3504 = vshrl.u32 %v3503, 7
    %v3505 = vsub.s32 0, %v3504
    %v3506 = vrot.slane %v3501, %v3505
    %v3524 = vunpack.c.l.b16 %v3484
    %v3525 = vunpack.c.l.b16 %v3485
    %v3526 = vunpack.c.l.b16 %v3486
    %v3527 = vunpack.c.l.b16 %v3487
    %v3528 = vunpack.c.l.b16 %v3488
    %v3529 = vunpack.c.l.b16 %v3489
    %v3530 = vunpack.c.l.b16 %v3490
    %v3531 = vunpack.c.l.b16 %v3491
    %v3532 = vunpack.c.l.b16 %v3492
    %v3533 = vunpack.c.l.b16 %v3493
    %v3534 = vunpack.c.l.b16 %v3494
    %v3535 = vunpack.c.l.b16 %v3495
    %v3536 = vunpack.c.l.b16 %v3496
    %v3537 = vunpack.c.l.b16 %v3497
    %v3538 = vunpack.c.l.b16 %v3498
    %v3539 = vunpack.c.l.b16 %v3499
    %v3540 = vpack.c.b16 %v3525, %v3524
    %v3541 = vpack.c.b16 %v3527, %v3526
    %v3542 = vpack.c.b16 %v3529, %v3528
    %v3543 = vpack.c.b16 %v3531, %v3530
    %v3544 = vpack.c.b16 %v3533, %v3532
    %v3545 = vpack.c.b16 %v3535, %v3534
    %v3546 = vpack.c.b16 %v3537, %v3536
    %v3547 = vpack.c.b16 %v3539, %v3538
    %3556 = vmatprep.subr.bf16.mxu0 0
    %3557 = vmatpush1.bf16.msra.mxu0 %v3540
    %3558 = vmatprep.subr.bf16.mxu0 0
    %3559 = vmatpush1.bf16.msra.mxu0 %v3541
    %3560 = vmatprep.subr.bf16.mxu0 0
    %3561 = vmatpush1.bf16.msra.mxu0 %v3542
    %3562 = vmatprep.subr.bf16.mxu0 0
    %3563 = vmatpush1.bf16.msra.mxu0 %v3543
    %3564 = vmatprep.subr.bf16.mxu0 0
    %3565 = vmatpush1.bf16.msra.mxu0 %v3544
    %3566 = vmatprep.subr.bf16.mxu0 0
    %3567 = vmatpush1.bf16.msra.mxu0 %v3545
    %3568 = vmatprep.subr.bf16.mxu0 0
    %3569 = vmatpush1.bf16.msra.mxu0 %v3546
    %3570 = vmatprep.subr.bf16.mxu0 0
    %3571 = vmatpush1.bf16.msra.mxu0 %v3547
    %3572 = vmatprep.subr.bf16.mxu0 0
    %3573 = vmatpush1.bf16.msra.mxu0 0
    %3574 = vmatprep.subr.bf16.mxu0 0
    %3575 = vmatpush1.bf16.msra.mxu0 0
    %3576 = vmatprep.subr.bf16.mxu0 0
    %3577 = vmatpush1.bf16.msra.mxu0 0
    %3578 = vmatprep.subr.bf16.mxu0 0
    %3579 = vmatpush1.bf16.msra.mxu0 0
    %3580 = vmatprep.subr.bf16.mxu0 0
    %3581 = vmatpush1.bf16.msra.mxu0 0
    %3582 = vmatprep.subr.bf16.mxu0 0
    %3583 = vmatpush1.bf16.msra.mxu0 0
    %3584 = vmatprep.subr.bf16.mxu0 0
    %3585 = vmatpush1.bf16.msra.mxu0 0
    %3586 = vmatprep.subr.bf16.mxu0 0
    %3587 = vmatpush1.bf16.msra.mxu0 0
    %3588 = vmatprep.mubr.bf16.mxu0 0
    %3589 = vmatmul.mubr.bf16.gmra.mrb[0].mxu0 %v3482
    %v3590 = vpop.f32.mrb[0].mxu0
    %v3591 = vadd.f32 %v3506, %v3590
    %v3592 = vpop.f32.mrb[0].mxu0
    %v3593 = vpop.f32.mrb[0].mxu0
    %v3594 = vadd.f32 %v3506, %v3593
    %v3595 = vpop.f32.mrb[0].mxu0
    %3596 = vdwg.mxu0
    %v3597 = vadd.f32 %v3392, %v3591
    %v3598 = vadd.f32 %v3393, %v3594
    %s3599 = scalar_lea.vmem %s17, 1
    %v3600 = vld [vmem:[%s3599] sm:$0x1]
    %s3601 = scalar_lea.vmem %s18, 1
    %v3602 = vld [vmem:[%s3601] sm:$0x1]
    %v3603 = vsel %vm190, %v3597, 0.0
    %3604 = vadd.xlane.f32.xlu0 %v3603
    %v3605 = vpop.xlane.xlu0 %3604
    %v3606 = vsel %vm190, %v3598, 0.0
    %3607 = vadd.xlane.f32.xlu0 %v3606
    %v3608 = vpop.xlane.xlu0 %3607
    %v3609 = vmul.f32 %v3605, %v1618
    %v3610 = vmul.f32 %v3608, %v1618
    %v3611 = vsub.f32 %v3597, %v3609
    %v3612 = vsub.f32 %v3598, %v3610
    %v3613 = vmul.f32 %v3611, %v3611
    %v3614 = vmul.f32 %v3612, %v3612
    %v3615 = vsel %vm190, %v3613, 0.0
    %3616 = vadd.xlane.f32.xlu0 %v3615
    %v3617 = vpop.xlane.xlu0 %3616
    %v3618 = vsel %vm190, %v3614, 0.0
    %3619 = vadd.xlane.f32.xlu0 %v3618
    %v3620 = vpop.xlane.xlu0 %3619
    %v3621 = vmul.f32 %v3617, %v1618
    %v3622 = vmul.f32 %v3620, %v1618
    %v3623 = vadd.f32 %v3621, 1e-05
    %v3624 = vadd.f32 %v3622, 1e-05
    %v3625 = vrsqrt.pop %v3623
    %v3626 = vrsqrt.pop %v3624
    %v3627 = vmul.f32 %v3611, %v3625
    %v3628 = vmul.f32 %v3612, %v3626
    %v3630 = vlaneseq
    %v3631 = vshrl.u32 %v3630, 7
    %v3632 = vsub.s32 0, %v3631
    %v3633 = vrot.slane %v3600, %v3632
    %v3635 = vmul.f32 %v3627, %v3633
    %v3636 = vmul.f32 %v3628, %v3633
    %v3638 = vlaneseq
    %v3639 = vshrl.u32 %v3638, 7
    %v3640 = vsub.s32 0, %v3639
    %v3641 = vrot.slane %v3602, %v3640
    %v3643 = vadd.f32 %v3635, %v3641
    %v3644 = vadd.f32 %v3636, %v3641
    %v3645 = vpack.c.bf16 %v3644, %v3643
    %v3646 = vld [vmem:[%s20] sm:$0xf]
    %v3647 = vld [vmem:[%s20 + $0x4] sm:$0xf]
    %v3648 = vld [vmem:[%s20 + $0x8] sm:$0xf]
    %v3649 = vld [vmem:[%s20 + $0xc] sm:$0xf]
    %v3654 = vunpack.c.l.b16 %v3646
    %v3655 = vunpack.c.l.b16 %v3647
    %v3656 = vunpack.c.l.b16 %v3648
    %v3657 = vunpack.c.l.b16 %v3649
    %v3658 = vpack.c.b16 %v3655, %v3654
    %v3659 = vpack.c.b16 %v3657, %v3656
    %v3663 = vsel %vm190, %v3645, 0
    %3665 = vmatprep.subr.bf16.mxu0 0
    %3666 = vmatpush1.bf16.msra.mxu0 %v3658
    %3667 = vmatprep.subr.bf16.mxu0 0
    %3668 = vmatpush1.bf16.msra.mxu0 %v3659
    %3669 = vmatprep.subr.bf16.mxu0 0
    %3670 = vmatpush1.bf16.msra.mxu0 0
    %3671 = vmatprep.subr.bf16.mxu0 0
    %3672 = vmatpush1.bf16.msra.mxu0 0
    %3673 = vmatprep.subr.bf16.mxu0 0
    %3674 = vmatpush1.bf16.msra.mxu0 0
    %3675 = vmatprep.subr.bf16.mxu0 0
    %3676 = vmatpush1.bf16.msra.mxu0 0
    %3677 = vmatprep.subr.bf16.mxu0 0
    %3678 = vmatpush1.bf16.msra.mxu0 0
    %3679 = vmatprep.subr.bf16.mxu0 0
    %3680 = vmatpush1.bf16.msra.mxu0 0
    %3681 = vmatprep.subr.bf16.mxu0 0
    %3682 = vmatpush1.bf16.msra.mxu0 0
    %3683 = vmatprep.subr.bf16.mxu0 0
    %3684 = vmatpush1.bf16.msra.mxu0 0
    %3685 = vmatprep.subr.bf16.mxu0 0
    %3686 = vmatpush1.bf16.msra.mxu0 0
    %3687 = vmatprep.subr.bf16.mxu0 0
    %3688 = vmatpush1.bf16.msra.mxu0 0
    %3689 = vmatprep.subr.bf16.mxu0 0
    %3690 = vmatpush1.bf16.msra.mxu0 0
    %3691 = vmatprep.subr.bf16.mxu0 0
    %3692 = vmatpush1.bf16.msra.mxu0 0
    %3693 = vmatprep.subr.bf16.mxu0 0
    %3694 = vmatpush1.bf16.msra.mxu0 0
    %3695 = vmatprep.subr.bf16.mxu0 0
    %3696 = vmatpush1.bf16.msra.mxu0 0
    %3697 = vmatprep.mubr.bf16.mxu0 0
    %3698 = vmatmul.mubr.bf16.gmra.mrb[0].mxu0 %v3663
    %v3699 = vpop.f32.mrb[0].mxu0
    %v3700 = vadd.f32 0.0, %v3699
    %v3701 = vpop.f32.mrb[0].mxu0
    %v3702 = vpop.f32.mrb[0].mxu0
    %v3703 = vadd.f32 0.0, %v3702
    %v3704 = vpop.f32.mrb[0].mxu0
    %3705 = vdwg.mxu0
    %3706 = vst [vmem:[#allocation2] sm:$0xff] %v3700
    %3707 = vst [vmem:[#allocation2 + $0x8] sm:$0xff] %v3703
    // Predicated region
    $region86: #{tpu_custom_call.1} parent=1 // pred_check
      _
    $region87: #{tpu_custom_call.1} parent=1 // pred_check_branch
      %3709 = sbr.rel (0) target = $region89
    $region88: #{tpu_custom_call.1} parent=1 // pred_region
      %s3711 = ssub.s32 256, 256
      %3712 = vsyncadd [#allocation3], %s3711
      %s3713 = sshll.u32 [#allocation2], 4
      %s3714 = int_to_ptr.vmem [resolvable:$true] %s3713
      %3719 = dma.vmem_to_hbm [thread:$0]  %s3714, 256, %s21, [#allocation3], 128, 128, 8
    $region89: #{tpu_custom_call.1} parent=1 // pred_fallthru
      _
    // Predicated region
    $region90: #{tpu_custom_call.1} parent=1 // pred_check
      _
    $region91: #{tpu_custom_call.1} parent=1 // pred_check_branch
      %3721 = sbr.rel (0) target = $region93
    $region92: #{tpu_custom_call.1} parent=1 // pred_region
      %3722 = dma.done [#allocation3], 256
    $region93: #{tpu_custom_call.1} parent=1 // pred_fallthru
      _
    %3723 = vsyncpa [#allocation3], 1

</llo_original>
